<compile_context>
chip_gen: v7x
topology: tpu7x:2x2x1
jax: 0.10.0
libtpu: 0.0.40
codegen_flags: <defaults>
</compile_context>

<pallas_src>
import functools

import jax
import jax.numpy as jnp
from jax import lax
from jax.experimental import pallas as pl
from jax.experimental.pallas import tpu as pltpu


def _pick_block_batch(B, max_bb=8):
    """Largest divisor of B that is <= max_bb while keeping >= 2 grid steps
    (amortizes per-step overhead, and lets both v7x TensorCores take work)."""
    best = 1
    for bb in range(1, min(B, max_bb) + 1):
        if B % bb == 0 and B // bb >= 2:
            best = bb
    return best


def _make_kernel(C, Hz, Wz, Hx, Wx, out_scale):
    Ho, Wo = Hx - Hz + 1, Wx - Wz + 1
    NACC = Ho * Wx                        # lane-dense, row-strided accumulator width
    NOUT = pl.cdiv(NACC, 128) * 128       # pad to a multiple of 128 lanes (dense store/DMA)

    def kernel(z_ref, x_ref, o_ref, acc_ref):
        # z_ref:   (Bb, Hz, Wz, C)   channels-last template block
        # x_ref:   (Bb, Hx*Wx, C)    channels-last, spatially-flattened search block
        # o_ref:   (Bb, 1, NOUT)     lane-dense (padded) score slab
        # acc_ref: (Bb, NOUT) f32    VMEM accumulator scratch
        acc_ref[...] = jnp.zeros_like(acc_ref)

        prec = lax.Precision.HIGHEST if x_ref.dtype == jnp.float32 else None

        def per_template_row(p, carry):
            # Search rows touched by template row p: flat rows [p*Wx, p*Wx + Ho*Wx).
            row0 = pl.multiple_of(p * Wx, Wx)
            xp = x_ref[:, pl.ds(row0, NACC), :]            # (Bb, Ho*Wx, C)
            zp = z_ref[:, pl.ds(p, 1), :, :][:, 0]         # (Bb, Wz, C)
            # One MXU matmul per template row: contract channels (the lane axis)
            # for all Wz column shifts at once.
            s = lax.dot_general(
                zp, xp,
                dimension_numbers=(((2,), (2,)), ((0,), (0,))),
                precision=prec,
                preferred_element_type=jnp.float32)        # (Bb, Wz, Ho*Wx)
            # Column shift q == static lane-slice of the small matmul result;
            # lanes that would wrap past a row end only land in discarded
            # columns (j >= Wo), which the wrapper slices away.
            for q in range(Wz):                            # small static unroll
                acc_ref[:, :NACC - q] += s[:, q, q:]
            return carry

        lax.fori_loop(0, Hz, per_template_row, 0, unroll=True)

        # Single dense store of the whole padded slab (padding lanes stay zero).
        o_ref[:, 0, :] = (acc_ref[...] * out_scale).astype(o_ref.dtype)

    return kernel, Ho, Wo, NACC, NOUT


@functools.partial(jax.jit, static_argnames=("out_scale",))
def siamfc_head(z, x, out_scale=0.01):
    """SiamFC.forward(z, x) = xcorr_fast(x, z) * out_scale.

    z: template features [B, C, Hz, Wz]; x: search features [B, C, Hx, Wx].
    Returns the score map [B, 1, Hx-Hz+1, Wx-Wz+1] in float32.
    """
    B, C, Hz, Wz = z.shape
    Bx, Cx, Hx, Wx = x.shape
    assert B == Bx and C == Cx
    assert Hx >= Hz and Wx >= Wz

    if z.dtype != x.dtype:
        dt = jnp.promote_types(z.dtype, x.dtype)
        z, x = z.astype(dt), x.astype(dt)

    Bb = _pick_block_batch(B)
    kernel, Ho, Wo, NACC, NOUT = _make_kernel(C, Hz, Wz, Hx, Wx, out_scale)

    # Channels-last / lane-dense layout plumbing stays in XLA outside the kernel.
    z_l = jnp.transpose(z, (0, 2, 3, 1))                           # [B, Hz, Wz, C]
    x_l = jnp.transpose(x, (0, 2, 3, 1)).reshape(B, Hx * Wx, C)    # [B, Hx*Wx, C]

    out_flat = pl.pallas_call(
        kernel,
        out_shape=jax.ShapeDtypeStruct((B, 1, NOUT), jnp.float32),
        grid_spec=pltpu.PrefetchScalarGridSpec(
            num_scalar_prefetch=0,
            grid=(B // Bb,),
            in_specs=[
                pl.BlockSpec((Bb, Hz, Wz, C), lambda b: (b, 0, 0, 0)),
                pl.BlockSpec((Bb, Hx * Wx, C), lambda b: (b, 0, 0)),
            ],
            out_specs=pl.BlockSpec((Bb, 1, NOUT), lambda b: (b, 0, 0)),
            scratch_shapes=[pltpu.VMEM((Bb, NOUT), jnp.float32)],
        ),
        compiler_params=pltpu.CompilerParams(
            dimension_semantics=("parallel",)),
    )(z_l, x_l)

    # Drop the row-stride / lane padding and restore the NCHW score-map shape.
    scores = out_flat[:, 0, :NACC].reshape(B, Ho, Wx)[:, :, :Wo]
    return scores[:, None, :, :]


def _reference(z, x, out_scale=0.01):
    """Pure-JAX reference: per-batch grouped valid cross-correlation."""
    B = z.shape[0]
    outs = []
    for b in range(B):
        o = lax.conv_general_dilated(
            x[b:b + 1].astype(jnp.float32),
            z[b:b + 1].astype(jnp.float32),     # NCHW input, OIHW filter (O=1)
            window_strides=(1, 1), padding="VALID",
            precision=lax.Precision.HIGHEST)
        outs.append(o)
    return jnp.concatenate(outs, axis=0) * out_scale


if __name__ == "__main__":
    key = jax.random.PRNGKey(0)
    kz, kx = jax.random.split(key)

    B, C = 2, 4
    Hz = Wz = 6       # template feature map
    Hx = Wx = 16      # search feature map

    z = jax.random.normal(kz, (B, C, Hz, Wz), dtype=jnp.float32)
    x = jax.random.normal(kx, (B, C, Hx, Wx), dtype=jnp.float32)

    out = jax.block_until_ready(siamfc_head(z, x, out_scale=0.01))
    ref = jax.block_until_ready(_reference(z, x, out_scale=0.01))

    assert out.shape == (B, 1, Hx - Hz + 1, Wx - Wz + 1), out.shape
    assert jnp.allclose(out, ref, atol=1e-5, rtol=1e-5), (
        "mismatch vs reference, max abs err = "
        + str(float(jnp.max(jnp.abs(out - ref)))))

    print("KERNEL_OK")
</pallas_src>

<mosaic_0001>
module attributes {stable_mosaic.version = 11 : i64} {
  func.func @kernel(%arg0: i32, %arg1: memref<1x6x6x4xf32, #tpu.memory_space<vmem>>, %arg2: memref<1x256x4xf32, #tpu.memory_space<vmem>>, %arg3: memref<1x1x256xf32, #tpu.memory_space<vmem>>, %arg4: memref<1x256xf32, #tpu.memory_space<vmem>>) attributes {dimension_semantics = [#tpu.dimension_semantics<parallel>], iteration_bounds = array<i64: 2>, scalar_prefetch = 0 : i64, scratch_operands = 1 : i64, tpu.core_type = #tpu.core_type<tc>, window_params = [{transform_indices = @transform_0, window_bounds = array<i64: 1, 6, 6, 4>}, {transform_indices = @transform_1, window_bounds = array<i64: 1, 256, 4>}, {transform_indices = @transform_2, window_bounds = array<i64: 1, 1, 256>}]} {
    %cst = arith.constant 0.000000e+00 : f32
    %0 = vector.broadcast %cst : f32 to vector<1x256xf32>
    %c0 = arith.constant 0 : index
    %c0_0 = arith.constant 0 : index
    %1 = vector.load %arg4[%c0, %c0_0] : memref<1x256xf32, #tpu.memory_space<vmem>>, vector<1x256xf32>
    tpu.vector_store %arg4[%c0, %c0_0], %0 {strides = array<i32>} : memref<1x256xf32, #tpu.memory_space<vmem>>, vector<1x256xf32>,
    %c0_i32 = arith.constant 0 : i32
    %c16_i32 = arith.constant 16 : i32
    %2 = arith.muli %c0_i32, %c16_i32 : i32
    %3 = tpu.assume_multiple %2, 16 : i32
    %c0_1 = arith.constant 0 : index
    %4 = arith.index_cast %3 : i32 to index
    %c0_2 = arith.constant 0 : index
    %5 = vector.load %arg2[%c0_1, %4, %c0_2] : memref<1x256x4xf32, #tpu.memory_space<vmem>>, vector<1x176x4xf32>
    %c0_3 = arith.constant 0 : index
    %6 = arith.index_cast %c0_i32 : i32 to index
    %c0_4 = arith.constant 0 : index
    %c0_5 = arith.constant 0 : index
    %7 = vector.load %arg1[%c0_3, %6, %c0_4, %c0_5] : memref<1x6x6x4xf32, #tpu.memory_space<vmem>>, vector<1x1x6x4xf32>
    %8 = vector.shape_cast %7 : vector<1x1x6x4xf32> to vector<1x6x4xf32>
    %cst_6 = arith.constant dense<0.000000e+00> : vector<1x6x176xf32>
    %9 = tpu.matmul %8, %5, %cst_6 {dimension_numbers = #tpu.dot_dimension_numbers<[2], [2], [1], [1], [0, 0, 0, 1, 1, 1], [0], [0]>, precision = #tpu.contract_precision<fp32>} : vector<1x6x4xf32>, vector<1x176x4xf32>, vector<1x6x176xf32> -> vector<1x6x176xf32>
    %c0_7 = arith.constant 0 : index
    %c0_8 = arith.constant 0 : index
    %10 = vector.load %arg4[%c0_7, %c0_8] : memref<1x256xf32, #tpu.memory_space<vmem>>, vector<1x176xf32>
    %11 = vector.extract_strided_slice %9 {offsets = [0, 0, 0], sizes = [1, 1, 176], strides = [1, 1, 1]} : vector<1x6x176xf32> to vector<1x1x176xf32>
    %12 = vector.shape_cast %11 : vector<1x1x176xf32> to vector<1x176xf32>
    %13 = arith.addf %10, %12 : vector<1x176xf32>
    %c0_9 = arith.constant 0 : index
    %c0_10 = arith.constant 0 : index
    %14 = vector.load %arg4[%c0_9, %c0_10] : memref<1x256xf32, #tpu.memory_space<vmem>>, vector<1x176xf32>
    tpu.vector_store %arg4[%c0_9, %c0_10], %13 {strides = array<i32>} : memref<1x256xf32, #tpu.memory_space<vmem>>, vector<1x176xf32>,
    %c0_11 = arith.constant 0 : index
    %c0_12 = arith.constant 0 : index
    %15 = vector.load %arg4[%c0_11, %c0_12] : memref<1x256xf32, #tpu.memory_space<vmem>>, vector<1x175xf32>
    %16 = vector.extract_strided_slice %9 {offsets = [0, 1, 1], sizes = [1, 1, 175], strides = [1, 1, 1]} : vector<1x6x176xf32> to vector<1x1x175xf32>
    %17 = vector.shape_cast %16 : vector<1x1x175xf32> to vector<1x175xf32>
    %18 = arith.addf %15, %17 : vector<1x175xf32>
    %c0_13 = arith.constant 0 : index
    %c0_14 = arith.constant 0 : index
    %19 = vector.load %arg4[%c0_13, %c0_14] : memref<1x256xf32, #tpu.memory_space<vmem>>, vector<1x175xf32>
    tpu.vector_store %arg4[%c0_13, %c0_14], %18 {strides = array<i32>} : memref<1x256xf32, #tpu.memory_space<vmem>>, vector<1x175xf32>,
    %c0_15 = arith.constant 0 : index
    %c0_16 = arith.constant 0 : index
    %20 = vector.load %arg4[%c0_15, %c0_16] : memref<1x256xf32, #tpu.memory_space<vmem>>, vector<1x174xf32>
    %21 = vector.extract_strided_slice %9 {offsets = [0, 2, 2], sizes = [1, 1, 174], strides = [1, 1, 1]} : vector<1x6x176xf32> to vector<1x1x174xf32>
    %22 = vector.shape_cast %21 : vector<1x1x174xf32> to vector<1x174xf32>
    %23 = arith.addf %20, %22 : vector<1x174xf32>
    %c0_17 = arith.constant 0 : index
    %c0_18 = arith.constant 0 : index
    %24 = vector.load %arg4[%c0_17, %c0_18] : memref<1x256xf32, #tpu.memory_space<vmem>>, vector<1x174xf32>
    tpu.vector_store %arg4[%c0_17, %c0_18], %23 {strides = array<i32>} : memref<1x256xf32, #tpu.memory_space<vmem>>, vector<1x174xf32>,
    %c0_19 = arith.constant 0 : index
    %c0_20 = arith.constant 0 : index
    %25 = vector.load %arg4[%c0_19, %c0_20] : memref<1x256xf32, #tpu.memory_space<vmem>>, vector<1x173xf32>
    %26 = vector.extract_strided_slice %9 {offsets = [0, 3, 3], sizes = [1, 1, 173], strides = [1, 1, 1]} : vector<1x6x176xf32> to vector<1x1x173xf32>
    %27 = vector.shape_cast %26 : vector<1x1x173xf32> to vector<1x173xf32>
    %28 = arith.addf %25, %27 : vector<1x173xf32>
    %c0_21 = arith.constant 0 : index
    %c0_22 = arith.constant 0 : index
    %29 = vector.load %arg4[%c0_21, %c0_22] : memref<1x256xf32, #tpu.memory_space<vmem>>, vector<1x173xf32>
    tpu.vector_store %arg4[%c0_21, %c0_22], %28 {strides = array<i32>} : memref<1x256xf32, #tpu.memory_space<vmem>>, vector<1x173xf32>,
    %c0_23 = arith.constant 0 : index
    %c0_24 = arith.constant 0 : index
    %30 = vector.load %arg4[%c0_23, %c0_24] : memref<1x256xf32, #tpu.memory_space<vmem>>, vector<1x172xf32>
    %31 = vector.extract_strided_slice %9 {offsets = [0, 4, 4], sizes = [1, 1, 172], strides = [1, 1, 1]} : vector<1x6x176xf32> to vector<1x1x172xf32>
    %32 = vector.shape_cast %31 : vector<1x1x172xf32> to vector<1x172xf32>
    %33 = arith.addf %30, %32 : vector<1x172xf32>
    %c0_25 = arith.constant 0 : index
    %c0_26 = arith.constant 0 : index
    %34 = vector.load %arg4[%c0_25, %c0_26] : memref<1x256xf32, #tpu.memory_space<vmem>>, vector<1x172xf32>
    tpu.vector_store %arg4[%c0_25, %c0_26], %33 {strides = array<i32>} : memref<1x256xf32, #tpu.memory_space<vmem>>, vector<1x172xf32>,
    %c0_27 = arith.constant 0 : index
    %c0_28 = arith.constant 0 : index
    %35 = vector.load %arg4[%c0_27, %c0_28] : memref<1x256xf32, #tpu.memory_space<vmem>>, vector<1x171xf32>
    %36 = vector.extract_strided_slice %9 {offsets = [0, 5, 5], sizes = [1, 1, 171], strides = [1, 1, 1]} : vector<1x6x176xf32> to vector<1x1x171xf32>
    %37 = vector.shape_cast %36 : vector<1x1x171xf32> to vector<1x171xf32>
    %38 = arith.addf %35, %37 : vector<1x171xf32>
    %c0_29 = arith.constant 0 : index
    %c0_30 = arith.constant 0 : index
    %39 = vector.load %arg4[%c0_29, %c0_30] : memref<1x256xf32, #tpu.memory_space<vmem>>, vector<1x171xf32>
    tpu.vector_store %arg4[%c0_29, %c0_30], %38 {strides = array<i32>} : memref<1x256xf32, #tpu.memory_space<vmem>>, vector<1x171xf32>,
    %c1_i32 = arith.constant 1 : i32
    %c16_i32_31 = arith.constant 16 : i32
    %40 = arith.muli %c1_i32, %c16_i32_31 : i32
    %41 = tpu.assume_multiple %40, 16 : i32
    %c0_32 = arith.constant 0 : index
    %42 = arith.index_cast %41 : i32 to index
    %c0_33 = arith.constant 0 : index
    %43 = vector.load %arg2[%c0_32, %42, %c0_33] : memref<1x256x4xf32, #tpu.memory_space<vmem>>, vector<1x176x4xf32>
    %c0_34 = arith.constant 0 : index
    %44 = arith.index_cast %c1_i32 : i32 to index
    %c0_35 = arith.constant 0 : index
    %c0_36 = arith.constant 0 : index
    %45 = vector.load %arg1[%c0_34, %44, %c0_35, %c0_36] : memref<1x6x6x4xf32, #tpu.memory_space<vmem>>, vector<1x1x6x4xf32>
    %46 = vector.shape_cast %45 : vector<1x1x6x4xf32> to vector<1x6x4xf32>
    %cst_37 = arith.constant dense<0.000000e+00> : vector<1x6x176xf32>
    %47 = tpu.matmul %46, %43, %cst_37 {dimension_numbers = #tpu.dot_dimension_numbers<[2], [2], [1], [1], [0, 0, 0, 1, 1, 1], [0], [0]>, precision = #tpu.contract_precision<fp32>} : vector<1x6x4xf32>, vector<1x176x4xf32>, vector<1x6x176xf32> -> vector<1x6x176xf32>
    %c0_38 = arith.constant 0 : index
    %c0_39 = arith.constant 0 : index
    %48 = vector.load %arg4[%c0_38, %c0_39] : memref<1x256xf32, #tpu.memory_space<vmem>>, vector<1x176xf32>
    %49 = vector.extract_strided_slice %47 {offsets = [0, 0, 0], sizes = [1, 1, 176], strides = [1, 1, 1]} : vector<1x6x176xf32> to vector<1x1x176xf32>
    %50 = vector.shape_cast %49 : vector<1x1x176xf32> to vector<1x176xf32>
    %51 = arith.addf %48, %50 : vector<1x176xf32>
    %c0_40 = arith.constant 0 : index
    %c0_41 = arith.constant 0 : index
    %52 = vector.load %arg4[%c0_40, %c0_41] : memref<1x256xf32, #tpu.memory_space<vmem>>, vector<1x176xf32>
    tpu.vector_store %arg4[%c0_40, %c0_41], %51 {strides = array<i32>} : memref<1x256xf32, #tpu.memory_space<vmem>>, vector<1x176xf32>,
    %c0_42 = arith.constant 0 : index
    %c0_43 = arith.constant 0 : index
    %53 = vector.load %arg4[%c0_42, %c0_43] : memref<1x256xf32, #tpu.memory_space<vmem>>, vector<1x175xf32>
    %54 = vector.extract_strided_slice %47 {offsets = [0, 1, 1], sizes = [1, 1, 175], strides = [1, 1, 1]} : vector<1x6x176xf32> to vector<1x1x175xf32>
    %55 = vector.shape_cast %54 : vector<1x1x175xf32> to vector<1x175xf32>
    %56 = arith.addf %53, %55 : vector<1x175xf32>
    %c0_44 = arith.constant 0 : index
    %c0_45 = arith.constant 0 : index
    %57 = vector.load %arg4[%c0_44, %c0_45] : memref<1x256xf32, #tpu.memory_space<vmem>>, vector<1x175xf32>
    tpu.vector_store %arg4[%c0_44, %c0_45], %56 {strides = array<i32>} : memref<1x256xf32, #tpu.memory_space<vmem>>, vector<1x175xf32>,
    %c0_46 = arith.constant 0 : index
    %c0_47 = arith.constant 0 : index
    %58 = vector.load %arg4[%c0_46, %c0_47] : memref<1x256xf32, #tpu.memory_space<vmem>>, vector<1x174xf32>
    %59 = vector.extract_strided_slice %47 {offsets = [0, 2, 2], sizes = [1, 1, 174], strides = [1, 1, 1]} : vector<1x6x176xf32> to vector<1x1x174xf32>
    %60 = vector.shape_cast %59 : vector<1x1x174xf32> to vector<1x174xf32>
    %61 = arith.addf %58, %60 : vector<1x174xf32>
    %c0_48 = arith.constant 0 : index
    %c0_49 = arith.constant 0 : index
    %62 = vector.load %arg4[%c0_48, %c0_49] : memref<1x256xf32, #tpu.memory_space<vmem>>, vector<1x174xf32>
    tpu.vector_store %arg4[%c0_48, %c0_49], %61 {strides = array<i32>} : memref<1x256xf32, #tpu.memory_space<vmem>>, vector<1x174xf32>,
    %c0_50 = arith.constant 0 : index
    %c0_51 = arith.constant 0 : index
    %63 = vector.load %arg4[%c0_50, %c0_51] : memref<1x256xf32, #tpu.memory_space<vmem>>, vector<1x173xf32>
    %64 = vector.extract_strided_slice %47 {offsets = [0, 3, 3], sizes = [1, 1, 173], strides = [1, 1, 1]} : vector<1x6x176xf32> to vector<1x1x173xf32>
    %65 = vector.shape_cast %64 : vector<1x1x173xf32> to vector<1x173xf32>
    %66 = arith.addf %63, %65 : vector<1x173xf32>
    %c0_52 = arith.constant 0 : index
    %c0_53 = arith.constant 0 : index
    %67 = vector.load %arg4[%c0_52, %c0_53] : memref<1x256xf32, #tpu.memory_space<vmem>>, vector<1x173xf32>
    tpu.vector_store %arg4[%c0_52, %c0_53], %66 {strides = array<i32>} : memref<1x256xf32, #tpu.memory_space<vmem>>, vector<1x173xf32>,
    %c0_54 = arith.constant 0 : index
    %c0_55 = arith.constant 0 : index
    %68 = vector.load %arg4[%c0_54, %c0_55] : memref<1x256xf32, #tpu.memory_space<vmem>>, vector<1x172xf32>
    %69 = vector.extract_strided_slice %47 {offsets = [0, 4, 4], sizes = [1, 1, 172], strides = [1, 1, 1]} : vector<1x6x176xf32> to vector<1x1x172xf32>
    %70 = vector.shape_cast %69 : vector<1x1x172xf32> to vector<1x172xf32>
    %71 = arith.addf %68, %70 : vector<1x172xf32>
    %c0_56 = arith.constant 0 : index
    %c0_57 = arith.constant 0 : index
    %72 = vector.load %arg4[%c0_56, %c0_57] : memref<1x256xf32, #tpu.memory_space<vmem>>, vector<1x172xf32>
    tpu.vector_store %arg4[%c0_56, %c0_57], %71 {strides = array<i32>} : memref<1x256xf32, #tpu.memory_space<vmem>>, vector<1x172xf32>,
    %c0_58 = arith.constant 0 : index
    %c0_59 = arith.constant 0 : index
    %73 = vector.load %arg4[%c0_58, %c0_59] : memref<1x256xf32, #tpu.memory_space<vmem>>, vector<1x171xf32>
    %74 = vector.extract_strided_slice %47 {offsets = [0, 5, 5], sizes = [1, 1, 171], strides = [1, 1, 1]} : vector<1x6x176xf32> to vector<1x1x171xf32>
    %75 = vector.shape_cast %74 : vector<1x1x171xf32> to vector<1x171xf32>
    %76 = arith.addf %73, %75 : vector<1x171xf32>
    %c0_60 = arith.constant 0 : index
    %c0_61 = arith.constant 0 : index
    %77 = vector.load %arg4[%c0_60, %c0_61] : memref<1x256xf32, #tpu.memory_space<vmem>>, vector<1x171xf32>
    tpu.vector_store %arg4[%c0_60, %c0_61], %76 {strides = array<i32>} : memref<1x256xf32, #tpu.memory_space<vmem>>, vector<1x171xf32>,
    %c2_i32 = arith.constant 2 : i32
    %c16_i32_62 = arith.constant 16 : i32
    %78 = arith.muli %c2_i32, %c16_i32_62 : i32
    %79 = tpu.assume_multiple %78, 16 : i32
    %c0_63 = arith.constant 0 : index
    %80 = arith.index_cast %79 : i32 to index
    %c0_64 = arith.constant 0 : index
    %81 = vector.load %arg2[%c0_63, %80, %c0_64] : memref<1x256x4xf32, #tpu.memory_space<vmem>>, vector<1x176x4xf32>
    %c0_65 = arith.constant 0 : index
    %82 = arith.index_cast %c2_i32 : i32 to index
    %c0_66 = arith.constant 0 : index
    %c0_67 = arith.constant 0 : index
    %83 = vector.load %arg1[%c0_65, %82, %c0_66, %c0_67] : memref<1x6x6x4xf32, #tpu.memory_space<vmem>>, vector<1x1x6x4xf32>
    %84 = vector.shape_cast %83 : vector<1x1x6x4xf32> to vector<1x6x4xf32>
    %cst_68 = arith.constant dense<0.000000e+00> : vector<1x6x176xf32>
    %85 = tpu.matmul %84, %81, %cst_68 {dimension_numbers = #tpu.dot_dimension_numbers<[2], [2], [1], [1], [0, 0, 0, 1, 1, 1], [0], [0]>, precision = #tpu.contract_precision<fp32>} : vector<1x6x4xf32>, vector<1x176x4xf32>, vector<1x6x176xf32> -> vector<1x6x176xf32>
    %c0_69 = arith.constant 0 : index
    %c0_70 = arith.constant 0 : index
    %86 = vector.load %arg4[%c0_69, %c0_70] : memref<1x256xf32, #tpu.memory_space<vmem>>, vector<1x176xf32>
    %87 = vector.extract_strided_slice %85 {offsets = [0, 0, 0], sizes = [1, 1, 176], strides = [1, 1, 1]} : vector<1x6x176xf32> to vector<1x1x176xf32>
    %88 = vector.shape_cast %87 : vector<1x1x176xf32> to vector<1x176xf32>
    %89 = arith.addf %86, %88 : vector<1x176xf32>
    %c0_71 = arith.constant 0 : index
    %c0_72 = arith.constant 0 : index
    %90 = vector.load %arg4[%c0_71, %c0_72] : memref<1x256xf32, #tpu.memory_space<vmem>>, vector<1x176xf32>
    tpu.vector_store %arg4[%c0_71, %c0_72], %89 {strides = array<i32>} : memref<1x256xf32, #tpu.memory_space<vmem>>, vector<1x176xf32>,
    %c0_73 = arith.constant 0 : index
    %c0_74 = arith.constant 0 : index
    %91 = vector.load %arg4[%c0_73, %c0_74] : memref<1x256xf32, #tpu.memory_space<vmem>>, vector<1x175xf32>
    %92 = vector.extract_strided_slice %85 {offsets = [0, 1, 1], sizes = [1, 1, 175], strides = [1, 1, 1]} : vector<1x6x176xf32> to vector<1x1x175xf32>
    %93 = vector.shape_cast %92 : vector<1x1x175xf32> to vector<1x175xf32>
    %94 = arith.addf %91, %93 : vector<1x175xf32>
    %c0_75 = arith.constant 0 : index
    %c0_76 = arith.constant 0 : index
    %95 = vector.load %arg4[%c0_75, %c0_76] : memref<1x256xf32, #tpu.memory_space<vmem>>, vector<1x175xf32>
    tpu.vector_store %arg4[%c0_75, %c0_76], %94 {strides = array<i32>} : memref<1x256xf32, #tpu.memory_space<vmem>>, vector<1x175xf32>,
    %c0_77 = arith.constant 0 : index
    %c0_78 = arith.constant 0 : index
    %96 = vector.load %arg4[%c0_77, %c0_78] : memref<1x256xf32, #tpu.memory_space<vmem>>, vector<1x174xf32>
    %97 = vector.extract_strided_slice %85 {offsets = [0, 2, 2], sizes = [1, 1, 174], strides = [1, 1, 1]} : vector<1x6x176xf32> to vector<1x1x174xf32>
    %98 = vector.shape_cast %97 : vector<1x1x174xf32> to vector<1x174xf32>
    %99 = arith.addf %96, %98 : vector<1x174xf32>
    %c0_79 = arith.constant 0 : index
    %c0_80 = arith.constant 0 : index
    %100 = vector.load %arg4[%c0_79, %c0_80] : memref<1x256xf32, #tpu.memory_space<vmem>>, vector<1x174xf32>
    tpu.vector_store %arg4[%c0_79, %c0_80], %99 {strides = array<i32>} : memref<1x256xf32, #tpu.memory_space<vmem>>, vector<1x174xf32>,
    %c0_81 = arith.constant 0 : index
    %c0_82 = arith.constant 0 : index
    %101 = vector.load %arg4[%c0_81, %c0_82] : memref<1x256xf32, #tpu.memory_space<vmem>>, vector<1x173xf32>
    %102 = vector.extract_strided_slice %85 {offsets = [0, 3, 3], sizes = [1, 1, 173], strides = [1, 1, 1]} : vector<1x6x176xf32> to vector<1x1x173xf32>
    %103 = vector.shape_cast %102 : vector<1x1x173xf32> to vector<1x173xf32>
    %104 = arith.addf %101, %103 : vector<1x173xf32>
    %c0_83 = arith.constant 0 : index
    %c0_84 = arith.constant 0 : index
    %105 = vector.load %arg4[%c0_83, %c0_84] : memref<1x256xf32, #tpu.memory_space<vmem>>, vector<1x173xf32>
    tpu.vector_store %arg4[%c0_83, %c0_84], %104 {strides = array<i32>} : memref<1x256xf32, #tpu.memory_space<vmem>>, vector<1x173xf32>,
    %c0_85 = arith.constant 0 : index
    %c0_86 = arith.constant 0 : index
    %106 = vector.load %arg4[%c0_85, %c0_86] : memref<1x256xf32, #tpu.memory_space<vmem>>, vector<1x172xf32>
    %107 = vector.extract_strided_slice %85 {offsets = [0, 4, 4], sizes = [1, 1, 172], strides = [1, 1, 1]} : vector<1x6x176xf32> to vector<1x1x172xf32>
    %108 = vector.shape_cast %107 : vector<1x1x172xf32> to vector<1x172xf32>
    %109 = arith.addf %106, %108 : vector<1x172xf32>
    %c0_87 = arith.constant 0 : index
    %c0_88 = arith.constant 0 : index
    %110 = vector.load %arg4[%c0_87, %c0_88] : memref<1x256xf32, #tpu.memory_space<vmem>>, vector<1x172xf32>
    tpu.vector_store %arg4[%c0_87, %c0_88], %109 {strides = array<i32>} : memref<1x256xf32, #tpu.memory_space<vmem>>, vector<1x172xf32>,
    %c0_89 = arith.constant 0 : index
    %c0_90 = arith.constant 0 : index
    %111 = vector.load %arg4[%c0_89, %c0_90] : memref<1x256xf32, #tpu.memory_space<vmem>>, vector<1x171xf32>
    %112 = vector.extract_strided_slice %85 {offsets = [0, 5, 5], sizes = [1, 1, 171], strides = [1, 1, 1]} : vector<1x6x176xf32> to vector<1x1x171xf32>
    %113 = vector.shape_cast %112 : vector<1x1x171xf32> to vector<1x171xf32>
    %114 = arith.addf %111, %113 : vector<1x171xf32>
    %c0_91 = arith.constant 0 : index
    %c0_92 = arith.constant 0 : index
    %115 = vector.load %arg4[%c0_91, %c0_92] : memref<1x256xf32, #tpu.memory_space<vmem>>, vector<1x171xf32>
    tpu.vector_store %arg4[%c0_91, %c0_92], %114 {strides = array<i32>} : memref<1x256xf32, #tpu.memory_space<vmem>>, vector<1x171xf32>,
    %c3_i32 = arith.constant 3 : i32
    %c16_i32_93 = arith.constant 16 : i32
    %116 = arith.muli %c3_i32, %c16_i32_93 : i32
    %117 = tpu.assume_multiple %116, 16 : i32
    %c0_94 = arith.constant 0 : index
    %118 = arith.index_cast %117 : i32 to index
    %c0_95 = arith.constant 0 : index
    %119 = vector.load %arg2[%c0_94, %118, %c0_95] : memref<1x256x4xf32, #tpu.memory_space<vmem>>, vector<1x176x4xf32>
    %c0_96 = arith.constant 0 : index
    %120 = arith.index_cast %c3_i32 : i32 to index
    %c0_97 = arith.constant 0 : index
    %c0_98 = arith.constant 0 : index
    %121 = vector.load %arg1[%c0_96, %120, %c0_97, %c0_98] : memref<1x6x6x4xf32, #tpu.memory_space<vmem>>, vector<1x1x6x4xf32>
    %122 = vector.shape_cast %121 : vector<1x1x6x4xf32> to vector<1x6x4xf32>
    %cst_99 = arith.constant dense<0.000000e+00> : vector<1x6x176xf32>
    %123 = tpu.matmul %122, %119, %cst_99 {dimension_numbers = #tpu.dot_dimension_numbers<[2], [2], [1], [1], [0, 0, 0, 1, 1, 1], [0], [0]>, precision = #tpu.contract_precision<fp32>} : vector<1x6x4xf32>, vector<1x176x4xf32>, vector<1x6x176xf32> -> vector<1x6x176xf32>
    %c0_100 = arith.constant 0 : index
    %c0_101 = arith.constant 0 : index
    %124 = vector.load %arg4[%c0_100, %c0_101] : memref<1x256xf32, #tpu.memory_space<vmem>>, vector<1x176xf32>
    %125 = vector.extract_strided_slice %123 {offsets = [0, 0, 0], sizes = [1, 1, 176], strides = [1, 1, 1]} : vector<1x6x176xf32> to vector<1x1x176xf32>
    %126 = vector.shape_cast %125 : vector<1x1x176xf32> to vector<1x176xf32>
    %127 = arith.addf %124, %126 : vector<1x176xf32>
    %c0_102 = arith.constant 0 : index
    %c0_103 = arith.constant 0 : index
    %128 = vector.load %arg4[%c0_102, %c0_103] : memref<1x256xf32, #tpu.memory_space<vmem>>, vector<1x176xf32>
    tpu.vector_store %arg4[%c0_102, %c0_103], %127 {strides = array<i32>} : memref<1x256xf32, #tpu.memory_space<vmem>>, vector<1x176xf32>,
    %c0_104 = arith.constant 0 : index
    %c0_105 = arith.constant 0 : index
    %129 = vector.load %arg4[%c0_104, %c0_105] : memref<1x256xf32, #tpu.memory_space<vmem>>, vector<1x175xf32>
    %130 = vector.extract_strided_slice %123 {offsets = [0, 1, 1], sizes = [1, 1, 175], strides = [1, 1, 1]} : vector<1x6x176xf32> to vector<1x1x175xf32>
    %131 = vector.shape_cast %130 : vector<1x1x175xf32> to vector<1x175xf32>
    %132 = arith.addf %129, %131 : vector<1x175xf32>
    %c0_106 = arith.constant 0 : index
    %c0_107 = arith.constant 0 : index
    %133 = vector.load %arg4[%c0_106, %c0_107] : memref<1x256xf32, #tpu.memory_space<vmem>>, vector<1x175xf32>
    tpu.vector_store %arg4[%c0_106, %c0_107], %132 {strides = array<i32>} : memref<1x256xf32, #tpu.memory_space<vmem>>, vector<1x175xf32>,
    %c0_108 = arith.constant 0 : index
    %c0_109 = arith.constant 0 : index
    %134 = vector.load %arg4[%c0_108, %c0_109] : memref<1x256xf32, #tpu.memory_space<vmem>>, vector<1x174xf32>
    %135 = vector.extract_strided_slice %123 {offsets = [0, 2, 2], sizes = [1, 1, 174], strides = [1, 1, 1]} : vector<1x6x176xf32> to vector<1x1x174xf32>
    %136 = vector.shape_cast %135 : vector<1x1x174xf32> to vector<1x174xf32>
    %137 = arith.addf %134, %136 : vector<1x174xf32>
    %c0_110 = arith.constant 0 : index
    %c0_111 = arith.constant 0 : index
    %138 = vector.load %arg4[%c0_110, %c0_111] : memref<1x256xf32, #tpu.memory_space<vmem>>, vector<1x174xf32>
    tpu.vector_store %arg4[%c0_110, %c0_111], %137 {strides = array<i32>} : memref<1x256xf32, #tpu.memory_space<vmem>>, vector<1x174xf32>,
    %c0_112 = arith.constant 0 : index
    %c0_113 = arith.constant 0 : index
    %139 = vector.load %arg4[%c0_112, %c0_113] : memref<1x256xf32, #tpu.memory_space<vmem>>, vector<1x173xf32>
    %140 = vector.extract_strided_slice %123 {offsets = [0, 3, 3], sizes = [1, 1, 173], strides = [1, 1, 1]} : vector<1x6x176xf32> to vector<1x1x173xf32>
    %141 = vector.shape_cast %140 : vector<1x1x173xf32> to vector<1x173xf32>
    %142 = arith.addf %139, %141 : vector<1x173xf32>
    %c0_114 = arith.constant 0 : index
    %c0_115 = arith.constant 0 : index
    %143 = vector.load %arg4[%c0_114, %c0_115] : memref<1x256xf32, #tpu.memory_space<vmem>>, vector<1x173xf32>
    tpu.vector_store %arg4[%c0_114, %c0_115], %142 {strides = array<i32>} : memref<1x256xf32, #tpu.memory_space<vmem>>, vector<1x173xf32>,
    %c0_116 = arith.constant 0 : index
    %c0_117 = arith.constant 0 : index
    %144 = vector.load %arg4[%c0_116, %c0_117] : memref<1x256xf32, #tpu.memory_space<vmem>>, vector<1x172xf32>
    %145 = vector.extract_strided_slice %123 {offsets = [0, 4, 4], sizes = [1, 1, 172], strides = [1, 1, 1]} : vector<1x6x176xf32> to vector<1x1x172xf32>
    %146 = vector.shape_cast %145 : vector<1x1x172xf32> to vector<1x172xf32>
    %147 = arith.addf %144, %146 : vector<1x172xf32>
    %c0_118 = arith.constant 0 : index
    %c0_119 = arith.constant 0 : index
    %148 = vector.load %arg4[%c0_118, %c0_119] : memref<1x256xf32, #tpu.memory_space<vmem>>, vector<1x172xf32>
    tpu.vector_store %arg4[%c0_118, %c0_119], %147 {strides = array<i32>} : memref<1x256xf32, #tpu.memory_space<vmem>>, vector<1x172xf32>,
    %c0_120 = arith.constant 0 : index
    %c0_121 = arith.constant 0 : index
    %149 = vector.load %arg4[%c0_120, %c0_121] : memref<1x256xf32, #tpu.memory_space<vmem>>, vector<1x171xf32>
    %150 = vector.extract_strided_slice %123 {offsets = [0, 5, 5], sizes = [1, 1, 171], strides = [1, 1, 1]} : vector<1x6x176xf32> to vector<1x1x171xf32>
    %151 = vector.shape_cast %150 : vector<1x1x171xf32> to vector<1x171xf32>
    %152 = arith.addf %149, %151 : vector<1x171xf32>
    %c0_122 = arith.constant 0 : index
    %c0_123 = arith.constant 0 : index
    %153 = vector.load %arg4[%c0_122, %c0_123] : memref<1x256xf32, #tpu.memory_space<vmem>>, vector<1x171xf32>
    tpu.vector_store %arg4[%c0_122, %c0_123], %152 {strides = array<i32>} : memref<1x256xf32, #tpu.memory_space<vmem>>, vector<1x171xf32>,
    %c4_i32 = arith.constant 4 : i32
    %c16_i32_124 = arith.constant 16 : i32
    %154 = arith.muli %c4_i32, %c16_i32_124 : i32
    %155 = tpu.assume_multiple %154, 16 : i32
    %c0_125 = arith.constant 0 : index
    %156 = arith.index_cast %155 : i32 to index
    %c0_126 = arith.constant 0 : index
    %157 = vector.load %arg2[%c0_125, %156, %c0_126] : memref<1x256x4xf32, #tpu.memory_space<vmem>>, vector<1x176x4xf32>
    %c0_127 = arith.constant 0 : index
    %158 = arith.index_cast %c4_i32 : i32 to index
    %c0_128 = arith.constant 0 : index
    %c0_129 = arith.constant 0 : index
    %159 = vector.load %arg1[%c0_127, %158, %c0_128, %c0_129] : memref<1x6x6x4xf32, #tpu.memory_space<vmem>>, vector<1x1x6x4xf32>
    %160 = vector.shape_cast %159 : vector<1x1x6x4xf32> to vector<1x6x4xf32>
    %cst_130 = arith.constant dense<0.000000e+00> : vector<1x6x176xf32>
    %161 = tpu.matmul %160, %157, %cst_130 {dimension_numbers = #tpu.dot_dimension_numbers<[2], [2], [1], [1], [0, 0, 0, 1, 1, 1], [0], [0]>, precision = #tpu.contract_precision<fp32>} : vector<1x6x4xf32>, vector<1x176x4xf32>, vector<1x6x176xf32> -> vector<1x6x176xf32>
    %c0_131 = arith.constant 0 : index
    %c0_132 = arith.constant 0 : index
    %162 = vector.load %arg4[%c0_131, %c0_132] : memref<1x256xf32, #tpu.memory_space<vmem>>, vector<1x176xf32>
    %163 = vector.extract_strided_slice %161 {offsets = [0, 0, 0], sizes = [1, 1, 176], strides = [1, 1, 1]} : vector<1x6x176xf32> to vector<1x1x176xf32>
    %164 = vector.shape_cast %163 : vector<1x1x176xf32> to vector<1x176xf32>
    %165 = arith.addf %162, %164 : vector<1x176xf32>
    %c0_133 = arith.constant 0 : index
    %c0_134 = arith.constant 0 : index
    %166 = vector.load %arg4[%c0_133, %c0_134] : memref<1x256xf32, #tpu.memory_space<vmem>>, vector<1x176xf32>
    tpu.vector_store %arg4[%c0_133, %c0_134], %165 {strides = array<i32>} : memref<1x256xf32, #tpu.memory_space<vmem>>, vector<1x176xf32>,
    %c0_135 = arith.constant 0 : index
    %c0_136 = arith.constant 0 : index
    %167 = vector.load %arg4[%c0_135, %c0_136] : memref<1x256xf32, #tpu.memory_space<vmem>>, vector<1x175xf32>
    %168 = vector.extract_strided_slice %161 {offsets = [0, 1, 1], sizes = [1, 1, 175], strides = [1, 1, 1]} : vector<1x6x176xf32> to vector<1x1x175xf32>
    %169 = vector.shape_cast %168 : vector<1x1x175xf32> to vector<1x175xf32>
    %170 = arith.addf %167, %169 : vector<1x175xf32>
    %c0_137 = arith.constant 0 : index
    %c0_138 = arith.constant 0 : index
    %171 = vector.load %arg4[%c0_137, %c0_138] : memref<1x256xf32, #tpu.memory_space<vmem>>, vector<1x175xf32>
    tpu.vector_store %arg4[%c0_137, %c0_138], %170 {strides = array<i32>} : memref<1x256xf32, #tpu.memory_space<vmem>>, vector<1x175xf32>,
    %c0_139 = arith.constant 0 : index
    %c0_140 = arith.constant 0 : index
    %172 = vector.load %arg4[%c0_139, %c0_140] : memref<1x256xf32, #tpu.memory_space<vmem>>, vector<1x174xf32>
    %173 = vector.extract_strided_slice %161 {offsets = [0, 2, 2], sizes = [1, 1, 174], strides = [1, 1, 1]} : vector<1x6x176xf32> to vector<1x1x174xf32>
    %174 = vector.shape_cast %173 : vector<1x1x174xf32> to vector<1x174xf32>
    %175 = arith.addf %172, %174 : vector<1x174xf32>
    %c0_141 = arith.constant 0 : index
    %c0_142 = arith.constant 0 : index
    %176 = vector.load %arg4[%c0_141, %c0_142] : memref<1x256xf32, #tpu.memory_space<vmem>>, vector<1x174xf32>
    tpu.vector_store %arg4[%c0_141, %c0_142], %175 {strides = array<i32>} : memref<1x256xf32, #tpu.memory_space<vmem>>, vector<1x174xf32>,
    %c0_143 = arith.constant 0 : index
    %c0_144 = arith.constant 0 : index
    %177 = vector.load %arg4[%c0_143, %c0_144] : memref<1x256xf32, #tpu.memory_space<vmem>>, vector<1x173xf32>
    %178 = vector.extract_strided_slice %161 {offsets = [0, 3, 3], sizes = [1, 1, 173], strides = [1, 1, 1]} : vector<1x6x176xf32> to vector<1x1x173xf32>
    %179 = vector.shape_cast %178 : vector<1x1x173xf32> to vector<1x173xf32>
    %180 = arith.addf %177, %179 : vector<1x173xf32>
    %c0_145 = arith.constant 0 : index
    %c0_146 = arith.constant 0 : index
    %181 = vector.load %arg4[%c0_145, %c0_146] : memref<1x256xf32, #tpu.memory_space<vmem>>, vector<1x173xf32>
    tpu.vector_store %arg4[%c0_145, %c0_146], %180 {strides = array<i32>} : memref<1x256xf32, #tpu.memory_space<vmem>>, vector<1x173xf32>,
    %c0_147 = arith.constant 0 : index
    %c0_148 = arith.constant 0 : index
    %182 = vector.load %arg4[%c0_147, %c0_148] : memref<1x256xf32, #tpu.memory_space<vmem>>, vector<1x172xf32>
    %183 = vector.extract_strided_slice %161 {offsets = [0, 4, 4], sizes = [1, 1, 172], strides = [1, 1, 1]} : vector<1x6x176xf32> to vector<1x1x172xf32>
    %184 = vector.shape_cast %183 : vector<1x1x172xf32> to vector<1x172xf32>
    %185 = arith.addf %182, %184 : vector<1x172xf32>
    %c0_149 = arith.constant 0 : index
    %c0_150 = arith.constant 0 : index
    %186 = vector.load %arg4[%c0_149, %c0_150] : memref<1x256xf32, #tpu.memory_space<vmem>>, vector<1x172xf32>
    tpu.vector_store %arg4[%c0_149, %c0_150], %185 {strides = array<i32>} : memref<1x256xf32, #tpu.memory_space<vmem>>, vector<1x172xf32>,
    %c0_151 = arith.constant 0 : index
    %c0_152 = arith.constant 0 : index
    %187 = vector.load %arg4[%c0_151, %c0_152] : memref<1x256xf32, #tpu.memory_space<vmem>>, vector<1x171xf32>
    %188 = vector.extract_strided_slice %161 {offsets = [0, 5, 5], sizes = [1, 1, 171], strides = [1, 1, 1]} : vector<1x6x176xf32> to vector<1x1x171xf32>
    %189 = vector.shape_cast %188 : vector<1x1x171xf32> to vector<1x171xf32>
    %190 = arith.addf %187, %189 : vector<1x171xf32>
    %c0_153 = arith.constant 0 : index
    %c0_154 = arith.constant 0 : index
    %191 = vector.load %arg4[%c0_153, %c0_154] : memref<1x256xf32, #tpu.memory_space<vmem>>, vector<1x171xf32>
    tpu.vector_store %arg4[%c0_153, %c0_154], %190 {strides = array<i32>} : memref<1x256xf32, #tpu.memory_space<vmem>>, vector<1x171xf32>,
    %c5_i32 = arith.constant 5 : i32
    %c16_i32_155 = arith.constant 16 : i32
    %192 = arith.muli %c5_i32, %c16_i32_155 : i32
    %193 = tpu.assume_multiple %192, 16 : i32
    %c0_156 = arith.constant 0 : index
    %194 = arith.index_cast %193 : i32 to index
    %c0_157 = arith.constant 0 : index
    %195 = vector.load %arg2[%c0_156, %194, %c0_157] : memref<1x256x4xf32, #tpu.memory_space<vmem>>, vector<1x176x4xf32>
    %c0_158 = arith.constant 0 : index
    %196 = arith.index_cast %c5_i32 : i32 to index
    %c0_159 = arith.constant 0 : index
    %c0_160 = arith.constant 0 : index
    %197 = vector.load %arg1[%c0_158, %196, %c0_159, %c0_160] : memref<1x6x6x4xf32, #tpu.memory_space<vmem>>, vector<1x1x6x4xf32>
    %198 = vector.shape_cast %197 : vector<1x1x6x4xf32> to vector<1x6x4xf32>
    %cst_161 = arith.constant dense<0.000000e+00> : vector<1x6x176xf32>
    %199 = tpu.matmul %198, %195, %cst_161 {dimension_numbers = #tpu.dot_dimension_numbers<[2], [2], [1], [1], [0, 0, 0, 1, 1, 1], [0], [0]>, precision = #tpu.contract_precision<fp32>} : vector<1x6x4xf32>, vector<1x176x4xf32>, vector<1x6x176xf32> -> vector<1x6x176xf32>
    %c0_162 = arith.constant 0 : index
    %c0_163 = arith.constant 0 : index
    %200 = vector.load %arg4[%c0_162, %c0_163] : memref<1x256xf32, #tpu.memory_space<vmem>>, vector<1x176xf32>
    %201 = vector.extract_strided_slice %199 {offsets = [0, 0, 0], sizes = [1, 1, 176], strides = [1, 1, 1]} : vector<1x6x176xf32> to vector<1x1x176xf32>
    %202 = vector.shape_cast %201 : vector<1x1x176xf32> to vector<1x176xf32>
    %203 = arith.addf %200, %202 : vector<1x176xf32>
    %c0_164 = arith.constant 0 : index
    %c0_165 = arith.constant 0 : index
    %204 = vector.load %arg4[%c0_164, %c0_165] : memref<1x256xf32, #tpu.memory_space<vmem>>, vector<1x176xf32>
    tpu.vector_store %arg4[%c0_164, %c0_165], %203 {strides = array<i32>} : memref<1x256xf32, #tpu.memory_space<vmem>>, vector<1x176xf32>,
    %c0_166 = arith.constant 0 : index
    %c0_167 = arith.constant 0 : index
    %205 = vector.load %arg4[%c0_166, %c0_167] : memref<1x256xf32, #tpu.memory_space<vmem>>, vector<1x175xf32>
    %206 = vector.extract_strided_slice %199 {offsets = [0, 1, 1], sizes = [1, 1, 175], strides = [1, 1, 1]} : vector<1x6x176xf32> to vector<1x1x175xf32>
    %207 = vector.shape_cast %206 : vector<1x1x175xf32> to vector<1x175xf32>
    %208 = arith.addf %205, %207 : vector<1x175xf32>
    %c0_168 = arith.constant 0 : index
    %c0_169 = arith.constant 0 : index
    %209 = vector.load %arg4[%c0_168, %c0_169] : memref<1x256xf32, #tpu.memory_space<vmem>>, vector<1x175xf32>
    tpu.vector_store %arg4[%c0_168, %c0_169], %208 {strides = array<i32>} : memref<1x256xf32, #tpu.memory_space<vmem>>, vector<1x175xf32>,
    %c0_170 = arith.constant 0 : index
    %c0_171 = arith.constant 0 : index
    %210 = vector.load %arg4[%c0_170, %c0_171] : memref<1x256xf32, #tpu.memory_space<vmem>>, vector<1x174xf32>
    %211 = vector.extract_strided_slice %199 {offsets = [0, 2, 2], sizes = [1, 1, 174], strides = [1, 1, 1]} : vector<1x6x176xf32> to vector<1x1x174xf32>
    %212 = vector.shape_cast %211 : vector<1x1x174xf32> to vector<1x174xf32>
    %213 = arith.addf %210, %212 : vector<1x174xf32>
    %c0_172 = arith.constant 0 : index
    %c0_173 = arith.constant 0 : index
    %214 = vector.load %arg4[%c0_172, %c0_173] : memref<1x256xf32, #tpu.memory_space<vmem>>, vector<1x174xf32>
    tpu.vector_store %arg4[%c0_172, %c0_173], %213 {strides = array<i32>} : memref<1x256xf32, #tpu.memory_space<vmem>>, vector<1x174xf32>,
    %c0_174 = arith.constant 0 : index
    %c0_175 = arith.constant 0 : index
    %215 = vector.load %arg4[%c0_174, %c0_175] : memref<1x256xf32, #tpu.memory_space<vmem>>, vector<1x173xf32>
    %216 = vector.extract_strided_slice %199 {offsets = [0, 3, 3], sizes = [1, 1, 173], strides = [1, 1, 1]} : vector<1x6x176xf32> to vector<1x1x173xf32>
    %217 = vector.shape_cast %216 : vector<1x1x173xf32> to vector<1x173xf32>
    %218 = arith.addf %215, %217 : vector<1x173xf32>
    %c0_176 = arith.constant 0 : index
    %c0_177 = arith.constant 0 : index
    %219 = vector.load %arg4[%c0_176, %c0_177] : memref<1x256xf32, #tpu.memory_space<vmem>>, vector<1x173xf32>
    tpu.vector_store %arg4[%c0_176, %c0_177], %218 {strides = array<i32>} : memref<1x256xf32, #tpu.memory_space<vmem>>, vector<1x173xf32>,
    %c0_178 = arith.constant 0 : index
    %c0_179 = arith.constant 0 : index
    %220 = vector.load %arg4[%c0_178, %c0_179] : memref<1x256xf32, #tpu.memory_space<vmem>>, vector<1x172xf32>
    %221 = vector.extract_strided_slice %199 {offsets = [0, 4, 4], sizes = [1, 1, 172], strides = [1, 1, 1]} : vector<1x6x176xf32> to vector<1x1x172xf32>
    %222 = vector.shape_cast %221 : vector<1x1x172xf32> to vector<1x172xf32>
    %223 = arith.addf %220, %222 : vector<1x172xf32>
    %c0_180 = arith.constant 0 : index
    %c0_181 = arith.constant 0 : index
    %224 = vector.load %arg4[%c0_180, %c0_181] : memref<1x256xf32, #tpu.memory_space<vmem>>, vector<1x172xf32>
    tpu.vector_store %arg4[%c0_180, %c0_181], %223 {strides = array<i32>} : memref<1x256xf32, #tpu.memory_space<vmem>>, vector<1x172xf32>,
    %c0_182 = arith.constant 0 : index
    %c0_183 = arith.constant 0 : index
    %225 = vector.load %arg4[%c0_182, %c0_183] : memref<1x256xf32, #tpu.memory_space<vmem>>, vector<1x171xf32>
    %226 = vector.extract_strided_slice %199 {offsets = [0, 5, 5], sizes = [1, 1, 171], strides = [1, 1, 1]} : vector<1x6x176xf32> to vector<1x1x171xf32>
    %227 = vector.shape_cast %226 : vector<1x1x171xf32> to vector<1x171xf32>
    %228 = arith.addf %225, %227 : vector<1x171xf32>
    %c0_184 = arith.constant 0 : index
    %c0_185 = arith.constant 0 : index
    %229 = vector.load %arg4[%c0_184, %c0_185] : memref<1x256xf32, #tpu.memory_space<vmem>>, vector<1x171xf32>
    tpu.vector_store %arg4[%c0_184, %c0_185], %228 {strides = array<i32>} : memref<1x256xf32, #tpu.memory_space<vmem>>, vector<1x171xf32>,
    %c6_i32 = arith.constant 6 : i32
    %c0_186 = arith.constant 0 : index
    %c0_187 = arith.constant 0 : index
    %230 = vector.load %arg4[%c0_186, %c0_187] : memref<1x256xf32, #tpu.memory_space<vmem>>, vector<1x256xf32>
    %cst_188 = arith.constant 0.00999999977 : f32
    %231 = vector.broadcast %cst_188 : f32 to vector<1x256xf32>
    %232 = arith.mulf %230, %231 : vector<1x256xf32>
    %c0_189 = arith.constant 0 : index
    %c0_190 = arith.constant 0 : index
    %c0_191 = arith.constant 0 : index
    %233 = vector.load %arg3[%c0_189, %c0_190, %c0_191] : memref<1x1x256xf32, #tpu.memory_space<vmem>>, vector<1x1x256xf32>
    %234 = vector.shape_cast %233 : vector<1x1x256xf32> to vector<1x256xf32>
    %235 = vector.shape_cast %232 : vector<1x256xf32> to vector<1x1x256xf32>
    tpu.vector_store %arg3[%c0_189, %c0_190, %c0_191], %235 {strides = array<i32>} : memref<1x1x256xf32, #tpu.memory_space<vmem>>, vector<1x1x256xf32>,
    return
  }
  func.func @transform_0(%arg0: i32) -> (i32, i32, i32, i32) {
    %c0_i32 = arith.constant 0 : i32
    %c0_i32_0 = arith.constant 0 : i32
    %c0_i32_1 = arith.constant 0 : i32
    %c0_i32_2 = arith.constant 0 : i32
    return %arg0, %c0_i32, %c0_i32_0, %c0_i32_1 : i32, i32, i32, i32
  }
  func.func @transform_1(%arg0: i32) -> (i32, i32, i32) {
    %c0_i32 = arith.constant 0 : i32
    %c0_i32_0 = arith.constant 0 : i32
    %c0_i32_1 = arith.constant 0 : i32
    return %arg0, %c0_i32, %c0_i32_0 : i32, i32, i32
  }
  func.func @transform_2(%arg0: i32) -> (i32, i32, i32) {
    %c0_i32 = arith.constant 0 : i32
    %c0_i32_0 = arith.constant 0 : i32
    %c0_i32_1 = arith.constant 0 : i32
    return %arg0, %c0_i32, %c0_i32_0 : i32, i32, i32
  }
}

</mosaic_0001>

<llo_original>
// kernel: squeeze.1
$region0: #{squeeze.1}
  %s0 = inlined_call_operand.vmem [shape: f32[2,176], index: 0, kind: input, shape index: {}]
  %s1 = inlined_call_operand.vmem [shape: f32[2,11,16], index: 1, kind: output, shape index: {}]
  $region1: #{squeeze.1} parent=0
    #allocation0 [shape = 'u8[8192]{0}', space=vmem, size = 0x2000, scoped, tag = 'scoped mem for input reshape']
    %s3 = sshllo.u32 0, 2
    %s4 = scalar_lea.vmem %s0, 2
    %v5 = vld [vmem:[%s4] sm:%s3]
    %s6 = scalar_lea.vmem [#allocation0], 8
    %7 = vst [vmem:[%s6] sm:%s3] %v5
    %v8 = vld [vmem:[%s0] sm:%s3]
    %9 = vst [vmem:[#allocation0] sm:%s3] %v8
    %v10 = vld [vmem:[#allocation0] sm:$0x3]
    %vm11 = vcmask 130048
    %12 = vst.msk [vmem:[%s1] ss:$16 sm:$0x3] %vm11, %v10
    %s13 = scalar_lea.vmem [#allocation0], 8
    %v14 = vld [vmem:[%s13] sm:$0x3]
    %vm15 = vcmask 130048
    %s16 = scalar_lea.vmem %s1, 8
    %17 = vst.msk [vmem:[%s16] ss:$16 sm:$0x3] %vm15, %v14
    %v18 = vld.sshfl [vmem:[#allocation0] sm:$0xff pattern:$0x99999180]
    %19 = vrot.lane.b32.xlu0 %v18, 112
    %v20 = vpop.permute.xlu0 %19
    %vm21 = vcmask 130048
    %s22 = scalar_lea.vmem %s1, 1
    %23 = vst.msk [vmem:[%s22] ss:$8 sm:$0xf] %vm21, %v20
    %v24 = vld.sshfl [vmem:[#allocation0] sm:$0xff pattern:$0x99999180]
    %25 = vrot.lane.b32.xlu0 %v24, 96
    %v26 = vpop.permute.xlu0 %25
    %vm27 = vcmask 130048
    %s28 = scalar_lea.vmem %s1, 2
    %29 = vst.msk [vmem:[%s28] ss:$8 sm:$0xf] %vm27, %v26
    %v30 = vld [vmem:[#allocation0] sm:$0x3]
    %31 = vrot.lane.b32.xlu0 %v30, 80
    %v32 = vpop.permute.xlu0 %31
    %vm33 = vcmask 130048
    %s34 = scalar_lea.vmem %s1, 3
    %35 = vst.msk [vmem:[%s34] ss:$16 sm:$0x3] %vm33, %v32
    %v36 = vld [vmem:[#allocation0] sm:$0x3]
    %37 = vrot.lane.b32.xlu0 %v36, 64
    %v38 = vpop.permute.xlu0 %37
    %vm39 = vcmask 130048
    %s40 = scalar_lea.vmem %s1, 4
    %41 = vst.msk [vmem:[%s40] ss:$16 sm:$0x3] %vm39, %v38
    %v42 = vld [vmem:[#allocation0] sm:$0x3]
    %43 = vrot.lane.b32.xlu0 %v42, 48
    %v44 = vpop.permute.xlu0 %43
    %vm45 = vcmask 130048
    %s46 = scalar_lea.vmem %s1, 5
    %47 = vst.msk [vmem:[%s46] ss:$16 sm:$0x3] %vm45, %v44
    %v48 = vld [vmem:[#allocation0] sm:$0x3]
    %49 = vrot.lane.b32.xlu0 %v48, 32
    %v50 = vpop.permute.xlu0 %49
    %vm51 = vcmask 130048
    %s52 = scalar_lea.vmem %s1, 6
    %53 = vst.msk [vmem:[%s52] ss:$16 sm:$0x3] %vm51, %v50
    %v54 = vld [vmem:[#allocation0] sm:$0x3]
    %55 = vrot.lane.b32.xlu0 %v54, 16
    %v56 = vpop.permute.xlu0 %55
    %vm57 = vcmask 130048
    %s58 = scalar_lea.vmem %s1, 7
    %59 = vst.msk [vmem:[%s58] ss:$16 sm:$0x3] %vm57, %v56

// kernel: siamfc_head.1
$region0: #{siamfc_head.1}
  #allocation0 [shape = 'u32[]', space=smem, size = 0x4, offset = 0x4, fixed_abs, tag = 'smem constant byte address 0x4 - core index']
  #allocation1 [shape = 'u32[144,128]{1,0:T(1,128)}', space=vmem, size = 0x12000, scoped, tag = 'internal scratch']
  #allocation2 [shape = 'f32[1,256]{1,0:T(1,128)}', space=vmem, size = 0x400, scoped, tag = 'scratch operand']
  %s0 = inlined_call_operand.vmem [shape: f32[2,6,6,4], index: 0, kind: input, shape index: {}]
  %s1 = inlined_call_operand.vmem [shape: f32[2,256,4], index: 1, kind: input, shape index: {}]
  %s2 = inlined_call_operand.vmem [shape: f32[2,1,256], index: 2, kind: output, shape index: {}]
  %s3 = sld [smem:[#allocation0]]
  $region41: #{siamfc_head.1} parent=0
    _
  %s5 = ssub.s32 1, %s3
  %s6 = scalar_select 0, %s5, %s3
  loop: start=0, step=1, limit=4
  $region2: #{siamfc_head.1} parent=0 // loop_pre_header
    _
  $region3: #{siamfc_head.1} parent=0 // loop_header
    %s8 = sphi 0, %s12
    %p9 = scmp.ge.s32.totalorder %s8, 4
    %s18 = sphi 0, %s20
    %s21 = sphi 0, %s18
    %s22 = sphi 0, %s21
    %s38 = sphi 0, %s22
    %s44 = sphi 0, %s46
    %s47 = sphi 0, %s44
    %s48 = sphi 0, %s47
    %s64 = sphi 0, %s48
    %s70 = sphi 0, %s72
    %s73 = sphi 0, %s70
    %s74 = sphi 0, %s73
    %s90 = sphi 0, %s74
  $region4: #{siamfc_head.1} parent=0 // loop_header_branch
    %11 = sbr.rel (%p9) target = $region8
  $region5: #{siamfc_head.1} parent=0 // loop_body
    %s13 = ssub.s32 %s8, 1
    %s14 = ssub.s32 %s8, 2
    %s15 = sadd.s32 %s8, 1
    %s16 = ssub.s32 %s8, %s15
    %p17 = scmp.eq.s32.totalorder %s16, 0
    %s19 = sadd.s32 %s18, 1
    %s20 = scalar_select %p17, %s18, %s19
    %p23 = pneg %p17
    %p24 = scmp.eq.s32.totalorder %s8, 1
    %p25 = por %p23, %p24
    %p26 = scmp.ne.s32.totalorder %s18, %s21
    %p27 = scmp.eq.s32.totalorder %s8, 0
    %p28 = por %p26, %p27
    %p29 = scmp.ne.s32.totalorder %s18, %s21
    %p30 = scmp.eq.s32.totalorder %s13, 1
    %p31 = por %p29, %p30
    %p32 = scmp.ne.s32.totalorder %s21, %s22
    %p33 = scmp.eq.s32.totalorder %s13, 0
    %p34 = por %p32, %p33
    %p35 = scmp.ne.s32.totalorder %s21, %s22
    %p36 = scmp.eq.s32.totalorder %s14, 1
    %p37 = por %p35, %p36
    %p39 = scmp.ne.s32.totalorder %s22, %s38
    %p40 = scmp.eq.s32.totalorder %s14, 0
    %p41 = por %p39, %p40
    %s42 = ssub.s32 %s8, %s15
    %p43 = scmp.eq.s32.totalorder %s42, 0
    %s45 = sadd.s32 %s44, 1
    %s46 = scalar_select %p43, %s44, %s45
    %p49 = pneg %p43
    %p50 = scmp.eq.s32.totalorder %s8, 1
    %p51 = por %p49, %p50
    %p52 = scmp.ne.s32.totalorder %s44, %s47
    %p53 = scmp.eq.s32.totalorder %s8, 0
    %p54 = por %p52, %p53
    %p55 = scmp.ne.s32.totalorder %s44, %s47
    %p56 = scmp.eq.s32.totalorder %s13, 1
    %p57 = por %p55, %p56
    %p58 = scmp.ne.s32.totalorder %s47, %s48
    %p59 = scmp.eq.s32.totalorder %s13, 0
    %p60 = por %p58, %p59
    %p61 = scmp.ne.s32.totalorder %s47, %s48
    %p62 = scmp.eq.s32.totalorder %s14, 1
    %p63 = por %p61, %p62
    %p65 = scmp.ne.s32.totalorder %s48, %s64
    %p66 = scmp.eq.s32.totalorder %s14, 0
    %p67 = por %p65, %p66
    %s68 = ssub.s32 %s8, %s15
    %p69 = scmp.eq.s32.totalorder %s68, 0
    %s71 = sadd.s32 %s70, 1
    %s72 = scalar_select %p69, %s70, %s71
    %p75 = pneg %p69
    %p76 = scmp.eq.s32.totalorder %s8, 1
    %p77 = por %p75, %p76
    %p78 = scmp.ne.s32.totalorder %s70, %s73
    %p79 = scmp.eq.s32.totalorder %s8, 0
    %p80 = por %p78, %p79
    %p81 = scmp.ne.s32.totalorder %s70, %s73
    %p82 = scmp.eq.s32.totalorder %s13, 1
    %p83 = por %p81, %p82
    %p84 = scmp.ne.s32.totalorder %s73, %s74
    %p85 = scmp.eq.s32.totalorder %s13, 0
    %p86 = por %p84, %p85
    %p87 = scmp.ne.s32.totalorder %s73, %s74
    %p88 = scmp.eq.s32.totalorder %s14, 1
    %p89 = por %p87, %p88
    %p91 = scmp.ne.s32.totalorder %s74, %s90
    %p92 = scmp.eq.s32.totalorder %s14, 0
    %p93 = por %p91, %p92
    %p94 = scmp.le.s32.totalorder 1, %s8
    %p95 = scmp.lt.s32.totalorder %s8, 3
    %p96 = pnand %p94, %p95
    %p97 = pneg %p96
    // Predicated region
    $region9: #{siamfc_head.1} parent=5 // pred_check
      _
    $region10: #{siamfc_head.1} parent=5 // pred_check_branch
      %99 = sbr.rel (%p96) target = $region12
    $region11: #{siamfc_head.1} parent=5 // pred_region
      %s100 = ssub.s32 %s8, 1
    $region12: #{siamfc_head.1} parent=5 // pred_fallthru
      _
    %p101 = scmp.lt.s32.totalorder %s8, 2
    // Predicated region
    $region13: #{siamfc_head.1} parent=5 // pred_check
      %p102 = pneg %p101
    $region14: #{siamfc_head.1} parent=5 // pred_check_branch
      %104 = sbr.rel (%p102) target = $region16
    $region15: #{siamfc_head.1} parent=5 // pred_region
      // Predicated region
      $region17: #{siamfc_head.1} parent=15 // pred_check
        %p105 = pneg %p28
      $region18: #{siamfc_head.1} parent=15 // pred_check_branch
        %107 = sbr.rel (%p105) target = $region20
      $region19: #{siamfc_head.1} parent=15 // pred_region
        %p108 = scmp.lt.s32.totalorder %s8, 1
        %s109 = scalar_select %p108, %s8, 1
        %s110 = smul.addr %s109, 6
        %s111 = smul.addr %s110, 8
        %s112 = scalar_lea.vmem %s0, %s111
      $region20: #{siamfc_head.1} parent=15 // pred_fallthru
        _
      // Predicated region
      $region21: #{siamfc_head.1} parent=15 // pred_check
        %p113 = pneg %p54
      $region22: #{siamfc_head.1} parent=15 // pred_check_branch
        %115 = sbr.rel (%p113) target = $region24
      $region23: #{siamfc_head.1} parent=15 // pred_region
        %p116 = scmp.lt.s32.totalorder %s8, 1
        %s117 = scalar_select %p116, %s8, 1
        %s118 = smul.addr %s117, 32
        %s119 = smul.addr %s118, 8
        %s120 = scalar_lea.vmem %s1, %s119
      $region24: #{siamfc_head.1} parent=15 // pred_fallthru
        _
    $region16: #{siamfc_head.1} parent=5 // pred_fallthru
      _
    %p121 = scmp.le.s32.totalorder 1, %s8
    %p122 = scmp.lt.s32.totalorder %s8, 3
    %p123 = pnand %p121, %p122
    %p124 = pneg %p123
    // Predicated region
    $region25: #{siamfc_head.1} parent=5 // pred_check
      _
    $region26: #{siamfc_head.1} parent=5 // pred_check_branch
      %126 = sbr.rel (%p123) target = $region28
    $region27: #{siamfc_head.1} parent=5 // pred_region
      %s127 = ssub.s32 %s8, 1
      %p128 = scmp.lt.s32.totalorder %s13, 1
      %s129 = scalar_select %p128, %s13, 1
      %s130 = smul.addr %s129, 6
      %s131 = smul.addr %s130, 8
      %s132 = scalar_lea.vmem %s0, %s131
      %p133 = pneg %p34
      %p134 = pneg %p31
      %p135 = scmp.lt.s32.totalorder %s13, 1
      %s136 = scalar_select %p135, %s13, 1
      %s137 = smul.addr %s136, 32
      %s138 = smul.addr %s137, 8
      %s139 = scalar_lea.vmem %s1, %s138
      %p140 = pneg %p60
      %p141 = pneg %p57
      %p142 = pneg %p86
      %p143 = pneg %p83
      %p144 = scmp.lt.s32.totalorder %s13, 1
      %s145 = scalar_select %p144, %s13, 1
      %s146 = smul.addr %s145, 2
      %s147 = scalar_lea.vmem %s2, %s146
      %p148 = scmp.lt.s32.totalorder %s13, 1
      %s149 = scalar_select %p148, %s13, 1
      %s150 = smul.addr %s149, 6
      %s151 = smul.addr %s150, 8
      %s152 = scalar_lea.vmem %s0, %s151
      %p153 = scmp.lt.s32.totalorder %s13, 1
      %s154 = scalar_select %p153, %s13, 1
      %s155 = smul.addr %s154, 32
      %s156 = smul.addr %s155, 8
      %s157 = scalar_lea.vmem %s1, %s156
      %p158 = scmp.lt.s32.totalorder %s13, 1
      %s159 = scalar_select %p158, %s13, 1
      %s160 = smul.addr %s159, 2
      %s161 = scalar_lea.vmem %s2, %s160
      %v162 = vlaneseq
      %vm163 = vcmp.ge.s32.totalorder %v162, 0
      %vm164 = vcmp.lt.s32.totalorder %v162, 256
      %vm165 = vmand %vm163, %vm164
      %166 = vst.msk [vmem:[#allocation2] sm:$0x3] %vm165, 0.0
      %v167 = vld [vmem:[%s157] sm:$0xff]
      %v168 = vld [vmem:[%s157 + $0x8] sm:$0xff]
      %v169 = vld [vmem:[%s157 + $0x10] sm:$0xff]
      %v170 = vld [vmem:[%s157 + $0x18] sm:$0xff]
      %v171 = vld [vmem:[%s157 + $0x20] sm:$0xff]
      %v172 = vld [vmem:[%s157 + $0x28] sm:$0xff]
      %v173 = vld [vmem:[%s157 + $0x30] sm:$0xff]
      %v174 = vld [vmem:[%s157 + $0x38] sm:$0xff]
      %v175 = vld [vmem:[%s157 + $0x40] sm:$0xff]
      %v176 = vld [vmem:[%s157 + $0x48] sm:$0xff]
      %v177 = vld [vmem:[%s157 + $0x50] sm:$0xff]
      %v178 = vld [vmem:[%s157 + $0x58] sm:$0xff]
      %v179 = vld [vmem:[%s157 + $0x60] sm:$0xff]
      %v180 = vld [vmem:[%s157 + $0x68] sm:$0xff]
      %v181 = vld [vmem:[%s157 + $0x70] sm:$0xff]
      %v182 = vld [vmem:[%s157 + $0x78] sm:$0xff]
      %v183 = vld [vmem:[%s157 + $0x80] sm:$0xff]
      %v184 = vld [vmem:[%s157 + $0x88] sm:$0xff]
      %v185 = vld [vmem:[%s157 + $0x90] sm:$0xff]
      %v186 = vld [vmem:[%s157 + $0x98] sm:$0xff]
      %v187 = vld [vmem:[%s157 + $0xa0] sm:$0xff]
      %v188 = vld [vmem:[%s157 + $0xa8] sm:$0xff]
      %v189 = vld [vmem:[%s152] sm:$0x3f]
      %vm190 = vcmask 31744
      %v192 = vsel %vm190, %v189, 0
      %v195 = vsel %vm190, %v167, 0
      %v198 = vsel %vm190, %v168, 0
      %v201 = vsel %vm190, %v169, 0
      %v204 = vsel %vm190, %v170, 0
      %v207 = vsel %vm190, %v171, 0
      %v210 = vsel %vm190, %v172, 0
      %v213 = vsel %vm190, %v173, 0
      %v216 = vsel %vm190, %v174, 0
      %v219 = vsel %vm190, %v175, 0
      %v222 = vsel %vm190, %v176, 0
      %v225 = vsel %vm190, %v177, 0
      %v228 = vsel %vm190, %v178, 0
      %v231 = vsel %vm190, %v179, 0
      %v234 = vsel %vm190, %v180, 0
      %v237 = vsel %vm190, %v181, 0
      %v240 = vsel %vm190, %v182, 0
      %v243 = vsel %vm190, %v183, 0
      %v246 = vsel %vm190, %v184, 0
      %v249 = vsel %vm190, %v185, 0
      %v252 = vsel %vm190, %v186, 0
      %v255 = vsel %vm190, %v187, 0
      %v258 = vsel %vm190, %v188, 0
      %260 = vmatprep.subr.mxu0 0.0
      %v261 = vand.u32 %v195, 4294901760
      %262 = vmatpush1.xpose.msra.mxu0 %v261
      %263 = vmatprep.subr.mxu0 0.0
      %v264 = vand.u32 %v198, 4294901760
      %265 = vmatpush1.xpose.msra.mxu0 %v264
      %266 = vmatprep.subr.mxu0 0.0
      %v267 = vand.u32 %v201, 4294901760
      %268 = vmatpush1.xpose.msra.mxu0 %v267
      %269 = vmatprep.subr.mxu0 0.0
      %v270 = vand.u32 %v204, 4294901760
      %271 = vmatpush1.xpose.msra.mxu0 %v270
      %272 = vmatprep.subr.mxu0 0.0
      %v273 = vand.u32 %v207, 4294901760
      %274 = vmatpush1.xpose.msra.mxu0 %v273
      %275 = vmatprep.subr.mxu0 0.0
      %v276 = vand.u32 %v210, 4294901760
      %277 = vmatpush1.xpose.msra.mxu0 %v276
      %278 = vmatprep.subr.mxu0 0.0
      %v279 = vand.u32 %v213, 4294901760
      %280 = vmatpush1.xpose.msra.mxu0 %v279
      %281 = vmatprep.subr.mxu0 0.0
      %v282 = vand.u32 %v216, 4294901760
      %283 = vmatpush1.xpose.msra.mxu0 %v282
      %284 = vmatprep.subr.mxu0 0.0
      %v285 = vand.u32 %v219, 4294901760
      %286 = vmatpush1.xpose.msra.mxu0 %v285
      %287 = vmatprep.subr.mxu0 0.0
      %v288 = vand.u32 %v222, 4294901760
      %289 = vmatpush1.xpose.msra.mxu0 %v288
      %290 = vmatprep.subr.mxu0 0.0
      %v291 = vand.u32 %v225, 4294901760
      %292 = vmatpush1.xpose.msra.mxu0 %v291
      %293 = vmatprep.subr.mxu0 0.0
      %v294 = vand.u32 %v228, 4294901760
      %295 = vmatpush1.xpose.msra.mxu0 %v294
      %296 = vmatprep.subr.mxu0 0.0
      %v297 = vand.u32 %v231, 4294901760
      %298 = vmatpush1.xpose.msra.mxu0 %v297
      %299 = vmatprep.subr.mxu0 0.0
      %v300 = vand.u32 %v234, 4294901760
      %301 = vmatpush1.xpose.msra.mxu0 %v300
      %302 = vmatprep.subr.mxu0 0.0
      %v303 = vand.u32 %v237, 4294901760
      %304 = vmatpush1.xpose.msra.mxu0 %v303
      %305 = vmatprep.subr.mxu0 0.0
      %v306 = vand.u32 %v240, 4294901760
      %307 = vmatpush1.xpose.msra.mxu0 %v306
      %308 = vmatprep.subr.mxu0 0.0
      %v309 = vand.u32 %v243, 4294901760
      %310 = vmatpush1.xpose.msra.mxu0 %v309
      %311 = vmatprep.subr.mxu0 0.0
      %v312 = vand.u32 %v246, 4294901760
      %313 = vmatpush1.xpose.msra.mxu0 %v312
      %314 = vmatprep.subr.mxu0 0.0
      %v315 = vand.u32 %v249, 4294901760
      %316 = vmatpush1.xpose.msra.mxu0 %v315
      %317 = vmatprep.subr.mxu0 0.0
      %v318 = vand.u32 %v252, 4294901760
      %319 = vmatpush1.xpose.msra.mxu0 %v318
      %320 = vmatprep.subr.mxu0 0.0
      %v321 = vand.u32 %v255, 4294901760
      %322 = vmatpush1.xpose.msra.mxu0 %v321
      %323 = vmatprep.subr.mxu0 0.0
      %v324 = vand.u32 %v258, 4294901760
      %325 = vmatpush1.xpose.msra.mxu0 %v324
      %326 = vmatprep.subr.mxu0 0.0
      %327 = vmatpush1.xpose.msra.mxu0 0.0
      %328 = vmatprep.subr.mxu0 0.0
      %329 = vmatpush1.xpose.msra.mxu0 0.0
      %330 = vmatprep.subr.mxu0 0.0
      %331 = vmatpush1.xpose.msra.mxu0 0.0
      %332 = vmatprep.subr.mxu0 0.0
      %333 = vmatpush1.xpose.msra.mxu0 0.0
      %334 = vmatprep.subr.mxu0 0.0
      %335 = vmatpush1.xpose.msra.mxu0 0.0
      %336 = vmatprep.subr.mxu0 0.0
      %337 = vmatpush1.xpose.msra.mxu0 0.0
      %338 = vmatprep.subr.mxu0 0.0
      %339 = vmatpush1.xpose.msra.mxu0 0.0
      %340 = vmatprep.subr.mxu0 0.0
      %341 = vmatpush1.xpose.msra.mxu0 0.0
      %342 = vmatprep.subr.mxu0 0.0
      %343 = vmatpush1.xpose.msra.mxu0 0.0
      %344 = vmatprep.subr.mxu0 0.0
      %345 = vmatpush1.xpose.msra.mxu0 0.0
      %346 = vmatprep.mubr.f32.mxu0 0.0
      %v347 = vand.u32 %v192, 4294901760
      %v348 = vsub.f32 %v192, %v347
      %v349 = vand.u32 %v348, 4294901760
      %v350 = vsub.f32 %v348, %v349
      %v351 = vand.u32 %v350, 4294901760
      %352 = vmatmul.mubr.f32.gmra.mrb[0].mxu0 %v351
      %v353 = vpop.f32.mrb[0].mxu0
      %v354 = vadd.f32 0.0, %v353
      %v355 = vpop.f32.mrb[0].mxu0
      %v356 = vadd.f32 0.0, %v355
      %357 = vdwg.mxu0
      %358 = vmatprep.subr.mxu0 0.0
      %v359 = vand.u32 %v195, 4294901760
      %v360 = vsub.f32 %v195, %v359
      %v361 = vand.u32 %v360, 4294901760
      %v362 = vsub.f32 %v360, %v361
      %v363 = vand.u32 %v362, 4294901760
      %364 = vmatpush1.xpose.msra.mxu0 %v363
      %365 = vmatprep.subr.mxu0 0.0
      %v366 = vand.u32 %v198, 4294901760
      %v367 = vsub.f32 %v198, %v366
      %v368 = vand.u32 %v367, 4294901760
      %v369 = vsub.f32 %v367, %v368
      %v370 = vand.u32 %v369, 4294901760
      %371 = vmatpush1.xpose.msra.mxu0 %v370
      %372 = vmatprep.subr.mxu0 0.0
      %v373 = vand.u32 %v201, 4294901760
      %v374 = vsub.f32 %v201, %v373
      %v375 = vand.u32 %v374, 4294901760
      %v376 = vsub.f32 %v374, %v375
      %v377 = vand.u32 %v376, 4294901760
      %378 = vmatpush1.xpose.msra.mxu0 %v377
      %379 = vmatprep.subr.mxu0 0.0
      %v380 = vand.u32 %v204, 4294901760
      %v381 = vsub.f32 %v204, %v380
      %v382 = vand.u32 %v381, 4294901760
      %v383 = vsub.f32 %v381, %v382
      %v384 = vand.u32 %v383, 4294901760
      %385 = vmatpush1.xpose.msra.mxu0 %v384
      %386 = vmatprep.subr.mxu0 0.0
      %v387 = vand.u32 %v207, 4294901760
      %v388 = vsub.f32 %v207, %v387
      %v389 = vand.u32 %v388, 4294901760
      %v390 = vsub.f32 %v388, %v389
      %v391 = vand.u32 %v390, 4294901760
      %392 = vmatpush1.xpose.msra.mxu0 %v391
      %393 = vmatprep.subr.mxu0 0.0
      %v394 = vand.u32 %v210, 4294901760
      %v395 = vsub.f32 %v210, %v394
      %v396 = vand.u32 %v395, 4294901760
      %v397 = vsub.f32 %v395, %v396
      %v398 = vand.u32 %v397, 4294901760
      %399 = vmatpush1.xpose.msra.mxu0 %v398
      %400 = vmatprep.subr.mxu0 0.0
      %v401 = vand.u32 %v213, 4294901760
      %v402 = vsub.f32 %v213, %v401
      %v403 = vand.u32 %v402, 4294901760
      %v404 = vsub.f32 %v402, %v403
      %v405 = vand.u32 %v404, 4294901760
      %406 = vmatpush1.xpose.msra.mxu0 %v405
      %407 = vmatprep.subr.mxu0 0.0
      %v408 = vand.u32 %v216, 4294901760
      %v409 = vsub.f32 %v216, %v408
      %v410 = vand.u32 %v409, 4294901760
      %v411 = vsub.f32 %v409, %v410
      %v412 = vand.u32 %v411, 4294901760
      %413 = vmatpush1.xpose.msra.mxu0 %v412
      %414 = vmatprep.subr.mxu0 0.0
      %v415 = vand.u32 %v219, 4294901760
      %v416 = vsub.f32 %v219, %v415
      %v417 = vand.u32 %v416, 4294901760
      %v418 = vsub.f32 %v416, %v417
      %v419 = vand.u32 %v418, 4294901760
      %420 = vmatpush1.xpose.msra.mxu0 %v419
      %421 = vmatprep.subr.mxu0 0.0
      %v422 = vand.u32 %v222, 4294901760
      %v423 = vsub.f32 %v222, %v422
      %v424 = vand.u32 %v423, 4294901760
      %v425 = vsub.f32 %v423, %v424
      %v426 = vand.u32 %v425, 4294901760
      %427 = vmatpush1.xpose.msra.mxu0 %v426
      %428 = vmatprep.subr.mxu0 0.0
      %v429 = vand.u32 %v225, 4294901760
      %v430 = vsub.f32 %v225, %v429
      %v431 = vand.u32 %v430, 4294901760
      %v432 = vsub.f32 %v430, %v431
      %v433 = vand.u32 %v432, 4294901760
      %434 = vmatpush1.xpose.msra.mxu0 %v433
      %435 = vmatprep.subr.mxu0 0.0
      %v436 = vand.u32 %v228, 4294901760
      %v437 = vsub.f32 %v228, %v436
      %v438 = vand.u32 %v437, 4294901760
      %v439 = vsub.f32 %v437, %v438
      %v440 = vand.u32 %v439, 4294901760
      %441 = vmatpush1.xpose.msra.mxu0 %v440
      %442 = vmatprep.subr.mxu0 0.0
      %v443 = vand.u32 %v231, 4294901760
      %v444 = vsub.f32 %v231, %v443
      %v445 = vand.u32 %v444, 4294901760
      %v446 = vsub.f32 %v444, %v445
      %v447 = vand.u32 %v446, 4294901760
      %448 = vmatpush1.xpose.msra.mxu0 %v447
      %449 = vmatprep.subr.mxu0 0.0
      %v450 = vand.u32 %v234, 4294901760
      %v451 = vsub.f32 %v234, %v450
      %v452 = vand.u32 %v451, 4294901760
      %v453 = vsub.f32 %v451, %v452
      %v454 = vand.u32 %v453, 4294901760
      %455 = vmatpush1.xpose.msra.mxu0 %v454
      %456 = vmatprep.subr.mxu0 0.0
      %v457 = vand.u32 %v237, 4294901760
      %v458 = vsub.f32 %v237, %v457
      %v459 = vand.u32 %v458, 4294901760
      %v460 = vsub.f32 %v458, %v459
      %v461 = vand.u32 %v460, 4294901760
      %462 = vmatpush1.xpose.msra.mxu0 %v461
      %463 = vmatprep.subr.mxu0 0.0
      %v464 = vand.u32 %v240, 4294901760
      %v465 = vsub.f32 %v240, %v464
      %v466 = vand.u32 %v465, 4294901760
      %v467 = vsub.f32 %v465, %v466
      %v468 = vand.u32 %v467, 4294901760
      %469 = vmatpush1.xpose.msra.mxu0 %v468
      %470 = vmatprep.subr.mxu0 0.0
      %v471 = vand.u32 %v243, 4294901760
      %v472 = vsub.f32 %v243, %v471
      %v473 = vand.u32 %v472, 4294901760
      %v474 = vsub.f32 %v472, %v473
      %v475 = vand.u32 %v474, 4294901760
      %476 = vmatpush1.xpose.msra.mxu0 %v475
      %477 = vmatprep.subr.mxu0 0.0
      %v478 = vand.u32 %v246, 4294901760
      %v479 = vsub.f32 %v246, %v478
      %v480 = vand.u32 %v479, 4294901760
      %v481 = vsub.f32 %v479, %v480
      %v482 = vand.u32 %v481, 4294901760
      %483 = vmatpush1.xpose.msra.mxu0 %v482
      %484 = vmatprep.subr.mxu0 0.0
      %v485 = vand.u32 %v249, 4294901760
      %v486 = vsub.f32 %v249, %v485
      %v487 = vand.u32 %v486, 4294901760
      %v488 = vsub.f32 %v486, %v487
      %v489 = vand.u32 %v488, 4294901760
      %490 = vmatpush1.xpose.msra.mxu0 %v489
      %491 = vmatprep.subr.mxu0 0.0
      %v492 = vand.u32 %v252, 4294901760
      %v493 = vsub.f32 %v252, %v492
      %v494 = vand.u32 %v493, 4294901760
      %v495 = vsub.f32 %v493, %v494
      %v496 = vand.u32 %v495, 4294901760
      %497 = vmatpush1.xpose.msra.mxu0 %v496
      %498 = vmatprep.subr.mxu0 0.0
      %v499 = vand.u32 %v255, 4294901760
      %v500 = vsub.f32 %v255, %v499
      %v501 = vand.u32 %v500, 4294901760
      %v502 = vsub.f32 %v500, %v501
      %v503 = vand.u32 %v502, 4294901760
      %504 = vmatpush1.xpose.msra.mxu0 %v503
      %505 = vmatprep.subr.mxu0 0.0
      %v506 = vand.u32 %v258, 4294901760
      %v507 = vsub.f32 %v258, %v506
      %v508 = vand.u32 %v507, 4294901760
      %v509 = vsub.f32 %v507, %v508
      %v510 = vand.u32 %v509, 4294901760
      %511 = vmatpush1.xpose.msra.mxu0 %v510
      %512 = vmatprep.subr.mxu0 0.0
      %513 = vmatpush1.xpose.msra.mxu0 0.0
      %514 = vmatprep.subr.mxu0 0.0
      %515 = vmatpush1.xpose.msra.mxu0 0.0
      %516 = vmatprep.subr.mxu0 0.0
      %517 = vmatpush1.xpose.msra.mxu0 0.0
      %518 = vmatprep.subr.mxu0 0.0
      %519 = vmatpush1.xpose.msra.mxu0 0.0
      %520 = vmatprep.subr.mxu0 0.0
      %521 = vmatpush1.xpose.msra.mxu0 0.0
      %522 = vmatprep.subr.mxu0 0.0
      %523 = vmatpush1.xpose.msra.mxu0 0.0
      %524 = vmatprep.subr.mxu0 0.0
      %525 = vmatpush1.xpose.msra.mxu0 0.0
      %526 = vmatprep.subr.mxu0 0.0
      %527 = vmatpush1.xpose.msra.mxu0 0.0
      %528 = vmatprep.subr.mxu0 0.0
      %529 = vmatpush1.xpose.msra.mxu0 0.0
      %530 = vmatprep.subr.mxu0 0.0
      %531 = vmatpush1.xpose.msra.mxu0 0.0
      %532 = vmatprep.mubr.f32.mxu0 0.0
      %v533 = vand.u32 %v192, 4294901760
      %534 = vmatmul.mubr.f32.gmra.mrb[0].mxu0 %v533
      %v535 = vpop.f32.mrb[0].mxu0
      %v536 = vadd.f32 %v354, %v535
      %v537 = vpop.f32.mrb[0].mxu0
      %v538 = vadd.f32 %v356, %v537
      %539 = vdwg.mxu0
      %540 = vmatprep.subr.mxu0 0.0
      %v541 = vand.u32 %v195, 4294901760
      %v542 = vsub.f32 %v195, %v541
      %543 = vmatpush1.xpose.msra.mxu0 %v542
      %544 = vmatprep.subr.mxu0 0.0
      %v545 = vand.u32 %v198, 4294901760
      %v546 = vsub.f32 %v198, %v545
      %547 = vmatpush1.xpose.msra.mxu0 %v546
      %548 = vmatprep.subr.mxu0 0.0
      %v549 = vand.u32 %v201, 4294901760
      %v550 = vsub.f32 %v201, %v549
      %551 = vmatpush1.xpose.msra.mxu0 %v550
      %552 = vmatprep.subr.mxu0 0.0
      %v553 = vand.u32 %v204, 4294901760
      %v554 = vsub.f32 %v204, %v553
      %555 = vmatpush1.xpose.msra.mxu0 %v554
      %556 = vmatprep.subr.mxu0 0.0
      %v557 = vand.u32 %v207, 4294901760
      %v558 = vsub.f32 %v207, %v557
      %559 = vmatpush1.xpose.msra.mxu0 %v558
      %560 = vmatprep.subr.mxu0 0.0
      %v561 = vand.u32 %v210, 4294901760
      %v562 = vsub.f32 %v210, %v561
      %563 = vmatpush1.xpose.msra.mxu0 %v562
      %564 = vmatprep.subr.mxu0 0.0
      %v565 = vand.u32 %v213, 4294901760
      %v566 = vsub.f32 %v213, %v565
      %567 = vmatpush1.xpose.msra.mxu0 %v566
      %568 = vmatprep.subr.mxu0 0.0
      %v569 = vand.u32 %v216, 4294901760
      %v570 = vsub.f32 %v216, %v569
      %571 = vmatpush1.xpose.msra.mxu0 %v570
      %572 = vmatprep.subr.mxu0 0.0
      %v573 = vand.u32 %v219, 4294901760
      %v574 = vsub.f32 %v219, %v573
      %575 = vmatpush1.xpose.msra.mxu0 %v574
      %576 = vmatprep.subr.mxu0 0.0
      %v577 = vand.u32 %v222, 4294901760
      %v578 = vsub.f32 %v222, %v577
      %579 = vmatpush1.xpose.msra.mxu0 %v578
      %580 = vmatprep.subr.mxu0 0.0
      %v581 = vand.u32 %v225, 4294901760
      %v582 = vsub.f32 %v225, %v581
      %583 = vmatpush1.xpose.msra.mxu0 %v582
      %584 = vmatprep.subr.mxu0 0.0
      %v585 = vand.u32 %v228, 4294901760
      %v586 = vsub.f32 %v228, %v585
      %587 = vmatpush1.xpose.msra.mxu0 %v586
      %588 = vmatprep.subr.mxu0 0.0
      %v589 = vand.u32 %v231, 4294901760
      %v590 = vsub.f32 %v231, %v589
      %591 = vmatpush1.xpose.msra.mxu0 %v590
      %592 = vmatprep.subr.mxu0 0.0
      %v593 = vand.u32 %v234, 4294901760
      %v594 = vsub.f32 %v234, %v593
      %595 = vmatpush1.xpose.msra.mxu0 %v594
      %596 = vmatprep.subr.mxu0 0.0
      %v597 = vand.u32 %v237, 4294901760
      %v598 = vsub.f32 %v237, %v597
      %599 = vmatpush1.xpose.msra.mxu0 %v598
      %600 = vmatprep.subr.mxu0 0.0
      %v601 = vand.u32 %v240, 4294901760
      %v602 = vsub.f32 %v240, %v601
      %603 = vmatpush1.xpose.msra.mxu0 %v602
      %604 = vmatprep.subr.mxu0 0.0
      %v605 = vand.u32 %v243, 4294901760
      %v606 = vsub.f32 %v243, %v605
      %607 = vmatpush1.xpose.msra.mxu0 %v606
      %608 = vmatprep.subr.mxu0 0.0
      %v609 = vand.u32 %v246, 4294901760
      %v610 = vsub.f32 %v246, %v609
      %611 = vmatpush1.xpose.msra.mxu0 %v610
      %612 = vmatprep.subr.mxu0 0.0
      %v613 = vand.u32 %v249, 4294901760
      %v614 = vsub.f32 %v249, %v613
      %615 = vmatpush1.xpose.msra.mxu0 %v614
      %616 = vmatprep.subr.mxu0 0.0
      %v617 = vand.u32 %v252, 4294901760
      %v618 = vsub.f32 %v252, %v617
      %619 = vmatpush1.xpose.msra.mxu0 %v618
      %620 = vmatprep.subr.mxu0 0.0
      %v621 = vand.u32 %v255, 4294901760
      %v622 = vsub.f32 %v255, %v621
      %623 = vmatpush1.xpose.msra.mxu0 %v622
      %624 = vmatprep.subr.mxu0 0.0
      %v625 = vand.u32 %v258, 4294901760
      %v626 = vsub.f32 %v258, %v625
      %627 = vmatpush1.xpose.msra.mxu0 %v626
      %628 = vmatprep.subr.mxu0 0.0
      %629 = vmatpush1.xpose.msra.mxu0 0.0
      %630 = vmatprep.subr.mxu0 0.0
      %631 = vmatpush1.xpose.msra.mxu0 0.0
      %632 = vmatprep.subr.mxu0 0.0
      %633 = vmatpush1.xpose.msra.mxu0 0.0
      %634 = vmatprep.subr.mxu0 0.0
      %635 = vmatpush1.xpose.msra.mxu0 0.0
      %636 = vmatprep.subr.mxu0 0.0
      %637 = vmatpush1.xpose.msra.mxu0 0.0
      %638 = vmatprep.subr.mxu0 0.0
      %639 = vmatpush1.xpose.msra.mxu0 0.0
      %640 = vmatprep.subr.mxu0 0.0
      %641 = vmatpush1.xpose.msra.mxu0 0.0
      %642 = vmatprep.subr.mxu0 0.0
      %643 = vmatpush1.xpose.msra.mxu0 0.0
      %644 = vmatprep.subr.mxu0 0.0
      %645 = vmatpush1.xpose.msra.mxu0 0.0
      %646 = vmatprep.subr.mxu0 0.0
      %647 = vmatpush1.xpose.msra.mxu0 0.0
      %648 = vmatprep.mubr.f32.mxu0 0.0
      %v649 = vand.u32 %v192, 4294901760
      %v650 = vsub.f32 %v192, %v649
      %651 = vmatmul.mubr.f32.gmra.mrb[0].mxu0 %v650
      %v652 = vpop.f32.mrb[0].mxu0
      %v653 = vadd.f32 %v536, %v652
      %v654 = vpop.f32.mrb[0].mxu0
      %v655 = vadd.f32 %v538, %v654
      %656 = vdwg.mxu0
      %657 = vmatprep.subr.mxu0 0.0
      %v658 = vand.u32 %v195, 4294901760
      %659 = vmatpush1.xpose.msra.mxu0 %v658
      %660 = vmatprep.subr.mxu0 0.0
      %v661 = vand.u32 %v198, 4294901760
      %662 = vmatpush1.xpose.msra.mxu0 %v661
      %663 = vmatprep.subr.mxu0 0.0
      %v664 = vand.u32 %v201, 4294901760
      %665 = vmatpush1.xpose.msra.mxu0 %v664
      %666 = vmatprep.subr.mxu0 0.0
      %v667 = vand.u32 %v204, 4294901760
      %668 = vmatpush1.xpose.msra.mxu0 %v667
      %669 = vmatprep.subr.mxu0 0.0
      %v670 = vand.u32 %v207, 4294901760
      %671 = vmatpush1.xpose.msra.mxu0 %v670
      %672 = vmatprep.subr.mxu0 0.0
      %v673 = vand.u32 %v210, 4294901760
      %674 = vmatpush1.xpose.msra.mxu0 %v673
      %675 = vmatprep.subr.mxu0 0.0
      %v676 = vand.u32 %v213, 4294901760
      %677 = vmatpush1.xpose.msra.mxu0 %v676
      %678 = vmatprep.subr.mxu0 0.0
      %v679 = vand.u32 %v216, 4294901760
      %680 = vmatpush1.xpose.msra.mxu0 %v679
      %681 = vmatprep.subr.mxu0 0.0
      %v682 = vand.u32 %v219, 4294901760
      %683 = vmatpush1.xpose.msra.mxu0 %v682
      %684 = vmatprep.subr.mxu0 0.0
      %v685 = vand.u32 %v222, 4294901760
      %686 = vmatpush1.xpose.msra.mxu0 %v685
      %687 = vmatprep.subr.mxu0 0.0
      %v688 = vand.u32 %v225, 4294901760
      %689 = vmatpush1.xpose.msra.mxu0 %v688
      %690 = vmatprep.subr.mxu0 0.0
      %v691 = vand.u32 %v228, 4294901760
      %692 = vmatpush1.xpose.msra.mxu0 %v691
      %693 = vmatprep.subr.mxu0 0.0
      %v694 = vand.u32 %v231, 4294901760
      %695 = vmatpush1.xpose.msra.mxu0 %v694
      %696 = vmatprep.subr.mxu0 0.0
      %v697 = vand.u32 %v234, 4294901760
      %698 = vmatpush1.xpose.msra.mxu0 %v697
      %699 = vmatprep.subr.mxu0 0.0
      %v700 = vand.u32 %v237, 4294901760
      %701 = vmatpush1.xpose.msra.mxu0 %v700
      %702 = vmatprep.subr.mxu0 0.0
      %v703 = vand.u32 %v240, 4294901760
      %704 = vmatpush1.xpose.msra.mxu0 %v703
      %705 = vmatprep.subr.mxu0 0.0
      %v706 = vand.u32 %v243, 4294901760
      %707 = vmatpush1.xpose.msra.mxu0 %v706
      %708 = vmatprep.subr.mxu0 0.0
      %v709 = vand.u32 %v246, 4294901760
      %710 = vmatpush1.xpose.msra.mxu0 %v709
      %711 = vmatprep.subr.mxu0 0.0
      %v712 = vand.u32 %v249, 4294901760
      %713 = vmatpush1.xpose.msra.mxu0 %v712
      %714 = vmatprep.subr.mxu0 0.0
      %v715 = vand.u32 %v252, 4294901760
      %716 = vmatpush1.xpose.msra.mxu0 %v715
      %717 = vmatprep.subr.mxu0 0.0
      %v718 = vand.u32 %v255, 4294901760
      %719 = vmatpush1.xpose.msra.mxu0 %v718
      %720 = vmatprep.subr.mxu0 0.0
      %v721 = vand.u32 %v258, 4294901760
      %722 = vmatpush1.xpose.msra.mxu0 %v721
      %723 = vmatprep.subr.mxu0 0.0
      %724 = vmatpush1.xpose.msra.mxu0 0.0
      %725 = vmatprep.subr.mxu0 0.0
      %726 = vmatpush1.xpose.msra.mxu0 0.0
      %727 = vmatprep.subr.mxu0 0.0
      %728 = vmatpush1.xpose.msra.mxu0 0.0
      %729 = vmatprep.subr.mxu0 0.0
      %730 = vmatpush1.xpose.msra.mxu0 0.0
      %731 = vmatprep.subr.mxu0 0.0
      %732 = vmatpush1.xpose.msra.mxu0 0.0
      %733 = vmatprep.subr.mxu0 0.0
      %734 = vmatpush1.xpose.msra.mxu0 0.0
      %735 = vmatprep.subr.mxu0 0.0
      %736 = vmatpush1.xpose.msra.mxu0 0.0
      %737 = vmatprep.subr.mxu0 0.0
      %738 = vmatpush1.xpose.msra.mxu0 0.0
      %739 = vmatprep.subr.mxu0 0.0
      %740 = vmatpush1.xpose.msra.mxu0 0.0
      %741 = vmatprep.subr.mxu0 0.0
      %742 = vmatpush1.xpose.msra.mxu0 0.0
      %743 = vmatprep.mubr.f32.mxu0 0.0
      %v744 = vand.u32 %v192, 4294901760
      %v745 = vsub.f32 %v192, %v744
      %v746 = vand.u32 %v745, 4294901760
      %747 = vmatmul.mubr.f32.gmra.mrb[0].mxu0 %v746
      %v748 = vpop.f32.mrb[0].mxu0
      %v749 = vadd.f32 %v653, %v748
      %v750 = vpop.f32.mrb[0].mxu0
      %v751 = vadd.f32 %v655, %v750
      %752 = vdwg.mxu0
      %753 = vmatprep.subr.mxu0 0.0
      %v754 = vand.u32 %v195, 4294901760
      %v755 = vsub.f32 %v195, %v754
      %v756 = vand.u32 %v755, 4294901760
      %757 = vmatpush1.xpose.msra.mxu0 %v756
      %758 = vmatprep.subr.mxu0 0.0
      %v759 = vand.u32 %v198, 4294901760
      %v760 = vsub.f32 %v198, %v759
      %v761 = vand.u32 %v760, 4294901760
      %762 = vmatpush1.xpose.msra.mxu0 %v761
      %763 = vmatprep.subr.mxu0 0.0
      %v764 = vand.u32 %v201, 4294901760
      %v765 = vsub.f32 %v201, %v764
      %v766 = vand.u32 %v765, 4294901760
      %767 = vmatpush1.xpose.msra.mxu0 %v766
      %768 = vmatprep.subr.mxu0 0.0
      %v769 = vand.u32 %v204, 4294901760
      %v770 = vsub.f32 %v204, %v769
      %v771 = vand.u32 %v770, 4294901760
      %772 = vmatpush1.xpose.msra.mxu0 %v771
      %773 = vmatprep.subr.mxu0 0.0
      %v774 = vand.u32 %v207, 4294901760
      %v775 = vsub.f32 %v207, %v774
      %v776 = vand.u32 %v775, 4294901760
      %777 = vmatpush1.xpose.msra.mxu0 %v776
      %778 = vmatprep.subr.mxu0 0.0
      %v779 = vand.u32 %v210, 4294901760
      %v780 = vsub.f32 %v210, %v779
      %v781 = vand.u32 %v780, 4294901760
      %782 = vmatpush1.xpose.msra.mxu0 %v781
      %783 = vmatprep.subr.mxu0 0.0
      %v784 = vand.u32 %v213, 4294901760
      %v785 = vsub.f32 %v213, %v784
      %v786 = vand.u32 %v785, 4294901760
      %787 = vmatpush1.xpose.msra.mxu0 %v786
      %788 = vmatprep.subr.mxu0 0.0
      %v789 = vand.u32 %v216, 4294901760
      %v790 = vsub.f32 %v216, %v789
      %v791 = vand.u32 %v790, 4294901760
      %792 = vmatpush1.xpose.msra.mxu0 %v791
      %793 = vmatprep.subr.mxu0 0.0
      %v794 = vand.u32 %v219, 4294901760
      %v795 = vsub.f32 %v219, %v794
      %v796 = vand.u32 %v795, 4294901760
      %797 = vmatpush1.xpose.msra.mxu0 %v796
      %798 = vmatprep.subr.mxu0 0.0
      %v799 = vand.u32 %v222, 4294901760
      %v800 = vsub.f32 %v222, %v799
      %v801 = vand.u32 %v800, 4294901760
      %802 = vmatpush1.xpose.msra.mxu0 %v801
      %803 = vmatprep.subr.mxu0 0.0
      %v804 = vand.u32 %v225, 4294901760
      %v805 = vsub.f32 %v225, %v804
      %v806 = vand.u32 %v805, 4294901760
      %807 = vmatpush1.xpose.msra.mxu0 %v806
      %808 = vmatprep.subr.mxu0 0.0
      %v809 = vand.u32 %v228, 4294901760
      %v810 = vsub.f32 %v228, %v809
      %v811 = vand.u32 %v810, 4294901760
      %812 = vmatpush1.xpose.msra.mxu0 %v811
      %813 = vmatprep.subr.mxu0 0.0
      %v814 = vand.u32 %v231, 4294901760
      %v815 = vsub.f32 %v231, %v814
      %v816 = vand.u32 %v815, 4294901760
      %817 = vmatpush1.xpose.msra.mxu0 %v816
      %818 = vmatprep.subr.mxu0 0.0
      %v819 = vand.u32 %v234, 4294901760
      %v820 = vsub.f32 %v234, %v819
      %v821 = vand.u32 %v820, 4294901760
      %822 = vmatpush1.xpose.msra.mxu0 %v821
      %823 = vmatprep.subr.mxu0 0.0
      %v824 = vand.u32 %v237, 4294901760
      %v825 = vsub.f32 %v237, %v824
      %v826 = vand.u32 %v825, 4294901760
      %827 = vmatpush1.xpose.msra.mxu0 %v826
      %828 = vmatprep.subr.mxu0 0.0
      %v829 = vand.u32 %v240, 4294901760
      %v830 = vsub.f32 %v240, %v829
      %v831 = vand.u32 %v830, 4294901760
      %832 = vmatpush1.xpose.msra.mxu0 %v831
      %833 = vmatprep.subr.mxu0 0.0
      %v834 = vand.u32 %v243, 4294901760
      %v835 = vsub.f32 %v243, %v834
      %v836 = vand.u32 %v835, 4294901760
      %837 = vmatpush1.xpose.msra.mxu0 %v836
      %838 = vmatprep.subr.mxu0 0.0
      %v839 = vand.u32 %v246, 4294901760
      %v840 = vsub.f32 %v246, %v839
      %v841 = vand.u32 %v840, 4294901760
      %842 = vmatpush1.xpose.msra.mxu0 %v841
      %843 = vmatprep.subr.mxu0 0.0
      %v844 = vand.u32 %v249, 4294901760
      %v845 = vsub.f32 %v249, %v844
      %v846 = vand.u32 %v845, 4294901760
      %847 = vmatpush1.xpose.msra.mxu0 %v846
      %848 = vmatprep.subr.mxu0 0.0
      %v849 = vand.u32 %v252, 4294901760
      %v850 = vsub.f32 %v252, %v849
      %v851 = vand.u32 %v850, 4294901760
      %852 = vmatpush1.xpose.msra.mxu0 %v851
      %853 = vmatprep.subr.mxu0 0.0
      %v854 = vand.u32 %v255, 4294901760
      %v855 = vsub.f32 %v255, %v854
      %v856 = vand.u32 %v855, 4294901760
      %857 = vmatpush1.xpose.msra.mxu0 %v856
      %858 = vmatprep.subr.mxu0 0.0
      %v859 = vand.u32 %v258, 4294901760
      %v860 = vsub.f32 %v258, %v859
      %v861 = vand.u32 %v860, 4294901760
      %862 = vmatpush1.xpose.msra.mxu0 %v861
      %863 = vmatprep.subr.mxu0 0.0
      %864 = vmatpush1.xpose.msra.mxu0 0.0
      %865 = vmatprep.subr.mxu0 0.0
      %866 = vmatpush1.xpose.msra.mxu0 0.0
      %867 = vmatprep.subr.mxu0 0.0
      %868 = vmatpush1.xpose.msra.mxu0 0.0
      %869 = vmatprep.subr.mxu0 0.0
      %870 = vmatpush1.xpose.msra.mxu0 0.0
      %871 = vmatprep.subr.mxu0 0.0
      %872 = vmatpush1.xpose.msra.mxu0 0.0
      %873 = vmatprep.subr.mxu0 0.0
      %874 = vmatpush1.xpose.msra.mxu0 0.0
      %875 = vmatprep.subr.mxu0 0.0
      %876 = vmatpush1.xpose.msra.mxu0 0.0
      %877 = vmatprep.subr.mxu0 0.0
      %878 = vmatpush1.xpose.msra.mxu0 0.0
      %879 = vmatprep.subr.mxu0 0.0
      %880 = vmatpush1.xpose.msra.mxu0 0.0
      %881 = vmatprep.subr.mxu0 0.0
      %882 = vmatpush1.xpose.msra.mxu0 0.0
      %883 = vmatprep.mubr.f32.mxu0 0.0
      %v884 = vand.u32 %v192, 4294901760
      %885 = vmatmul.mubr.f32.gmra.mrb[0].mxu0 %v884
      %v886 = vpop.f32.mrb[0].mxu0
      %v887 = vadd.f32 %v749, %v886
      %v888 = vpop.f32.mrb[0].mxu0
      %v889 = vadd.f32 %v751, %v888
      %890 = vdwg.mxu0
      %891 = vmatprep.subr.mxu0 0.0
      %v892 = vand.u32 %v195, 4294901760
      %893 = vmatpush1.xpose.msra.mxu0 %v892
      %894 = vmatprep.subr.mxu0 0.0
      %v895 = vand.u32 %v198, 4294901760
      %896 = vmatpush1.xpose.msra.mxu0 %v895
      %897 = vmatprep.subr.mxu0 0.0
      %v898 = vand.u32 %v201, 4294901760
      %899 = vmatpush1.xpose.msra.mxu0 %v898
      %900 = vmatprep.subr.mxu0 0.0
      %v901 = vand.u32 %v204, 4294901760
      %902 = vmatpush1.xpose.msra.mxu0 %v901
      %903 = vmatprep.subr.mxu0 0.0
      %v904 = vand.u32 %v207, 4294901760
      %905 = vmatpush1.xpose.msra.mxu0 %v904
      %906 = vmatprep.subr.mxu0 0.0
      %v907 = vand.u32 %v210, 4294901760
      %908 = vmatpush1.xpose.msra.mxu0 %v907
      %909 = vmatprep.subr.mxu0 0.0
      %v910 = vand.u32 %v213, 4294901760
      %911 = vmatpush1.xpose.msra.mxu0 %v910
      %912 = vmatprep.subr.mxu0 0.0
      %v913 = vand.u32 %v216, 4294901760
      %914 = vmatpush1.xpose.msra.mxu0 %v913
      %915 = vmatprep.subr.mxu0 0.0
      %v916 = vand.u32 %v219, 4294901760
      %917 = vmatpush1.xpose.msra.mxu0 %v916
      %918 = vmatprep.subr.mxu0 0.0
      %v919 = vand.u32 %v222, 4294901760
      %920 = vmatpush1.xpose.msra.mxu0 %v919
      %921 = vmatprep.subr.mxu0 0.0
      %v922 = vand.u32 %v225, 4294901760
      %923 = vmatpush1.xpose.msra.mxu0 %v922
      %924 = vmatprep.subr.mxu0 0.0
      %v925 = vand.u32 %v228, 4294901760
      %926 = vmatpush1.xpose.msra.mxu0 %v925
      %927 = vmatprep.subr.mxu0 0.0
      %v928 = vand.u32 %v231, 4294901760
      %929 = vmatpush1.xpose.msra.mxu0 %v928
      %930 = vmatprep.subr.mxu0 0.0
      %v931 = vand.u32 %v234, 4294901760
      %932 = vmatpush1.xpose.msra.mxu0 %v931
      %933 = vmatprep.subr.mxu0 0.0
      %v934 = vand.u32 %v237, 4294901760
      %935 = vmatpush1.xpose.msra.mxu0 %v934
      %936 = vmatprep.subr.mxu0 0.0
      %v937 = vand.u32 %v240, 4294901760
      %938 = vmatpush1.xpose.msra.mxu0 %v937
      %939 = vmatprep.subr.mxu0 0.0
      %v940 = vand.u32 %v243, 4294901760
      %941 = vmatpush1.xpose.msra.mxu0 %v940
      %942 = vmatprep.subr.mxu0 0.0
      %v943 = vand.u32 %v246, 4294901760
      %944 = vmatpush1.xpose.msra.mxu0 %v943
      %945 = vmatprep.subr.mxu0 0.0
      %v946 = vand.u32 %v249, 4294901760
      %947 = vmatpush1.xpose.msra.mxu0 %v946
      %948 = vmatprep.subr.mxu0 0.0
      %v949 = vand.u32 %v252, 4294901760
      %950 = vmatpush1.xpose.msra.mxu0 %v949
      %951 = vmatprep.subr.mxu0 0.0
      %v952 = vand.u32 %v255, 4294901760
      %953 = vmatpush1.xpose.msra.mxu0 %v952
      %954 = vmatprep.subr.mxu0 0.0
      %v955 = vand.u32 %v258, 4294901760
      %956 = vmatpush1.xpose.msra.mxu0 %v955
      %957 = vmatprep.subr.mxu0 0.0
      %958 = vmatpush1.xpose.msra.mxu0 0.0
      %959 = vmatprep.subr.mxu0 0.0
      %960 = vmatpush1.xpose.msra.mxu0 0.0
      %961 = vmatprep.subr.mxu0 0.0
      %962 = vmatpush1.xpose.msra.mxu0 0.0
      %963 = vmatprep.subr.mxu0 0.0
      %964 = vmatpush1.xpose.msra.mxu0 0.0
      %965 = vmatprep.subr.mxu0 0.0
      %966 = vmatpush1.xpose.msra.mxu0 0.0
      %967 = vmatprep.subr.mxu0 0.0
      %968 = vmatpush1.xpose.msra.mxu0 0.0
      %969 = vmatprep.subr.mxu0 0.0
      %970 = vmatpush1.xpose.msra.mxu0 0.0
      %971 = vmatprep.subr.mxu0 0.0
      %972 = vmatpush1.xpose.msra.mxu0 0.0
      %973 = vmatprep.subr.mxu0 0.0
      %974 = vmatpush1.xpose.msra.mxu0 0.0
      %975 = vmatprep.subr.mxu0 0.0
      %976 = vmatpush1.xpose.msra.mxu0 0.0
      %977 = vmatprep.mubr.f32.mxu0 0.0
      %v978 = vand.u32 %v192, 4294901760
      %979 = vmatmul.mubr.f32.gmra.mrb[0].mxu0 %v978
      %v980 = vpop.f32.mrb[0].mxu0
      %v981 = vadd.f32 %v887, %v980
      %v982 = vpop.f32.mrb[0].mxu0
      %v983 = vadd.f32 %v889, %v982
      %984 = vdwg.mxu0
      %v985 = vld [vmem:[#allocation2] sm:$0x3]
      %v988 = vcombine.low %v981, %v983
      %v990 = vunpack.c.l.s4 1966171168
      %v991 = vunpack.c.0.s8 %v990
      %v992 = vlaneseq
      %v993 = vshrl.u32 %v992, 7
      %v994 = vsub.s32 %v991, %v993
      %v995 = vrot.slane %v988, %v994
      %v997 = vunpack.c.l.s4 1966171168
      %v998 = vunpack.c.0.s8 %v997
      %v999 = vlaneseq
      %v1000 = vshrl.u32 %v999, 7
      %v1001 = vsub.s32 %v998, %v1000
      %v1002 = vrot.slane %v995, %v1001
      %v1004 = vadd.f32 %v985, %v1002
      %vm1005 = vcmp.lt.s32.totalorder %v162, 176
      %vm1006 = vmand %vm163, %vm1005
      %1007 = vst.msk [vmem:[#allocation2] sm:$0x3] %vm1006, %v1004
      %v1008 = vld [vmem:[#allocation2] sm:$0x3]
      %v1009 = vcombine.high %v995, %v995
      %v1011 = vunpack.c.l.s4 1966171168
      %v1012 = vunpack.c.0.s8 %v1011
      %v1013 = vlaneseq
      %v1014 = vshrl.u32 %v1013, 7
      %v1015 = vsub.s32 %v1012, %v1014
      %v1016 = vrot.slane %v1009, %v1015
      %1017 = vrot.lane.b32.xlu0 %v1016, 127
      %v1018 = vpop.permute.xlu0 %1017
      %v1019 = vrot.slane %v1018, 1
      %vm1020 = vcmask 1039360
      %v1021 = vsel %vm1020, %v1018, %v1019
      %v1023 = vadd.f32 %v1008, %v1021
      %vm1024 = vcmp.lt.s32.totalorder %v162, 175
      %vm1025 = vmand %vm163, %vm1024
      %1026 = vst.msk [vmem:[#allocation2] sm:$0x3] %vm1025, %v1023
      %v1027 = vld [vmem:[#allocation2] sm:$0x3]
      %v1028 = vcombine.high %v1002, %v1002
      %1029 = vrot.lane.b32.xlu0 %v1028, 126
      %v1030 = vpop.permute.xlu0 %1029
      %v1031 = vrot.slane %v1030, 1
      %vm1032 = vcmask 1031168
      %v1033 = vsel %vm1032, %v1030, %v1031
      %v1035 = vadd.f32 %v1027, %v1033
      %vm1036 = vcmp.lt.s32.totalorder %v162, 174
      %vm1037 = vmand %vm163, %vm1036
      %1038 = vst.msk [vmem:[#allocation2] sm:$0x3] %vm1037, %v1035
      %v1039 = vld [vmem:[#allocation2] sm:$0x3]
      %v1040 = vcombine.high %v1016, %v1016
      %1041 = vrot.lane.b32.xlu0 %v1040, 125
      %v1042 = vpop.permute.xlu0 %1041
      %v1043 = vrot.slane %v1042, 1
      %vm1044 = vcmask 1022976
      %v1045 = vsel %vm1044, %v1042, %v1043
      %v1047 = vadd.f32 %v1039, %v1045
      %vm1048 = vcmp.lt.s32.totalorder %v162, 173
      %vm1049 = vmand %vm163, %vm1048
      %1050 = vst.msk [vmem:[#allocation2] sm:$0x3] %vm1049, %v1047
      %v1051 = vld [vmem:[#allocation2] sm:$0x3]
      %v1052 = vcombine.high %v981, %v983
      %v1054 = vunpack.c.l.s4 1966171168
      %v1055 = vunpack.c.0.s8 %v1054
      %v1056 = vlaneseq
      %v1057 = vshrl.u32 %v1056, 7
      %v1058 = vsub.s32 %v1055, %v1057
      %v1059 = vrot.slane %v1052, %v1058
      %v1061 = vunpack.c.l.s4 1966171168
      %v1062 = vunpack.c.0.s8 %v1061
      %v1063 = vlaneseq
      %v1064 = vshrl.u32 %v1063, 7
      %v1065 = vsub.s32 %v1062, %v1064
      %v1066 = vrot.slane %v1059, %v1065
      %1067 = vrot.lane.b32.xlu0 %v1066, 124
      %v1068 = vpop.permute.xlu0 %1067
      %v1069 = vrot.slane %v1068, 1
      %vm1070 = vcmask 1014784
      %v1071 = vsel %vm1070, %v1068, %v1069
      %v1073 = vadd.f32 %v1051, %v1071
      %vm1074 = vcmp.lt.s32.totalorder %v162, 172
      %vm1075 = vmand %vm163, %vm1074
      %1076 = vst.msk [vmem:[#allocation2] sm:$0x3] %vm1075, %v1073
      %v1077 = vld [vmem:[#allocation2] sm:$0x3]
      %v1078 = vcombine.high %v1059, %v1059
      %v1080 = vunpack.c.l.s4 1966171168
      %v1081 = vunpack.c.0.s8 %v1080
      %v1082 = vlaneseq
      %v1083 = vshrl.u32 %v1082, 7
      %v1084 = vsub.s32 %v1081, %v1083
      %v1085 = vrot.slane %v1078, %v1084
      %1086 = vrot.lane.b32.xlu0 %v1085, 123
      %v1087 = vpop.permute.xlu0 %1086
      %v1088 = vrot.slane %v1087, 1
      %vm1089 = vcmask 1006592
      %v1090 = vsel %vm1089, %v1087, %v1088
      %v1092 = vadd.f32 %v1077, %v1090
      %vm1093 = vcmp.lt.s32.totalorder %v162, 171
      %vm1094 = vmand %vm163, %vm1093
      %1095 = vst.msk [vmem:[#allocation2] sm:$0x3] %vm1094, %v1092
      %s1096 = scalar_lea.vmem %s157, 16
      %v1097 = vld [vmem:[%s1096] sm:$0xff]
      %v1098 = vld [vmem:[%s1096 + $0x8] sm:$0xff]
      %v1099 = vld [vmem:[%s1096 + $0x10] sm:$0xff]
      %v1100 = vld [vmem:[%s1096 + $0x18] sm:$0xff]
      %v1101 = vld [vmem:[%s1096 + $0x20] sm:$0xff]
      %v1102 = vld [vmem:[%s1096 + $0x28] sm:$0xff]
      %v1103 = vld [vmem:[%s1096 + $0x30] sm:$0xff]
      %v1104 = vld [vmem:[%s1096 + $0x38] sm:$0xff]
      %v1105 = vld [vmem:[%s1096 + $0x40] sm:$0xff]
      %v1106 = vld [vmem:[%s1096 + $0x48] sm:$0xff]
      %v1107 = vld [vmem:[%s1096 + $0x50] sm:$0xff]
      %v1108 = vld [vmem:[%s1096 + $0x58] sm:$0xff]
      %v1109 = vld [vmem:[%s1096 + $0x60] sm:$0xff]
      %v1110 = vld [vmem:[%s1096 + $0x68] sm:$0xff]
      %v1111 = vld [vmem:[%s1096 + $0x70] sm:$0xff]
      %v1112 = vld [vmem:[%s1096 + $0x78] sm:$0xff]
      %v1113 = vld [vmem:[%s1096 + $0x80] sm:$0xff]
      %v1114 = vld [vmem:[%s1096 + $0x88] sm:$0xff]
      %v1115 = vld [vmem:[%s1096 + $0x90] sm:$0xff]
      %v1116 = vld [vmem:[%s1096 + $0x98] sm:$0xff]
      %v1117 = vld [vmem:[%s1096 + $0xa0] sm:$0xff]
      %v1118 = vld [vmem:[%s1096 + $0xa8] sm:$0xff]
      %s1119 = scalar_lea.vmem %s152, 8
      %v1120 = vld [vmem:[%s1119] sm:$0x3f]
      %v1122 = vsel %vm190, %v1120, 0
      %v1125 = vsel %vm190, %v1097, 0
      %v1128 = vsel %vm190, %v1098, 0
      %v1131 = vsel %vm190, %v1099, 0
      %v1134 = vsel %vm190, %v1100, 0
      %v1137 = vsel %vm190, %v1101, 0
      %v1140 = vsel %vm190, %v1102, 0
      %v1143 = vsel %vm190, %v1103, 0
      %v1146 = vsel %vm190, %v1104, 0
      %v1149 = vsel %vm190, %v1105, 0
      %v1152 = vsel %vm190, %v1106, 0
      %v1155 = vsel %vm190, %v1107, 0
      %v1158 = vsel %vm190, %v1108, 0
      %v1161 = vsel %vm190, %v1109, 0
      %v1164 = vsel %vm190, %v1110, 0
      %v1167 = vsel %vm190, %v1111, 0
      %v1170 = vsel %vm190, %v1112, 0
      %v1173 = vsel %vm190, %v1113, 0
      %v1176 = vsel %vm190, %v1114, 0
      %v1179 = vsel %vm190, %v1115, 0
      %v1182 = vsel %vm190, %v1116, 0
      %v1185 = vsel %vm190, %v1117, 0
      %v1188 = vsel %vm190, %v1118, 0
      %1190 = vmatprep.subr.mxu0 0.0
      %v1191 = vand.u32 %v1125, 4294901760
      %1192 = vmatpush1.xpose.msra.mxu0 %v1191
      %1193 = vmatprep.subr.mxu0 0.0
      %v1194 = vand.u32 %v1128, 4294901760
      %1195 = vmatpush1.xpose.msra.mxu0 %v1194
      %1196 = vmatprep.subr.mxu0 0.0
      %v1197 = vand.u32 %v1131, 4294901760
      %1198 = vmatpush1.xpose.msra.mxu0 %v1197
      %1199 = vmatprep.subr.mxu0 0.0
      %v1200 = vand.u32 %v1134, 4294901760
      %1201 = vmatpush1.xpose.msra.mxu0 %v1200
      %1202 = vmatprep.subr.mxu0 0.0
      %v1203 = vand.u32 %v1137, 4294901760
      %1204 = vmatpush1.xpose.msra.mxu0 %v1203
      %1205 = vmatprep.subr.mxu0 0.0
      %v1206 = vand.u32 %v1140, 4294901760
      %1207 = vmatpush1.xpose.msra.mxu0 %v1206
      %1208 = vmatprep.subr.mxu0 0.0
      %v1209 = vand.u32 %v1143, 4294901760
      %1210 = vmatpush1.xpose.msra.mxu0 %v1209
      %1211 = vmatprep.subr.mxu0 0.0
      %v1212 = vand.u32 %v1146, 4294901760
      %1213 = vmatpush1.xpose.msra.mxu0 %v1212
      %1214 = vmatprep.subr.mxu0 0.0
      %v1215 = vand.u32 %v1149, 4294901760
      %1216 = vmatpush1.xpose.msra.mxu0 %v1215
      %1217 = vmatprep.subr.mxu0 0.0
      %v1218 = vand.u32 %v1152, 4294901760
      %1219 = vmatpush1.xpose.msra.mxu0 %v1218
      %1220 = vmatprep.subr.mxu0 0.0
      %v1221 = vand.u32 %v1155, 4294901760
      %1222 = vmatpush1.xpose.msra.mxu0 %v1221
      %1223 = vmatprep.subr.mxu0 0.0
      %v1224 = vand.u32 %v1158, 4294901760
      %1225 = vmatpush1.xpose.msra.mxu0 %v1224
      %1226 = vmatprep.subr.mxu0 0.0
      %v1227 = vand.u32 %v1161, 4294901760
      %1228 = vmatpush1.xpose.msra.mxu0 %v1227
      %1229 = vmatprep.subr.mxu0 0.0
      %v1230 = vand.u32 %v1164, 4294901760
      %1231 = vmatpush1.xpose.msra.mxu0 %v1230
      %1232 = vmatprep.subr.mxu0 0.0
      %v1233 = vand.u32 %v1167, 4294901760
      %1234 = vmatpush1.xpose.msra.mxu0 %v1233
      %1235 = vmatprep.subr.mxu0 0.0
      %v1236 = vand.u32 %v1170, 4294901760
      %1237 = vmatpush1.xpose.msra.mxu0 %v1236
      %1238 = vmatprep.subr.mxu0 0.0
      %v1239 = vand.u32 %v1173, 4294901760
      %1240 = vmatpush1.xpose.msra.mxu0 %v1239
      %1241 = vmatprep.subr.mxu0 0.0
      %v1242 = vand.u32 %v1176, 4294901760
      %1243 = vmatpush1.xpose.msra.mxu0 %v1242
      %1244 = vmatprep.subr.mxu0 0.0
      %v1245 = vand.u32 %v1179, 4294901760
      %1246 = vmatpush1.xpose.msra.mxu0 %v1245
      %1247 = vmatprep.subr.mxu0 0.0
      %v1248 = vand.u32 %v1182, 4294901760
      %1249 = vmatpush1.xpose.msra.mxu0 %v1248
      %1250 = vmatprep.subr.mxu0 0.0
      %v1251 = vand.u32 %v1185, 4294901760
      %1252 = vmatpush1.xpose.msra.mxu0 %v1251
      %1253 = vmatprep.subr.mxu0 0.0
      %v1254 = vand.u32 %v1188, 4294901760
      %1255 = vmatpush1.xpose.msra.mxu0 %v1254
      %1256 = vmatprep.subr.mxu0 0.0
      %1257 = vmatpush1.xpose.msra.mxu0 0.0
      %1258 = vmatprep.subr.mxu0 0.0
      %1259 = vmatpush1.xpose.msra.mxu0 0.0
      %1260 = vmatprep.subr.mxu0 0.0
      %1261 = vmatpush1.xpose.msra.mxu0 0.0
      %1262 = vmatprep.subr.mxu0 0.0
      %1263 = vmatpush1.xpose.msra.mxu0 0.0
      %1264 = vmatprep.subr.mxu0 0.0
      %1265 = vmatpush1.xpose.msra.mxu0 0.0
      %1266 = vmatprep.subr.mxu0 0.0
      %1267 = vmatpush1.xpose.msra.mxu0 0.0
      %1268 = vmatprep.subr.mxu0 0.0
      %1269 = vmatpush1.xpose.msra.mxu0 0.0
      %1270 = vmatprep.subr.mxu0 0.0
      %1271 = vmatpush1.xpose.msra.mxu0 0.0
      %1272 = vmatprep.subr.mxu0 0.0
      %1273 = vmatpush1.xpose.msra.mxu0 0.0
      %1274 = vmatprep.subr.mxu0 0.0
      %1275 = vmatpush1.xpose.msra.mxu0 0.0
      %1276 = vmatprep.mubr.f32.mxu0 0.0
      %v1277 = vand.u32 %v1122, 4294901760
      %v1278 = vsub.f32 %v1122, %v1277
      %v1279 = vand.u32 %v1278, 4294901760
      %v1280 = vsub.f32 %v1278, %v1279
      %v1281 = vand.u32 %v1280, 4294901760
      %1282 = vmatmul.mubr.f32.gmra.mrb[0].mxu0 %v1281
      %v1283 = vpop.f32.mrb[0].mxu0
      %v1284 = vadd.f32 0.0, %v1283
      %v1285 = vpop.f32.mrb[0].mxu0
      %v1286 = vadd.f32 0.0, %v1285
      %1287 = vdwg.mxu0
      %1288 = vmatprep.subr.mxu0 0.0
      %v1289 = vand.u32 %v1125, 4294901760
      %v1290 = vsub.f32 %v1125, %v1289
      %v1291 = vand.u32 %v1290, 4294901760
      %v1292 = vsub.f32 %v1290, %v1291
      %v1293 = vand.u32 %v1292, 4294901760
      %1294 = vmatpush1.xpose.msra.mxu0 %v1293
      %1295 = vmatprep.subr.mxu0 0.0
      %v1296 = vand.u32 %v1128, 4294901760
      %v1297 = vsub.f32 %v1128, %v1296
      %v1298 = vand.u32 %v1297, 4294901760
      %v1299 = vsub.f32 %v1297, %v1298
      %v1300 = vand.u32 %v1299, 4294901760
      %1301 = vmatpush1.xpose.msra.mxu0 %v1300
      %1302 = vmatprep.subr.mxu0 0.0
      %v1303 = vand.u32 %v1131, 4294901760
      %v1304 = vsub.f32 %v1131, %v1303
      %v1305 = vand.u32 %v1304, 4294901760
      %v1306 = vsub.f32 %v1304, %v1305
      %v1307 = vand.u32 %v1306, 4294901760
      %1308 = vmatpush1.xpose.msra.mxu0 %v1307
      %1309 = vmatprep.subr.mxu0 0.0
      %v1310 = vand.u32 %v1134, 4294901760
      %v1311 = vsub.f32 %v1134, %v1310
      %v1312 = vand.u32 %v1311, 4294901760
      %v1313 = vsub.f32 %v1311, %v1312
      %v1314 = vand.u32 %v1313, 4294901760
      %1315 = vmatpush1.xpose.msra.mxu0 %v1314
      %1316 = vmatprep.subr.mxu0 0.0
      %v1317 = vand.u32 %v1137, 4294901760
      %v1318 = vsub.f32 %v1137, %v1317
      %v1319 = vand.u32 %v1318, 4294901760
      %v1320 = vsub.f32 %v1318, %v1319
      %v1321 = vand.u32 %v1320, 4294901760
      %1322 = vmatpush1.xpose.msra.mxu0 %v1321
      %1323 = vmatprep.subr.mxu0 0.0
      %v1324 = vand.u32 %v1140, 4294901760
      %v1325 = vsub.f32 %v1140, %v1324
      %v1326 = vand.u32 %v1325, 4294901760
      %v1327 = vsub.f32 %v1325, %v1326
      %v1328 = vand.u32 %v1327, 4294901760
      %1329 = vmatpush1.xpose.msra.mxu0 %v1328
      %1330 = vmatprep.subr.mxu0 0.0
      %v1331 = vand.u32 %v1143, 4294901760
      %v1332 = vsub.f32 %v1143, %v1331
      %v1333 = vand.u32 %v1332, 4294901760
      %v1334 = vsub.f32 %v1332, %v1333
      %v1335 = vand.u32 %v1334, 4294901760
      %1336 = vmatpush1.xpose.msra.mxu0 %v1335
      %1337 = vmatprep.subr.mxu0 0.0
      %v1338 = vand.u32 %v1146, 4294901760
      %v1339 = vsub.f32 %v1146, %v1338
      %v1340 = vand.u32 %v1339, 4294901760
      %v1341 = vsub.f32 %v1339, %v1340
      %v1342 = vand.u32 %v1341, 4294901760
      %1343 = vmatpush1.xpose.msra.mxu0 %v1342
      %1344 = vmatprep.subr.mxu0 0.0
      %v1345 = vand.u32 %v1149, 4294901760
      %v1346 = vsub.f32 %v1149, %v1345
      %v1347 = vand.u32 %v1346, 4294901760
      %v1348 = vsub.f32 %v1346, %v1347
      %v1349 = vand.u32 %v1348, 4294901760
      %1350 = vmatpush1.xpose.msra.mxu0 %v1349
      %1351 = vmatprep.subr.mxu0 0.0
      %v1352 = vand.u32 %v1152, 4294901760
      %v1353 = vsub.f32 %v1152, %v1352
      %v1354 = vand.u32 %v1353, 4294901760
      %v1355 = vsub.f32 %v1353, %v1354
      %v1356 = vand.u32 %v1355, 4294901760
      %1357 = vmatpush1.xpose.msra.mxu0 %v1356
      %1358 = vmatprep.subr.mxu0 0.0
      %v1359 = vand.u32 %v1155, 4294901760
      %v1360 = vsub.f32 %v1155, %v1359
      %v1361 = vand.u32 %v1360, 4294901760
      %v1362 = vsub.f32 %v1360, %v1361
      %v1363 = vand.u32 %v1362, 4294901760
      %1364 = vmatpush1.xpose.msra.mxu0 %v1363
      %1365 = vmatprep.subr.mxu0 0.0
      %v1366 = vand.u32 %v1158, 4294901760
      %v1367 = vsub.f32 %v1158, %v1366
      %v1368 = vand.u32 %v1367, 4294901760
      %v1369 = vsub.f32 %v1367, %v1368
      %v1370 = vand.u32 %v1369, 4294901760
      %1371 = vmatpush1.xpose.msra.mxu0 %v1370
      %1372 = vmatprep.subr.mxu0 0.0
      %v1373 = vand.u32 %v1161, 4294901760
      %v1374 = vsub.f32 %v1161, %v1373
      %v1375 = vand.u32 %v1374, 4294901760
      %v1376 = vsub.f32 %v1374, %v1375
      %v1377 = vand.u32 %v1376, 4294901760
      %1378 = vmatpush1.xpose.msra.mxu0 %v1377
      %1379 = vmatprep.subr.mxu0 0.0
      %v1380 = vand.u32 %v1164, 4294901760
      %v1381 = vsub.f32 %v1164, %v1380
      %v1382 = vand.u32 %v1381, 4294901760
      %v1383 = vsub.f32 %v1381, %v1382
      %v1384 = vand.u32 %v1383, 4294901760
      %1385 = vmatpush1.xpose.msra.mxu0 %v1384
      %1386 = vmatprep.subr.mxu0 0.0
      %v1387 = vand.u32 %v1167, 4294901760
      %v1388 = vsub.f32 %v1167, %v1387
      %v1389 = vand.u32 %v1388, 4294901760
      %v1390 = vsub.f32 %v1388, %v1389
      %v1391 = vand.u32 %v1390, 4294901760
      %1392 = vmatpush1.xpose.msra.mxu0 %v1391
      %1393 = vmatprep.subr.mxu0 0.0
      %v1394 = vand.u32 %v1170, 4294901760
      %v1395 = vsub.f32 %v1170, %v1394
      %v1396 = vand.u32 %v1395, 4294901760
      %v1397 = vsub.f32 %v1395, %v1396
      %v1398 = vand.u32 %v1397, 4294901760
      %1399 = vmatpush1.xpose.msra.mxu0 %v1398
      %1400 = vmatprep.subr.mxu0 0.0
      %v1401 = vand.u32 %v1173, 4294901760
      %v1402 = vsub.f32 %v1173, %v1401
      %v1403 = vand.u32 %v1402, 4294901760
      %v1404 = vsub.f32 %v1402, %v1403
      %v1405 = vand.u32 %v1404, 4294901760
      %1406 = vmatpush1.xpose.msra.mxu0 %v1405
      %1407 = vmatprep.subr.mxu0 0.0
      %v1408 = vand.u32 %v1176, 4294901760
      %v1409 = vsub.f32 %v1176, %v1408
      %v1410 = vand.u32 %v1409, 4294901760
      %v1411 = vsub.f32 %v1409, %v1410
      %v1412 = vand.u32 %v1411, 4294901760
      %1413 = vmatpush1.xpose.msra.mxu0 %v1412
      %1414 = vmatprep.subr.mxu0 0.0
      %v1415 = vand.u32 %v1179, 4294901760
      %v1416 = vsub.f32 %v1179, %v1415
      %v1417 = vand.u32 %v1416, 4294901760
      %v1418 = vsub.f32 %v1416, %v1417
      %v1419 = vand.u32 %v1418, 4294901760
      %1420 = vmatpush1.xpose.msra.mxu0 %v1419
      %1421 = vmatprep.subr.mxu0 0.0
      %v1422 = vand.u32 %v1182, 4294901760
      %v1423 = vsub.f32 %v1182, %v1422
      %v1424 = vand.u32 %v1423, 4294901760
      %v1425 = vsub.f32 %v1423, %v1424
      %v1426 = vand.u32 %v1425, 4294901760
      %1427 = vmatpush1.xpose.msra.mxu0 %v1426
      %1428 = vmatprep.subr.mxu0 0.0
      %v1429 = vand.u32 %v1185, 4294901760
      %v1430 = vsub.f32 %v1185, %v1429
      %v1431 = vand.u32 %v1430, 4294901760
      %v1432 = vsub.f32 %v1430, %v1431
      %v1433 = vand.u32 %v1432, 4294901760
      %1434 = vmatpush1.xpose.msra.mxu0 %v1433
      %1435 = vmatprep.subr.mxu0 0.0
      %v1436 = vand.u32 %v1188, 4294901760
      %v1437 = vsub.f32 %v1188, %v1436
      %v1438 = vand.u32 %v1437, 4294901760
      %v1439 = vsub.f32 %v1437, %v1438
      %v1440 = vand.u32 %v1439, 4294901760
      %1441 = vmatpush1.xpose.msra.mxu0 %v1440
      %1442 = vmatprep.subr.mxu0 0.0
      %1443 = vmatpush1.xpose.msra.mxu0 0.0
      %1444 = vmatprep.subr.mxu0 0.0
      %1445 = vmatpush1.xpose.msra.mxu0 0.0
      %1446 = vmatprep.subr.mxu0 0.0
      %1447 = vmatpush1.xpose.msra.mxu0 0.0
      %1448 = vmatprep.subr.mxu0 0.0
      %1449 = vmatpush1.xpose.msra.mxu0 0.0
      %1450 = vmatprep.subr.mxu0 0.0
      %1451 = vmatpush1.xpose.msra.mxu0 0.0
      %1452 = vmatprep.subr.mxu0 0.0
      %1453 = vmatpush1.xpose.msra.mxu0 0.0
      %1454 = vmatprep.subr.mxu0 0.0
      %1455 = vmatpush1.xpose.msra.mxu0 0.0
      %1456 = vmatprep.subr.mxu0 0.0
      %1457 = vmatpush1.xpose.msra.mxu0 0.0
      %1458 = vmatprep.subr.mxu0 0.0
      %1459 = vmatpush1.xpose.msra.mxu0 0.0
      %1460 = vmatprep.subr.mxu0 0.0
      %1461 = vmatpush1.xpose.msra.mxu0 0.0
      %1462 = vmatprep.mubr.f32.mxu0 0.0
      %v1463 = vand.u32 %v1122, 4294901760
      %1464 = vmatmul.mubr.f32.gmra.mrb[0].mxu0 %v1463
      %v1465 = vpop.f32.mrb[0].mxu0
      %v1466 = vadd.f32 %v1284, %v1465
      %v1467 = vpop.f32.mrb[0].mxu0
      %v1468 = vadd.f32 %v1286, %v1467
      %1469 = vdwg.mxu0
      %1470 = vmatprep.subr.mxu0 0.0
      %v1471 = vand.u32 %v1125, 4294901760
      %v1472 = vsub.f32 %v1125, %v1471
      %1473 = vmatpush1.xpose.msra.mxu0 %v1472
      %1474 = vmatprep.subr.mxu0 0.0
      %v1475 = vand.u32 %v1128, 4294901760
      %v1476 = vsub.f32 %v1128, %v1475
      %1477 = vmatpush1.xpose.msra.mxu0 %v1476
      %1478 = vmatprep.subr.mxu0 0.0
      %v1479 = vand.u32 %v1131, 4294901760
      %v1480 = vsub.f32 %v1131, %v1479
      %1481 = vmatpush1.xpose.msra.mxu0 %v1480
      %1482 = vmatprep.subr.mxu0 0.0
      %v1483 = vand.u32 %v1134, 4294901760
      %v1484 = vsub.f32 %v1134, %v1483
      %1485 = vmatpush1.xpose.msra.mxu0 %v1484
      %1486 = vmatprep.subr.mxu0 0.0
      %v1487 = vand.u32 %v1137, 4294901760
      %v1488 = vsub.f32 %v1137, %v1487
      %1489 = vmatpush1.xpose.msra.mxu0 %v1488
      %1490 = vmatprep.subr.mxu0 0.0
      %v1491 = vand.u32 %v1140, 4294901760
      %v1492 = vsub.f32 %v1140, %v1491
      %1493 = vmatpush1.xpose.msra.mxu0 %v1492
      %1494 = vmatprep.subr.mxu0 0.0
      %v1495 = vand.u32 %v1143, 4294901760
      %v1496 = vsub.f32 %v1143, %v1495
      %1497 = vmatpush1.xpose.msra.mxu0 %v1496
      %1498 = vmatprep.subr.mxu0 0.0
      %v1499 = vand.u32 %v1146, 4294901760
      %v1500 = vsub.f32 %v1146, %v1499
      %1501 = vmatpush1.xpose.msra.mxu0 %v1500
      %1502 = vmatprep.subr.mxu0 0.0
      %v1503 = vand.u32 %v1149, 4294901760
      %v1504 = vsub.f32 %v1149, %v1503
      %1505 = vmatpush1.xpose.msra.mxu0 %v1504
      %1506 = vmatprep.subr.mxu0 0.0
      %v1507 = vand.u32 %v1152, 4294901760
      %v1508 = vsub.f32 %v1152, %v1507
      %1509 = vmatpush1.xpose.msra.mxu0 %v1508
      %1510 = vmatprep.subr.mxu0 0.0
      %v1511 = vand.u32 %v1155, 4294901760
      %v1512 = vsub.f32 %v1155, %v1511
      %1513 = vmatpush1.xpose.msra.mxu0 %v1512
      %1514 = vmatprep.subr.mxu0 0.0
      %v1515 = vand.u32 %v1158, 4294901760
      %v1516 = vsub.f32 %v1158, %v1515
      %1517 = vmatpush1.xpose.msra.mxu0 %v1516
      %1518 = vmatprep.subr.mxu0 0.0
      %v1519 = vand.u32 %v1161, 4294901760
      %v1520 = vsub.f32 %v1161, %v1519
      %1521 = vmatpush1.xpose.msra.mxu0 %v1520
      %1522 = vmatprep.subr.mxu0 0.0
      %v1523 = vand.u32 %v1164, 4294901760
      %v1524 = vsub.f32 %v1164, %v1523
      %1525 = vmatpush1.xpose.msra.mxu0 %v1524
      %1526 = vmatprep.subr.mxu0 0.0
      %v1527 = vand.u32 %v1167, 4294901760
      %v1528 = vsub.f32 %v1167, %v1527
      %1529 = vmatpush1.xpose.msra.mxu0 %v1528
      %1530 = vmatprep.subr.mxu0 0.0
      %v1531 = vand.u32 %v1170, 4294901760
      %v1532 = vsub.f32 %v1170, %v1531
      %1533 = vmatpush1.xpose.msra.mxu0 %v1532
      %1534 = vmatprep.subr.mxu0 0.0
      %v1535 = vand.u32 %v1173, 4294901760
      %v1536 = vsub.f32 %v1173, %v1535
      %1537 = vmatpush1.xpose.msra.mxu0 %v1536
      %1538 = vmatprep.subr.mxu0 0.0
      %v1539 = vand.u32 %v1176, 4294901760
      %v1540 = vsub.f32 %v1176, %v1539
      %1541 = vmatpush1.xpose.msra.mxu0 %v1540
      %1542 = vmatprep.subr.mxu0 0.0
      %v1543 = vand.u32 %v1179, 4294901760
      %v1544 = vsub.f32 %v1179, %v1543
      %1545 = vmatpush1.xpose.msra.mxu0 %v1544
      %1546 = vmatprep.subr.mxu0 0.0
      %v1547 = vand.u32 %v1182, 4294901760
      %v1548 = vsub.f32 %v1182, %v1547
      %1549 = vmatpush1.xpose.msra.mxu0 %v1548
      %1550 = vmatprep.subr.mxu0 0.0
      %v1551 = vand.u32 %v1185, 4294901760
      %v1552 = vsub.f32 %v1185, %v1551
      %1553 = vmatpush1.xpose.msra.mxu0 %v1552
      %1554 = vmatprep.subr.mxu0 0.0
      %v1555 = vand.u32 %v1188, 4294901760
      %v1556 = vsub.f32 %v1188, %v1555
      %1557 = vmatpush1.xpose.msra.mxu0 %v1556
      %1558 = vmatprep.subr.mxu0 0.0
      %1559 = vmatpush1.xpose.msra.mxu0 0.0
      %1560 = vmatprep.subr.mxu0 0.0
      %1561 = vmatpush1.xpose.msra.mxu0 0.0
      %1562 = vmatprep.subr.mxu0 0.0
      %1563 = vmatpush1.xpose.msra.mxu0 0.0
      %1564 = vmatprep.subr.mxu0 0.0
      %1565 = vmatpush1.xpose.msra.mxu0 0.0
      %1566 = vmatprep.subr.mxu0 0.0
      %1567 = vmatpush1.xpose.msra.mxu0 0.0
      %1568 = vmatprep.subr.mxu0 0.0
      %1569 = vmatpush1.xpose.msra.mxu0 0.0
      %1570 = vmatprep.subr.mxu0 0.0
      %1571 = vmatpush1.xpose.msra.mxu0 0.0
      %1572 = vmatprep.subr.mxu0 0.0
      %1573 = vmatpush1.xpose.msra.mxu0 0.0
      %1574 = vmatprep.subr.mxu0 0.0
      %1575 = vmatpush1.xpose.msra.mxu0 0.0
      %1576 = vmatprep.subr.mxu0 0.0
      %1577 = vmatpush1.xpose.msra.mxu0 0.0
      %1578 = vmatprep.mubr.f32.mxu0 0.0
      %v1579 = vand.u32 %v1122, 4294901760
      %v1580 = vsub.f32 %v1122, %v1579
      %1581 = vmatmul.mubr.f32.gmra.mrb[0].mxu0 %v1580
      %v1582 = vpop.f32.mrb[0].mxu0
      %v1583 = vadd.f32 %v1466, %v1582
      %v1584 = vpop.f32.mrb[0].mxu0
      %v1585 = vadd.f32 %v1468, %v1584
      %1586 = vdwg.mxu0
      %1587 = vmatprep.subr.mxu0 0.0
      %v1588 = vand.u32 %v1125, 4294901760
      %1589 = vmatpush1.xpose.msra.mxu0 %v1588
      %1590 = vmatprep.subr.mxu0 0.0
      %v1591 = vand.u32 %v1128, 4294901760
      %1592 = vmatpush1.xpose.msra.mxu0 %v1591
      %1593 = vmatprep.subr.mxu0 0.0
      %v1594 = vand.u32 %v1131, 4294901760
      %1595 = vmatpush1.xpose.msra.mxu0 %v1594
      %1596 = vmatprep.subr.mxu0 0.0
      %v1597 = vand.u32 %v1134, 4294901760
      %1598 = vmatpush1.xpose.msra.mxu0 %v1597
      %1599 = vmatprep.subr.mxu0 0.0
      %v1600 = vand.u32 %v1137, 4294901760
      %1601 = vmatpush1.xpose.msra.mxu0 %v1600
      %1602 = vmatprep.subr.mxu0 0.0
      %v1603 = vand.u32 %v1140, 4294901760
      %1604 = vmatpush1.xpose.msra.mxu0 %v1603
      %1605 = vmatprep.subr.mxu0 0.0
      %v1606 = vand.u32 %v1143, 4294901760
      %1607 = vmatpush1.xpose.msra.mxu0 %v1606
      %1608 = vmatprep.subr.mxu0 0.0
      %v1609 = vand.u32 %v1146, 4294901760
      %1610 = vmatpush1.xpose.msra.mxu0 %v1609
      %1611 = vmatprep.subr.mxu0 0.0
      %v1612 = vand.u32 %v1149, 4294901760
      %1613 = vmatpush1.xpose.msra.mxu0 %v1612
      %1614 = vmatprep.subr.mxu0 0.0
      %v1615 = vand.u32 %v1152, 4294901760
      %1616 = vmatpush1.xpose.msra.mxu0 %v1615
      %1617 = vmatprep.subr.mxu0 0.0
      %v1618 = vand.u32 %v1155, 4294901760
      %1619 = vmatpush1.xpose.msra.mxu0 %v1618
      %1620 = vmatprep.subr.mxu0 0.0
      %v1621 = vand.u32 %v1158, 4294901760
      %1622 = vmatpush1.xpose.msra.mxu0 %v1621
      %1623 = vmatprep.subr.mxu0 0.0
      %v1624 = vand.u32 %v1161, 4294901760
      %1625 = vmatpush1.xpose.msra.mxu0 %v1624
      %1626 = vmatprep.subr.mxu0 0.0
      %v1627 = vand.u32 %v1164, 4294901760
      %1628 = vmatpush1.xpose.msra.mxu0 %v1627
      %1629 = vmatprep.subr.mxu0 0.0
      %v1630 = vand.u32 %v1167, 4294901760
      %1631 = vmatpush1.xpose.msra.mxu0 %v1630
      %1632 = vmatprep.subr.mxu0 0.0
      %v1633 = vand.u32 %v1170, 4294901760
      %1634 = vmatpush1.xpose.msra.mxu0 %v1633
      %1635 = vmatprep.subr.mxu0 0.0
      %v1636 = vand.u32 %v1173, 4294901760
      %1637 = vmatpush1.xpose.msra.mxu0 %v1636
      %1638 = vmatprep.subr.mxu0 0.0
      %v1639 = vand.u32 %v1176, 4294901760
      %1640 = vmatpush1.xpose.msra.mxu0 %v1639
      %1641 = vmatprep.subr.mxu0 0.0
      %v1642 = vand.u32 %v1179, 4294901760
      %1643 = vmatpush1.xpose.msra.mxu0 %v1642
      %1644 = vmatprep.subr.mxu0 0.0
      %v1645 = vand.u32 %v1182, 4294901760
      %1646 = vmatpush1.xpose.msra.mxu0 %v1645
      %1647 = vmatprep.subr.mxu0 0.0
      %v1648 = vand.u32 %v1185, 4294901760
      %1649 = vmatpush1.xpose.msra.mxu0 %v1648
      %1650 = vmatprep.subr.mxu0 0.0
      %v1651 = vand.u32 %v1188, 4294901760
      %1652 = vmatpush1.xpose.msra.mxu0 %v1651
      %1653 = vmatprep.subr.mxu0 0.0
      %1654 = vmatpush1.xpose.msra.mxu0 0.0
      %1655 = vmatprep.subr.mxu0 0.0
      %1656 = vmatpush1.xpose.msra.mxu0 0.0
      %1657 = vmatprep.subr.mxu0 0.0
      %1658 = vmatpush1.xpose.msra.mxu0 0.0
      %1659 = vmatprep.subr.mxu0 0.0
      %1660 = vmatpush1.xpose.msra.mxu0 0.0
      %1661 = vmatprep.subr.mxu0 0.0
      %1662 = vmatpush1.xpose.msra.mxu0 0.0
      %1663 = vmatprep.subr.mxu0 0.0
      %1664 = vmatpush1.xpose.msra.mxu0 0.0
      %1665 = vmatprep.subr.mxu0 0.0
      %1666 = vmatpush1.xpose.msra.mxu0 0.0
      %1667 = vmatprep.subr.mxu0 0.0
      %1668 = vmatpush1.xpose.msra.mxu0 0.0
      %1669 = vmatprep.subr.mxu0 0.0
      %1670 = vmatpush1.xpose.msra.mxu0 0.0
      %1671 = vmatprep.subr.mxu0 0.0
      %1672 = vmatpush1.xpose.msra.mxu0 0.0
      %1673 = vmatprep.mubr.f32.mxu0 0.0
      %v1674 = vand.u32 %v1122, 4294901760
      %v1675 = vsub.f32 %v1122, %v1674
      %v1676 = vand.u32 %v1675, 4294901760
      %1677 = vmatmul.mubr.f32.gmra.mrb[0].mxu0 %v1676
      %v1678 = vpop.f32.mrb[0].mxu0
      %v1679 = vadd.f32 %v1583, %v1678
      %v1680 = vpop.f32.mrb[0].mxu0
      %v1681 = vadd.f32 %v1585, %v1680
      %1682 = vdwg.mxu0
      %1683 = vmatprep.subr.mxu0 0.0
      %v1684 = vand.u32 %v1125, 4294901760
      %v1685 = vsub.f32 %v1125, %v1684
      %v1686 = vand.u32 %v1685, 4294901760
      %1687 = vmatpush1.xpose.msra.mxu0 %v1686
      %1688 = vmatprep.subr.mxu0 0.0
      %v1689 = vand.u32 %v1128, 4294901760
      %v1690 = vsub.f32 %v1128, %v1689
      %v1691 = vand.u32 %v1690, 4294901760
      %1692 = vmatpush1.xpose.msra.mxu0 %v1691
      %1693 = vmatprep.subr.mxu0 0.0
      %v1694 = vand.u32 %v1131, 4294901760
      %v1695 = vsub.f32 %v1131, %v1694
      %v1696 = vand.u32 %v1695, 4294901760
      %1697 = vmatpush1.xpose.msra.mxu0 %v1696
      %1698 = vmatprep.subr.mxu0 0.0
      %v1699 = vand.u32 %v1134, 4294901760
      %v1700 = vsub.f32 %v1134, %v1699
      %v1701 = vand.u32 %v1700, 4294901760
      %1702 = vmatpush1.xpose.msra.mxu0 %v1701
      %1703 = vmatprep.subr.mxu0 0.0
      %v1704 = vand.u32 %v1137, 4294901760
      %v1705 = vsub.f32 %v1137, %v1704
      %v1706 = vand.u32 %v1705, 4294901760
      %1707 = vmatpush1.xpose.msra.mxu0 %v1706
      %1708 = vmatprep.subr.mxu0 0.0
      %v1709 = vand.u32 %v1140, 4294901760
      %v1710 = vsub.f32 %v1140, %v1709
      %v1711 = vand.u32 %v1710, 4294901760
      %1712 = vmatpush1.xpose.msra.mxu0 %v1711
      %1713 = vmatprep.subr.mxu0 0.0
      %v1714 = vand.u32 %v1143, 4294901760
      %v1715 = vsub.f32 %v1143, %v1714
      %v1716 = vand.u32 %v1715, 4294901760
      %1717 = vmatpush1.xpose.msra.mxu0 %v1716
      %1718 = vmatprep.subr.mxu0 0.0
      %v1719 = vand.u32 %v1146, 4294901760
      %v1720 = vsub.f32 %v1146, %v1719
      %v1721 = vand.u32 %v1720, 4294901760
      %1722 = vmatpush1.xpose.msra.mxu0 %v1721
      %1723 = vmatprep.subr.mxu0 0.0
      %v1724 = vand.u32 %v1149, 4294901760
      %v1725 = vsub.f32 %v1149, %v1724
      %v1726 = vand.u32 %v1725, 4294901760
      %1727 = vmatpush1.xpose.msra.mxu0 %v1726
      %1728 = vmatprep.subr.mxu0 0.0
      %v1729 = vand.u32 %v1152, 4294901760
      %v1730 = vsub.f32 %v1152, %v1729
      %v1731 = vand.u32 %v1730, 4294901760
      %1732 = vmatpush1.xpose.msra.mxu0 %v1731
      %1733 = vmatprep.subr.mxu0 0.0
      %v1734 = vand.u32 %v1155, 4294901760
      %v1735 = vsub.f32 %v1155, %v1734
      %v1736 = vand.u32 %v1735, 4294901760
      %1737 = vmatpush1.xpose.msra.mxu0 %v1736
      %1738 = vmatprep.subr.mxu0 0.0
      %v1739 = vand.u32 %v1158, 4294901760
      %v1740 = vsub.f32 %v1158, %v1739
      %v1741 = vand.u32 %v1740, 4294901760
      %1742 = vmatpush1.xpose.msra.mxu0 %v1741
      %1743 = vmatprep.subr.mxu0 0.0
      %v1744 = vand.u32 %v1161, 4294901760
      %v1745 = vsub.f32 %v1161, %v1744
      %v1746 = vand.u32 %v1745, 4294901760
      %1747 = vmatpush1.xpose.msra.mxu0 %v1746
      %1748 = vmatprep.subr.mxu0 0.0
      %v1749 = vand.u32 %v1164, 4294901760
      %v1750 = vsub.f32 %v1164, %v1749
      %v1751 = vand.u32 %v1750, 4294901760
      %1752 = vmatpush1.xpose.msra.mxu0 %v1751
      %1753 = vmatprep.subr.mxu0 0.0
      %v1754 = vand.u32 %v1167, 4294901760
      %v1755 = vsub.f32 %v1167, %v1754
      %v1756 = vand.u32 %v1755, 4294901760
      %1757 = vmatpush1.xpose.msra.mxu0 %v1756
      %1758 = vmatprep.subr.mxu0 0.0
      %v1759 = vand.u32 %v1170, 4294901760
      %v1760 = vsub.f32 %v1170, %v1759
      %v1761 = vand.u32 %v1760, 4294901760
      %1762 = vmatpush1.xpose.msra.mxu0 %v1761
      %1763 = vmatprep.subr.mxu0 0.0
      %v1764 = vand.u32 %v1173, 4294901760
      %v1765 = vsub.f32 %v1173, %v1764
      %v1766 = vand.u32 %v1765, 4294901760
      %1767 = vmatpush1.xpose.msra.mxu0 %v1766
      %1768 = vmatprep.subr.mxu0 0.0
      %v1769 = vand.u32 %v1176, 4294901760
      %v1770 = vsub.f32 %v1176, %v1769
      %v1771 = vand.u32 %v1770, 4294901760
      %1772 = vmatpush1.xpose.msra.mxu0 %v1771
      %1773 = vmatprep.subr.mxu0 0.0
      %v1774 = vand.u32 %v1179, 4294901760
      %v1775 = vsub.f32 %v1179, %v1774
      %v1776 = vand.u32 %v1775, 4294901760
      %1777 = vmatpush1.xpose.msra.mxu0 %v1776
      %1778 = vmatprep.subr.mxu0 0.0
      %v1779 = vand.u32 %v1182, 4294901760
      %v1780 = vsub.f32 %v1182, %v1779
      %v1781 = vand.u32 %v1780, 4294901760
      %1782 = vmatpush1.xpose.msra.mxu0 %v1781
      %1783 = vmatprep.subr.mxu0 0.0
      %v1784 = vand.u32 %v1185, 4294901760
      %v1785 = vsub.f32 %v1185, %v1784
      %v1786 = vand.u32 %v1785, 4294901760
      %1787 = vmatpush1.xpose.msra.mxu0 %v1786
      %1788 = vmatprep.subr.mxu0 0.0
      %v1789 = vand.u32 %v1188, 4294901760
      %v1790 = vsub.f32 %v1188, %v1789
      %v1791 = vand.u32 %v1790, 4294901760
      %1792 = vmatpush1.xpose.msra.mxu0 %v1791
      %1793 = vmatprep.subr.mxu0 0.0
      %1794 = vmatpush1.xpose.msra.mxu0 0.0
      %1795 = vmatprep.subr.mxu0 0.0
      %1796 = vmatpush1.xpose.msra.mxu0 0.0
      %1797 = vmatprep.subr.mxu0 0.0
      %1798 = vmatpush1.xpose.msra.mxu0 0.0
      %1799 = vmatprep.subr.mxu0 0.0
      %1800 = vmatpush1.xpose.msra.mxu0 0.0
      %1801 = vmatprep.subr.mxu0 0.0
      %1802 = vmatpush1.xpose.msra.mxu0 0.0
      %1803 = vmatprep.subr.mxu0 0.0
      %1804 = vmatpush1.xpose.msra.mxu0 0.0
      %1805 = vmatprep.subr.mxu0 0.0
      %1806 = vmatpush1.xpose.msra.mxu0 0.0
      %1807 = vmatprep.subr.mxu0 0.0
      %1808 = vmatpush1.xpose.msra.mxu0 0.0
      %1809 = vmatprep.subr.mxu0 0.0
      %1810 = vmatpush1.xpose.msra.mxu0 0.0
      %1811 = vmatprep.subr.mxu0 0.0
      %1812 = vmatpush1.xpose.msra.mxu0 0.0
      %1813 = vmatprep.mubr.f32.mxu0 0.0
      %v1814 = vand.u32 %v1122, 4294901760
      %1815 = vmatmul.mubr.f32.gmra.mrb[0].mxu0 %v1814
      %v1816 = vpop.f32.mrb[0].mxu0
      %v1817 = vadd.f32 %v1679, %v1816
      %v1818 = vpop.f32.mrb[0].mxu0
      %v1819 = vadd.f32 %v1681, %v1818
      %1820 = vdwg.mxu0
      %1821 = vmatprep.subr.mxu0 0.0
      %v1822 = vand.u32 %v1125, 4294901760
      %1823 = vmatpush1.xpose.msra.mxu0 %v1822
      %1824 = vmatprep.subr.mxu0 0.0
      %v1825 = vand.u32 %v1128, 4294901760
      %1826 = vmatpush1.xpose.msra.mxu0 %v1825
      %1827 = vmatprep.subr.mxu0 0.0
      %v1828 = vand.u32 %v1131, 4294901760
      %1829 = vmatpush1.xpose.msra.mxu0 %v1828
      %1830 = vmatprep.subr.mxu0 0.0
      %v1831 = vand.u32 %v1134, 4294901760
      %1832 = vmatpush1.xpose.msra.mxu0 %v1831
      %1833 = vmatprep.subr.mxu0 0.0
      %v1834 = vand.u32 %v1137, 4294901760
      %1835 = vmatpush1.xpose.msra.mxu0 %v1834
      %1836 = vmatprep.subr.mxu0 0.0
      %v1837 = vand.u32 %v1140, 4294901760
      %1838 = vmatpush1.xpose.msra.mxu0 %v1837
      %1839 = vmatprep.subr.mxu0 0.0
      %v1840 = vand.u32 %v1143, 4294901760
      %1841 = vmatpush1.xpose.msra.mxu0 %v1840
      %1842 = vmatprep.subr.mxu0 0.0
      %v1843 = vand.u32 %v1146, 4294901760
      %1844 = vmatpush1.xpose.msra.mxu0 %v1843
      %1845 = vmatprep.subr.mxu0 0.0
      %v1846 = vand.u32 %v1149, 4294901760
      %1847 = vmatpush1.xpose.msra.mxu0 %v1846
      %1848 = vmatprep.subr.mxu0 0.0
      %v1849 = vand.u32 %v1152, 4294901760
      %1850 = vmatpush1.xpose.msra.mxu0 %v1849
      %1851 = vmatprep.subr.mxu0 0.0
      %v1852 = vand.u32 %v1155, 4294901760
      %1853 = vmatpush1.xpose.msra.mxu0 %v1852
      %1854 = vmatprep.subr.mxu0 0.0
      %v1855 = vand.u32 %v1158, 4294901760
      %1856 = vmatpush1.xpose.msra.mxu0 %v1855
      %1857 = vmatprep.subr.mxu0 0.0
      %v1858 = vand.u32 %v1161, 4294901760
      %1859 = vmatpush1.xpose.msra.mxu0 %v1858
      %1860 = vmatprep.subr.mxu0 0.0
      %v1861 = vand.u32 %v1164, 4294901760
      %1862 = vmatpush1.xpose.msra.mxu0 %v1861
      %1863 = vmatprep.subr.mxu0 0.0
      %v1864 = vand.u32 %v1167, 4294901760
      %1865 = vmatpush1.xpose.msra.mxu0 %v1864
      %1866 = vmatprep.subr.mxu0 0.0
      %v1867 = vand.u32 %v1170, 4294901760
      %1868 = vmatpush1.xpose.msra.mxu0 %v1867
      %1869 = vmatprep.subr.mxu0 0.0
      %v1870 = vand.u32 %v1173, 4294901760
      %1871 = vmatpush1.xpose.msra.mxu0 %v1870
      %1872 = vmatprep.subr.mxu0 0.0
      %v1873 = vand.u32 %v1176, 4294901760
      %1874 = vmatpush1.xpose.msra.mxu0 %v1873
      %1875 = vmatprep.subr.mxu0 0.0
      %v1876 = vand.u32 %v1179, 4294901760
      %1877 = vmatpush1.xpose.msra.mxu0 %v1876
      %1878 = vmatprep.subr.mxu0 0.0
      %v1879 = vand.u32 %v1182, 4294901760
      %1880 = vmatpush1.xpose.msra.mxu0 %v1879
      %1881 = vmatprep.subr.mxu0 0.0
      %v1882 = vand.u32 %v1185, 4294901760
      %1883 = vmatpush1.xpose.msra.mxu0 %v1882
      %1884 = vmatprep.subr.mxu0 0.0
      %v1885 = vand.u32 %v1188, 4294901760
      %1886 = vmatpush1.xpose.msra.mxu0 %v1885
      %1887 = vmatprep.subr.mxu0 0.0
      %1888 = vmatpush1.xpose.msra.mxu0 0.0
      %1889 = vmatprep.subr.mxu0 0.0
      %1890 = vmatpush1.xpose.msra.mxu0 0.0
      %1891 = vmatprep.subr.mxu0 0.0
      %1892 = vmatpush1.xpose.msra.mxu0 0.0
      %1893 = vmatprep.subr.mxu0 0.0
      %1894 = vmatpush1.xpose.msra.mxu0 0.0
      %1895 = vmatprep.subr.mxu0 0.0
      %1896 = vmatpush1.xpose.msra.mxu0 0.0
      %1897 = vmatprep.subr.mxu0 0.0
      %1898 = vmatpush1.xpose.msra.mxu0 0.0
      %1899 = vmatprep.subr.mxu0 0.0
      %1900 = vmatpush1.xpose.msra.mxu0 0.0
      %1901 = vmatprep.subr.mxu0 0.0
      %1902 = vmatpush1.xpose.msra.mxu0 0.0
      %1903 = vmatprep.subr.mxu0 0.0
      %1904 = vmatpush1.xpose.msra.mxu0 0.0
      %1905 = vmatprep.subr.mxu0 0.0
      %1906 = vmatpush1.xpose.msra.mxu0 0.0
      %1907 = vmatprep.mubr.f32.mxu0 0.0
      %v1908 = vand.u32 %v1122, 4294901760
      %1909 = vmatmul.mubr.f32.gmra.mrb[0].mxu0 %v1908
      %v1910 = vpop.f32.mrb[0].mxu0
      %v1911 = vadd.f32 %v1817, %v1910
      %v1912 = vpop.f32.mrb[0].mxu0
      %v1913 = vadd.f32 %v1819, %v1912
      %1914 = vdwg.mxu0
      %v1915 = vld [vmem:[#allocation2] sm:$0x3]
      %v1918 = vcombine.low %v1911, %v1913
      %v1920 = vunpack.c.l.s4 1966171168
      %v1921 = vunpack.c.0.s8 %v1920
      %v1922 = vlaneseq
      %v1923 = vshrl.u32 %v1922, 7
      %v1924 = vsub.s32 %v1921, %v1923
      %v1925 = vrot.slane %v1918, %v1924
      %v1927 = vunpack.c.l.s4 1966171168
      %v1928 = vunpack.c.0.s8 %v1927
      %v1929 = vlaneseq
      %v1930 = vshrl.u32 %v1929, 7
      %v1931 = vsub.s32 %v1928, %v1930
      %v1932 = vrot.slane %v1925, %v1931
      %v1934 = vadd.f32 %v1915, %v1932
      %1935 = vst.msk [vmem:[#allocation2] sm:$0x3] %vm1006, %v1934
      %v1936 = vld [vmem:[#allocation2] sm:$0x3]
      %v1937 = vcombine.high %v1925, %v1925
      %v1939 = vunpack.c.l.s4 1966171168
      %v1940 = vunpack.c.0.s8 %v1939
      %v1941 = vlaneseq
      %v1942 = vshrl.u32 %v1941, 7
      %v1943 = vsub.s32 %v1940, %v1942
      %v1944 = vrot.slane %v1937, %v1943
      %1945 = vrot.lane.b32.xlu0 %v1944, 127
      %v1946 = vpop.permute.xlu0 %1945
      %v1947 = vrot.slane %v1946, 1
      %v1948 = vsel %vm1020, %v1946, %v1947
      %v1950 = vadd.f32 %v1936, %v1948
      %1951 = vst.msk [vmem:[#allocation2] sm:$0x3] %vm1025, %v1950
      %v1952 = vld [vmem:[#allocation2] sm:$0x3]
      %v1953 = vcombine.high %v1932, %v1932
      %1954 = vrot.lane.b32.xlu0 %v1953, 126
      %v1955 = vpop.permute.xlu0 %1954
      %v1956 = vrot.slane %v1955, 1
      %v1957 = vsel %vm1032, %v1955, %v1956
      %v1959 = vadd.f32 %v1952, %v1957
      %1960 = vst.msk [vmem:[#allocation2] sm:$0x3] %vm1037, %v1959
      %v1961 = vld [vmem:[#allocation2] sm:$0x3]
      %v1962 = vcombine.high %v1944, %v1944
      %1963 = vrot.lane.b32.xlu0 %v1962, 125
      %v1964 = vpop.permute.xlu0 %1963
      %v1965 = vrot.slane %v1964, 1
      %v1966 = vsel %vm1044, %v1964, %v1965
      %v1968 = vadd.f32 %v1961, %v1966
      %1969 = vst.msk [vmem:[#allocation2] sm:$0x3] %vm1049, %v1968
      %v1970 = vld [vmem:[#allocation2] sm:$0x3]
      %v1971 = vcombine.high %v1911, %v1913
      %v1973 = vunpack.c.l.s4 1966171168
      %v1974 = vunpack.c.0.s8 %v1973
      %v1975 = vlaneseq
      %v1976 = vshrl.u32 %v1975, 7
      %v1977 = vsub.s32 %v1974, %v1976
      %v1978 = vrot.slane %v1971, %v1977
      %v1980 = vunpack.c.l.s4 1966171168
      %v1981 = vunpack.c.0.s8 %v1980
      %v1982 = vlaneseq
      %v1983 = vshrl.u32 %v1982, 7
      %v1984 = vsub.s32 %v1981, %v1983
      %v1985 = vrot.slane %v1978, %v1984
      %1986 = vrot.lane.b32.xlu0 %v1985, 124
      %v1987 = vpop.permute.xlu0 %1986
      %v1988 = vrot.slane %v1987, 1
      %v1989 = vsel %vm1070, %v1987, %v1988
      %v1991 = vadd.f32 %v1970, %v1989
      %1992 = vst.msk [vmem:[#allocation2] sm:$0x3] %vm1075, %v1991
      %v1993 = vld [vmem:[#allocation2] sm:$0x3]
      %v1994 = vcombine.high %v1978, %v1978
      %v1996 = vunpack.c.l.s4 1966171168
      %v1997 = vunpack.c.0.s8 %v1996
      %v1998 = vlaneseq
      %v1999 = vshrl.u32 %v1998, 7
      %v2000 = vsub.s32 %v1997, %v1999
      %v2001 = vrot.slane %v1994, %v2000
      %2002 = vrot.lane.b32.xlu0 %v2001, 123
      %v2003 = vpop.permute.xlu0 %2002
      %v2004 = vrot.slane %v2003, 1
      %v2005 = vsel %vm1089, %v2003, %v2004
      %v2007 = vadd.f32 %v1993, %v2005
      %2008 = vst.msk [vmem:[#allocation2] sm:$0x3] %vm1094, %v2007
      %s2009 = scalar_lea.vmem %s157, 32
      %v2010 = vld [vmem:[%s2009] sm:$0xff]
      %v2011 = vld [vmem:[%s2009 + $0x8] sm:$0xff]
      %v2012 = vld [vmem:[%s2009 + $0x10] sm:$0xff]
      %v2013 = vld [vmem:[%s2009 + $0x18] sm:$0xff]
      %v2014 = vld [vmem:[%s2009 + $0x20] sm:$0xff]
      %v2015 = vld [vmem:[%s2009 + $0x28] sm:$0xff]
      %v2016 = vld [vmem:[%s2009 + $0x30] sm:$0xff]
      %v2017 = vld [vmem:[%s2009 + $0x38] sm:$0xff]
      %v2018 = vld [vmem:[%s2009 + $0x40] sm:$0xff]
      %v2019 = vld [vmem:[%s2009 + $0x48] sm:$0xff]
      %v2020 = vld [vmem:[%s2009 + $0x50] sm:$0xff]
      %v2021 = vld [vmem:[%s2009 + $0x58] sm:$0xff]
      %v2022 = vld [vmem:[%s2009 + $0x60] sm:$0xff]
      %v2023 = vld [vmem:[%s2009 + $0x68] sm:$0xff]
      %v2024 = vld [vmem:[%s2009 + $0x70] sm:$0xff]
      %v2025 = vld [vmem:[%s2009 + $0x78] sm:$0xff]
      %v2026 = vld [vmem:[%s2009 + $0x80] sm:$0xff]
      %v2027 = vld [vmem:[%s2009 + $0x88] sm:$0xff]
      %v2028 = vld [vmem:[%s2009 + $0x90] sm:$0xff]
      %v2029 = vld [vmem:[%s2009 + $0x98] sm:$0xff]
      %v2030 = vld [vmem:[%s2009 + $0xa0] sm:$0xff]
      %v2031 = vld [vmem:[%s2009 + $0xa8] sm:$0xff]
      %s2032 = scalar_lea.vmem %s152, 16
      %v2033 = vld [vmem:[%s2032] sm:$0x3f]
      %v2035 = vsel %vm190, %v2033, 0
      %v2038 = vsel %vm190, %v2010, 0
      %v2041 = vsel %vm190, %v2011, 0
      %v2044 = vsel %vm190, %v2012, 0
      %v2047 = vsel %vm190, %v2013, 0
      %v2050 = vsel %vm190, %v2014, 0
      %v2053 = vsel %vm190, %v2015, 0
      %v2056 = vsel %vm190, %v2016, 0
      %v2059 = vsel %vm190, %v2017, 0
      %v2062 = vsel %vm190, %v2018, 0
      %v2065 = vsel %vm190, %v2019, 0
      %v2068 = vsel %vm190, %v2020, 0
      %v2071 = vsel %vm190, %v2021, 0
      %v2074 = vsel %vm190, %v2022, 0
      %v2077 = vsel %vm190, %v2023, 0
      %v2080 = vsel %vm190, %v2024, 0
      %v2083 = vsel %vm190, %v2025, 0
      %v2086 = vsel %vm190, %v2026, 0
      %v2089 = vsel %vm190, %v2027, 0
      %v2092 = vsel %vm190, %v2028, 0
      %v2095 = vsel %vm190, %v2029, 0
      %v2098 = vsel %vm190, %v2030, 0
      %v2101 = vsel %vm190, %v2031, 0
      %2103 = vmatprep.subr.mxu0 0.0
      %v2104 = vand.u32 %v2038, 4294901760
      %2105 = vmatpush1.xpose.msra.mxu0 %v2104
      %2106 = vmatprep.subr.mxu0 0.0
      %v2107 = vand.u32 %v2041, 4294901760
      %2108 = vmatpush1.xpose.msra.mxu0 %v2107
      %2109 = vmatprep.subr.mxu0 0.0
      %v2110 = vand.u32 %v2044, 4294901760
      %2111 = vmatpush1.xpose.msra.mxu0 %v2110
      %2112 = vmatprep.subr.mxu0 0.0
      %v2113 = vand.u32 %v2047, 4294901760
      %2114 = vmatpush1.xpose.msra.mxu0 %v2113
      %2115 = vmatprep.subr.mxu0 0.0
      %v2116 = vand.u32 %v2050, 4294901760
      %2117 = vmatpush1.xpose.msra.mxu0 %v2116
      %2118 = vmatprep.subr.mxu0 0.0
      %v2119 = vand.u32 %v2053, 4294901760
      %2120 = vmatpush1.xpose.msra.mxu0 %v2119
      %2121 = vmatprep.subr.mxu0 0.0
      %v2122 = vand.u32 %v2056, 4294901760
      %2123 = vmatpush1.xpose.msra.mxu0 %v2122
      %2124 = vmatprep.subr.mxu0 0.0
      %v2125 = vand.u32 %v2059, 4294901760
      %2126 = vmatpush1.xpose.msra.mxu0 %v2125
      %2127 = vmatprep.subr.mxu0 0.0
      %v2128 = vand.u32 %v2062, 4294901760
      %2129 = vmatpush1.xpose.msra.mxu0 %v2128
      %2130 = vmatprep.subr.mxu0 0.0
      %v2131 = vand.u32 %v2065, 4294901760
      %2132 = vmatpush1.xpose.msra.mxu0 %v2131
      %2133 = vmatprep.subr.mxu0 0.0
      %v2134 = vand.u32 %v2068, 4294901760
      %2135 = vmatpush1.xpose.msra.mxu0 %v2134
      %2136 = vmatprep.subr.mxu0 0.0
      %v2137 = vand.u32 %v2071, 4294901760
      %2138 = vmatpush1.xpose.msra.mxu0 %v2137
      %2139 = vmatprep.subr.mxu0 0.0
      %v2140 = vand.u32 %v2074, 4294901760
      %2141 = vmatpush1.xpose.msra.mxu0 %v2140
      %2142 = vmatprep.subr.mxu0 0.0
      %v2143 = vand.u32 %v2077, 4294901760
      %2144 = vmatpush1.xpose.msra.mxu0 %v2143
      %2145 = vmatprep.subr.mxu0 0.0
      %v2146 = vand.u32 %v2080, 4294901760
      %2147 = vmatpush1.xpose.msra.mxu0 %v2146
      %2148 = vmatprep.subr.mxu0 0.0
      %v2149 = vand.u32 %v2083, 4294901760
      %2150 = vmatpush1.xpose.msra.mxu0 %v2149
      %2151 = vmatprep.subr.mxu0 0.0
      %v2152 = vand.u32 %v2086, 4294901760
      %2153 = vmatpush1.xpose.msra.mxu0 %v2152
      %2154 = vmatprep.subr.mxu0 0.0
      %v2155 = vand.u32 %v2089, 4294901760
      %2156 = vmatpush1.xpose.msra.mxu0 %v2155
      %2157 = vmatprep.subr.mxu0 0.0
      %v2158 = vand.u32 %v2092, 4294901760
      %2159 = vmatpush1.xpose.msra.mxu0 %v2158
      %2160 = vmatprep.subr.mxu0 0.0
      %v2161 = vand.u32 %v2095, 4294901760
      %2162 = vmatpush1.xpose.msra.mxu0 %v2161
      %2163 = vmatprep.subr.mxu0 0.0
      %v2164 = vand.u32 %v2098, 4294901760
      %2165 = vmatpush1.xpose.msra.mxu0 %v2164
      %2166 = vmatprep.subr.mxu0 0.0
      %v2167 = vand.u32 %v2101, 4294901760
      %2168 = vmatpush1.xpose.msra.mxu0 %v2167
      %2169 = vmatprep.subr.mxu0 0.0
      %2170 = vmatpush1.xpose.msra.mxu0 0.0
      %2171 = vmatprep.subr.mxu0 0.0
      %2172 = vmatpush1.xpose.msra.mxu0 0.0
      %2173 = vmatprep.subr.mxu0 0.0
      %2174 = vmatpush1.xpose.msra.mxu0 0.0
      %2175 = vmatprep.subr.mxu0 0.0
      %2176 = vmatpush1.xpose.msra.mxu0 0.0
      %2177 = vmatprep.subr.mxu0 0.0
      %2178 = vmatpush1.xpose.msra.mxu0 0.0
      %2179 = vmatprep.subr.mxu0 0.0
      %2180 = vmatpush1.xpose.msra.mxu0 0.0
      %2181 = vmatprep.subr.mxu0 0.0
      %2182 = vmatpush1.xpose.msra.mxu0 0.0
      %2183 = vmatprep.subr.mxu0 0.0
      %2184 = vmatpush1.xpose.msra.mxu0 0.0
      %2185 = vmatprep.subr.mxu0 0.0
      %2186 = vmatpush1.xpose.msra.mxu0 0.0
      %2187 = vmatprep.subr.mxu0 0.0
      %2188 = vmatpush1.xpose.msra.mxu0 0.0
      %2189 = vmatprep.mubr.f32.mxu0 0.0
      %v2190 = vand.u32 %v2035, 4294901760
      %v2191 = vsub.f32 %v2035, %v2190
      %v2192 = vand.u32 %v2191, 4294901760
      %v2193 = vsub.f32 %v2191, %v2192
      %v2194 = vand.u32 %v2193, 4294901760
      %2195 = vmatmul.mubr.f32.gmra.mrb[0].mxu0 %v2194
      %v2196 = vpop.f32.mrb[0].mxu0
      %v2197 = vadd.f32 0.0, %v2196
      %v2198 = vpop.f32.mrb[0].mxu0
      %v2199 = vadd.f32 0.0, %v2198
      %2200 = vdwg.mxu0
      %2201 = vmatprep.subr.mxu0 0.0
      %v2202 = vand.u32 %v2038, 4294901760
      %v2203 = vsub.f32 %v2038, %v2202
      %v2204 = vand.u32 %v2203, 4294901760
      %v2205 = vsub.f32 %v2203, %v2204
      %v2206 = vand.u32 %v2205, 4294901760
      %2207 = vmatpush1.xpose.msra.mxu0 %v2206
      %2208 = vmatprep.subr.mxu0 0.0
      %v2209 = vand.u32 %v2041, 4294901760
      %v2210 = vsub.f32 %v2041, %v2209
      %v2211 = vand.u32 %v2210, 4294901760
      %v2212 = vsub.f32 %v2210, %v2211
      %v2213 = vand.u32 %v2212, 4294901760
      %2214 = vmatpush1.xpose.msra.mxu0 %v2213
      %2215 = vmatprep.subr.mxu0 0.0
      %v2216 = vand.u32 %v2044, 4294901760
      %v2217 = vsub.f32 %v2044, %v2216
      %v2218 = vand.u32 %v2217, 4294901760
      %v2219 = vsub.f32 %v2217, %v2218
      %v2220 = vand.u32 %v2219, 4294901760
      %2221 = vmatpush1.xpose.msra.mxu0 %v2220
      %2222 = vmatprep.subr.mxu0 0.0
      %v2223 = vand.u32 %v2047, 4294901760
      %v2224 = vsub.f32 %v2047, %v2223
      %v2225 = vand.u32 %v2224, 4294901760
      %v2226 = vsub.f32 %v2224, %v2225
      %v2227 = vand.u32 %v2226, 4294901760
      %2228 = vmatpush1.xpose.msra.mxu0 %v2227
      %2229 = vmatprep.subr.mxu0 0.0
      %v2230 = vand.u32 %v2050, 4294901760
      %v2231 = vsub.f32 %v2050, %v2230
      %v2232 = vand.u32 %v2231, 4294901760
      %v2233 = vsub.f32 %v2231, %v2232
      %v2234 = vand.u32 %v2233, 4294901760
      %2235 = vmatpush1.xpose.msra.mxu0 %v2234
      %2236 = vmatprep.subr.mxu0 0.0
      %v2237 = vand.u32 %v2053, 4294901760
      %v2238 = vsub.f32 %v2053, %v2237
      %v2239 = vand.u32 %v2238, 4294901760
      %v2240 = vsub.f32 %v2238, %v2239
      %v2241 = vand.u32 %v2240, 4294901760
      %2242 = vmatpush1.xpose.msra.mxu0 %v2241
      %2243 = vmatprep.subr.mxu0 0.0
      %v2244 = vand.u32 %v2056, 4294901760
      %v2245 = vsub.f32 %v2056, %v2244
      %v2246 = vand.u32 %v2245, 4294901760
      %v2247 = vsub.f32 %v2245, %v2246
      %v2248 = vand.u32 %v2247, 4294901760
      %2249 = vmatpush1.xpose.msra.mxu0 %v2248
      %2250 = vmatprep.subr.mxu0 0.0
      %v2251 = vand.u32 %v2059, 4294901760
      %v2252 = vsub.f32 %v2059, %v2251
      %v2253 = vand.u32 %v2252, 4294901760
      %v2254 = vsub.f32 %v2252, %v2253
      %v2255 = vand.u32 %v2254, 4294901760
      %2256 = vmatpush1.xpose.msra.mxu0 %v2255
      %2257 = vmatprep.subr.mxu0 0.0
      %v2258 = vand.u32 %v2062, 4294901760
      %v2259 = vsub.f32 %v2062, %v2258
      %v2260 = vand.u32 %v2259, 4294901760
      %v2261 = vsub.f32 %v2259, %v2260
      %v2262 = vand.u32 %v2261, 4294901760
      %2263 = vmatpush1.xpose.msra.mxu0 %v2262
      %2264 = vmatprep.subr.mxu0 0.0
      %v2265 = vand.u32 %v2065, 4294901760
      %v2266 = vsub.f32 %v2065, %v2265
      %v2267 = vand.u32 %v2266, 4294901760
      %v2268 = vsub.f32 %v2266, %v2267
      %v2269 = vand.u32 %v2268, 4294901760
      %2270 = vmatpush1.xpose.msra.mxu0 %v2269
      %2271 = vmatprep.subr.mxu0 0.0
      %v2272 = vand.u32 %v2068, 4294901760
      %v2273 = vsub.f32 %v2068, %v2272
      %v2274 = vand.u32 %v2273, 4294901760
      %v2275 = vsub.f32 %v2273, %v2274
      %v2276 = vand.u32 %v2275, 4294901760
      %2277 = vmatpush1.xpose.msra.mxu0 %v2276
      %2278 = vmatprep.subr.mxu0 0.0
      %v2279 = vand.u32 %v2071, 4294901760
      %v2280 = vsub.f32 %v2071, %v2279
      %v2281 = vand.u32 %v2280, 4294901760
      %v2282 = vsub.f32 %v2280, %v2281
      %v2283 = vand.u32 %v2282, 4294901760
      %2284 = vmatpush1.xpose.msra.mxu0 %v2283
      %2285 = vmatprep.subr.mxu0 0.0
      %v2286 = vand.u32 %v2074, 4294901760
      %v2287 = vsub.f32 %v2074, %v2286
      %v2288 = vand.u32 %v2287, 4294901760
      %v2289 = vsub.f32 %v2287, %v2288
      %v2290 = vand.u32 %v2289, 4294901760
      %2291 = vmatpush1.xpose.msra.mxu0 %v2290
      %2292 = vmatprep.subr.mxu0 0.0
      %v2293 = vand.u32 %v2077, 4294901760
      %v2294 = vsub.f32 %v2077, %v2293
      %v2295 = vand.u32 %v2294, 4294901760
      %v2296 = vsub.f32 %v2294, %v2295
      %v2297 = vand.u32 %v2296, 4294901760
      %2298 = vmatpush1.xpose.msra.mxu0 %v2297
      %2299 = vmatprep.subr.mxu0 0.0
      %v2300 = vand.u32 %v2080, 4294901760
      %v2301 = vsub.f32 %v2080, %v2300
      %v2302 = vand.u32 %v2301, 4294901760
      %v2303 = vsub.f32 %v2301, %v2302
      %v2304 = vand.u32 %v2303, 4294901760
      %2305 = vmatpush1.xpose.msra.mxu0 %v2304
      %2306 = vmatprep.subr.mxu0 0.0
      %v2307 = vand.u32 %v2083, 4294901760
      %v2308 = vsub.f32 %v2083, %v2307
      %v2309 = vand.u32 %v2308, 4294901760
      %v2310 = vsub.f32 %v2308, %v2309
      %v2311 = vand.u32 %v2310, 4294901760
      %2312 = vmatpush1.xpose.msra.mxu0 %v2311
      %2313 = vmatprep.subr.mxu0 0.0
      %v2314 = vand.u32 %v2086, 4294901760
      %v2315 = vsub.f32 %v2086, %v2314
      %v2316 = vand.u32 %v2315, 4294901760
      %v2317 = vsub.f32 %v2315, %v2316
      %v2318 = vand.u32 %v2317, 4294901760
      %2319 = vmatpush1.xpose.msra.mxu0 %v2318
      %2320 = vmatprep.subr.mxu0 0.0
      %v2321 = vand.u32 %v2089, 4294901760
      %v2322 = vsub.f32 %v2089, %v2321
      %v2323 = vand.u32 %v2322, 4294901760
      %v2324 = vsub.f32 %v2322, %v2323
      %v2325 = vand.u32 %v2324, 4294901760
      %2326 = vmatpush1.xpose.msra.mxu0 %v2325
      %2327 = vmatprep.subr.mxu0 0.0
      %v2328 = vand.u32 %v2092, 4294901760
      %v2329 = vsub.f32 %v2092, %v2328
      %v2330 = vand.u32 %v2329, 4294901760
      %v2331 = vsub.f32 %v2329, %v2330
      %v2332 = vand.u32 %v2331, 4294901760
      %2333 = vmatpush1.xpose.msra.mxu0 %v2332
      %2334 = vmatprep.subr.mxu0 0.0
      %v2335 = vand.u32 %v2095, 4294901760
      %v2336 = vsub.f32 %v2095, %v2335
      %v2337 = vand.u32 %v2336, 4294901760
      %v2338 = vsub.f32 %v2336, %v2337
      %v2339 = vand.u32 %v2338, 4294901760
      %2340 = vmatpush1.xpose.msra.mxu0 %v2339
      %2341 = vmatprep.subr.mxu0 0.0
      %v2342 = vand.u32 %v2098, 4294901760
      %v2343 = vsub.f32 %v2098, %v2342
      %v2344 = vand.u32 %v2343, 4294901760
      %v2345 = vsub.f32 %v2343, %v2344
      %v2346 = vand.u32 %v2345, 4294901760
      %2347 = vmatpush1.xpose.msra.mxu0 %v2346
      %2348 = vmatprep.subr.mxu0 0.0
      %v2349 = vand.u32 %v2101, 4294901760
      %v2350 = vsub.f32 %v2101, %v2349
      %v2351 = vand.u32 %v2350, 4294901760
      %v2352 = vsub.f32 %v2350, %v2351
      %v2353 = vand.u32 %v2352, 4294901760
      %2354 = vmatpush1.xpose.msra.mxu0 %v2353
      %2355 = vmatprep.subr.mxu0 0.0
      %2356 = vmatpush1.xpose.msra.mxu0 0.0
      %2357 = vmatprep.subr.mxu0 0.0
      %2358 = vmatpush1.xpose.msra.mxu0 0.0
      %2359 = vmatprep.subr.mxu0 0.0
      %2360 = vmatpush1.xpose.msra.mxu0 0.0
      %2361 = vmatprep.subr.mxu0 0.0
      %2362 = vmatpush1.xpose.msra.mxu0 0.0
      %2363 = vmatprep.subr.mxu0 0.0
      %2364 = vmatpush1.xpose.msra.mxu0 0.0
      %2365 = vmatprep.subr.mxu0 0.0
      %2366 = vmatpush1.xpose.msra.mxu0 0.0
      %2367 = vmatprep.subr.mxu0 0.0
      %2368 = vmatpush1.xpose.msra.mxu0 0.0
      %2369 = vmatprep.subr.mxu0 0.0
      %2370 = vmatpush1.xpose.msra.mxu0 0.0
      %2371 = vmatprep.subr.mxu0 0.0
      %2372 = vmatpush1.xpose.msra.mxu0 0.0
      %2373 = vmatprep.subr.mxu0 0.0
      %2374 = vmatpush1.xpose.msra.mxu0 0.0
      %2375 = vmatprep.mubr.f32.mxu0 0.0
      %v2376 = vand.u32 %v2035, 4294901760
      %2377 = vmatmul.mubr.f32.gmra.mrb[0].mxu0 %v2376
      %v2378 = vpop.f32.mrb[0].mxu0
      %v2379 = vadd.f32 %v2197, %v2378
      %v2380 = vpop.f32.mrb[0].mxu0
      %v2381 = vadd.f32 %v2199, %v2380
      %2382 = vdwg.mxu0
      %2383 = vmatprep.subr.mxu0 0.0
      %v2384 = vand.u32 %v2038, 4294901760
      %v2385 = vsub.f32 %v2038, %v2384
      %2386 = vmatpush1.xpose.msra.mxu0 %v2385
      %2387 = vmatprep.subr.mxu0 0.0
      %v2388 = vand.u32 %v2041, 4294901760
      %v2389 = vsub.f32 %v2041, %v2388
      %2390 = vmatpush1.xpose.msra.mxu0 %v2389
      %2391 = vmatprep.subr.mxu0 0.0
      %v2392 = vand.u32 %v2044, 4294901760
      %v2393 = vsub.f32 %v2044, %v2392
      %2394 = vmatpush1.xpose.msra.mxu0 %v2393
      %2395 = vmatprep.subr.mxu0 0.0
      %v2396 = vand.u32 %v2047, 4294901760
      %v2397 = vsub.f32 %v2047, %v2396
      %2398 = vmatpush1.xpose.msra.mxu0 %v2397
      %2399 = vmatprep.subr.mxu0 0.0
      %v2400 = vand.u32 %v2050, 4294901760
      %v2401 = vsub.f32 %v2050, %v2400
      %2402 = vmatpush1.xpose.msra.mxu0 %v2401
      %2403 = vmatprep.subr.mxu0 0.0
      %v2404 = vand.u32 %v2053, 4294901760
      %v2405 = vsub.f32 %v2053, %v2404
      %2406 = vmatpush1.xpose.msra.mxu0 %v2405
      %2407 = vmatprep.subr.mxu0 0.0
      %v2408 = vand.u32 %v2056, 4294901760
      %v2409 = vsub.f32 %v2056, %v2408
      %2410 = vmatpush1.xpose.msra.mxu0 %v2409
      %2411 = vmatprep.subr.mxu0 0.0
      %v2412 = vand.u32 %v2059, 4294901760
      %v2413 = vsub.f32 %v2059, %v2412
      %2414 = vmatpush1.xpose.msra.mxu0 %v2413
      %2415 = vmatprep.subr.mxu0 0.0
      %v2416 = vand.u32 %v2062, 4294901760
      %v2417 = vsub.f32 %v2062, %v2416
      %2418 = vmatpush1.xpose.msra.mxu0 %v2417
      %2419 = vmatprep.subr.mxu0 0.0
      %v2420 = vand.u32 %v2065, 4294901760
      %v2421 = vsub.f32 %v2065, %v2420
      %2422 = vmatpush1.xpose.msra.mxu0 %v2421
      %2423 = vmatprep.subr.mxu0 0.0
      %v2424 = vand.u32 %v2068, 4294901760
      %v2425 = vsub.f32 %v2068, %v2424
      %2426 = vmatpush1.xpose.msra.mxu0 %v2425
      %2427 = vmatprep.subr.mxu0 0.0
      %v2428 = vand.u32 %v2071, 4294901760
      %v2429 = vsub.f32 %v2071, %v2428
      %2430 = vmatpush1.xpose.msra.mxu0 %v2429
      %2431 = vmatprep.subr.mxu0 0.0
      %v2432 = vand.u32 %v2074, 4294901760
      %v2433 = vsub.f32 %v2074, %v2432
      %2434 = vmatpush1.xpose.msra.mxu0 %v2433
      %2435 = vmatprep.subr.mxu0 0.0
      %v2436 = vand.u32 %v2077, 4294901760
      %v2437 = vsub.f32 %v2077, %v2436
      %2438 = vmatpush1.xpose.msra.mxu0 %v2437
      %2439 = vmatprep.subr.mxu0 0.0
      %v2440 = vand.u32 %v2080, 4294901760
      %v2441 = vsub.f32 %v2080, %v2440
      %2442 = vmatpush1.xpose.msra.mxu0 %v2441
      %2443 = vmatprep.subr.mxu0 0.0
      %v2444 = vand.u32 %v2083, 4294901760
      %v2445 = vsub.f32 %v2083, %v2444
      %2446 = vmatpush1.xpose.msra.mxu0 %v2445
      %2447 = vmatprep.subr.mxu0 0.0
      %v2448 = vand.u32 %v2086, 4294901760
      %v2449 = vsub.f32 %v2086, %v2448
      %2450 = vmatpush1.xpose.msra.mxu0 %v2449
      %2451 = vmatprep.subr.mxu0 0.0
      %v2452 = vand.u32 %v2089, 4294901760
      %v2453 = vsub.f32 %v2089, %v2452
      %2454 = vmatpush1.xpose.msra.mxu0 %v2453
      %2455 = vmatprep.subr.mxu0 0.0
      %v2456 = vand.u32 %v2092, 4294901760
      %v2457 = vsub.f32 %v2092, %v2456
      %2458 = vmatpush1.xpose.msra.mxu0 %v2457
      %2459 = vmatprep.subr.mxu0 0.0
      %v2460 = vand.u32 %v2095, 4294901760
      %v2461 = vsub.f32 %v2095, %v2460
      %2462 = vmatpush1.xpose.msra.mxu0 %v2461
      %2463 = vmatprep.subr.mxu0 0.0
      %v2464 = vand.u32 %v2098, 4294901760
      %v2465 = vsub.f32 %v2098, %v2464
      %2466 = vmatpush1.xpose.msra.mxu0 %v2465
      %2467 = vmatprep.subr.mxu0 0.0
      %v2468 = vand.u32 %v2101, 4294901760
      %v2469 = vsub.f32 %v2101, %v2468
      %2470 = vmatpush1.xpose.msra.mxu0 %v2469
      %2471 = vmatprep.subr.mxu0 0.0
      %2472 = vmatpush1.xpose.msra.mxu0 0.0
      %2473 = vmatprep.subr.mxu0 0.0
      %2474 = vmatpush1.xpose.msra.mxu0 0.0
      %2475 = vmatprep.subr.mxu0 0.0
      %2476 = vmatpush1.xpose.msra.mxu0 0.0
      %2477 = vmatprep.subr.mxu0 0.0
      %2478 = vmatpush1.xpose.msra.mxu0 0.0
      %2479 = vmatprep.subr.mxu0 0.0
      %2480 = vmatpush1.xpose.msra.mxu0 0.0
      %2481 = vmatprep.subr.mxu0 0.0
      %2482 = vmatpush1.xpose.msra.mxu0 0.0
      %2483 = vmatprep.subr.mxu0 0.0
      %2484 = vmatpush1.xpose.msra.mxu0 0.0
      %2485 = vmatprep.subr.mxu0 0.0
      %2486 = vmatpush1.xpose.msra.mxu0 0.0
      %2487 = vmatprep.subr.mxu0 0.0
      %2488 = vmatpush1.xpose.msra.mxu0 0.0
      %2489 = vmatprep.subr.mxu0 0.0
      %2490 = vmatpush1.xpose.msra.mxu0 0.0
      %2491 = vmatprep.mubr.f32.mxu0 0.0
      %v2492 = vand.u32 %v2035, 4294901760
      %v2493 = vsub.f32 %v2035, %v2492
      %2494 = vmatmul.mubr.f32.gmra.mrb[0].mxu0 %v2493
      %v2495 = vpop.f32.mrb[0].mxu0
      %v2496 = vadd.f32 %v2379, %v2495
      %v2497 = vpop.f32.mrb[0].mxu0
      %v2498 = vadd.f32 %v2381, %v2497
      %2499 = vdwg.mxu0
      %2500 = vmatprep.subr.mxu0 0.0
      %v2501 = vand.u32 %v2038, 4294901760
      %2502 = vmatpush1.xpose.msra.mxu0 %v2501
      %2503 = vmatprep.subr.mxu0 0.0
      %v2504 = vand.u32 %v2041, 4294901760
      %2505 = vmatpush1.xpose.msra.mxu0 %v2504
      %2506 = vmatprep.subr.mxu0 0.0
      %v2507 = vand.u32 %v2044, 4294901760
      %2508 = vmatpush1.xpose.msra.mxu0 %v2507
      %2509 = vmatprep.subr.mxu0 0.0
      %v2510 = vand.u32 %v2047, 4294901760
      %2511 = vmatpush1.xpose.msra.mxu0 %v2510
      %2512 = vmatprep.subr.mxu0 0.0
      %v2513 = vand.u32 %v2050, 4294901760
      %2514 = vmatpush1.xpose.msra.mxu0 %v2513
      %2515 = vmatprep.subr.mxu0 0.0
      %v2516 = vand.u32 %v2053, 4294901760
      %2517 = vmatpush1.xpose.msra.mxu0 %v2516
      %2518 = vmatprep.subr.mxu0 0.0
      %v2519 = vand.u32 %v2056, 4294901760
      %2520 = vmatpush1.xpose.msra.mxu0 %v2519
      %2521 = vmatprep.subr.mxu0 0.0
      %v2522 = vand.u32 %v2059, 4294901760
      %2523 = vmatpush1.xpose.msra.mxu0 %v2522
      %2524 = vmatprep.subr.mxu0 0.0
      %v2525 = vand.u32 %v2062, 4294901760
      %2526 = vmatpush1.xpose.msra.mxu0 %v2525
      %2527 = vmatprep.subr.mxu0 0.0
      %v2528 = vand.u32 %v2065, 4294901760
      %2529 = vmatpush1.xpose.msra.mxu0 %v2528
      %2530 = vmatprep.subr.mxu0 0.0
      %v2531 = vand.u32 %v2068, 4294901760
      %2532 = vmatpush1.xpose.msra.mxu0 %v2531
      %2533 = vmatprep.subr.mxu0 0.0
      %v2534 = vand.u32 %v2071, 4294901760
      %2535 = vmatpush1.xpose.msra.mxu0 %v2534
      %2536 = vmatprep.subr.mxu0 0.0
      %v2537 = vand.u32 %v2074, 4294901760
      %2538 = vmatpush1.xpose.msra.mxu0 %v2537
      %2539 = vmatprep.subr.mxu0 0.0
      %v2540 = vand.u32 %v2077, 4294901760
      %2541 = vmatpush1.xpose.msra.mxu0 %v2540
      %2542 = vmatprep.subr.mxu0 0.0
      %v2543 = vand.u32 %v2080, 4294901760
      %2544 = vmatpush1.xpose.msra.mxu0 %v2543
      %2545 = vmatprep.subr.mxu0 0.0
      %v2546 = vand.u32 %v2083, 4294901760
      %2547 = vmatpush1.xpose.msra.mxu0 %v2546
      %2548 = vmatprep.subr.mxu0 0.0
      %v2549 = vand.u32 %v2086, 4294901760
      %2550 = vmatpush1.xpose.msra.mxu0 %v2549
      %2551 = vmatprep.subr.mxu0 0.0
      %v2552 = vand.u32 %v2089, 4294901760
      %2553 = vmatpush1.xpose.msra.mxu0 %v2552
      %2554 = vmatprep.subr.mxu0 0.0
      %v2555 = vand.u32 %v2092, 4294901760
      %2556 = vmatpush1.xpose.msra.mxu0 %v2555
      %2557 = vmatprep.subr.mxu0 0.0
      %v2558 = vand.u32 %v2095, 4294901760
      %2559 = vmatpush1.xpose.msra.mxu0 %v2558
      %2560 = vmatprep.subr.mxu0 0.0
      %v2561 = vand.u32 %v2098, 4294901760
      %2562 = vmatpush1.xpose.msra.mxu0 %v2561
      %2563 = vmatprep.subr.mxu0 0.0
      %v2564 = vand.u32 %v2101, 4294901760
      %2565 = vmatpush1.xpose.msra.mxu0 %v2564
      %2566 = vmatprep.subr.mxu0 0.0
      %2567 = vmatpush1.xpose.msra.mxu0 0.0
      %2568 = vmatprep.subr.mxu0 0.0
      %2569 = vmatpush1.xpose.msra.mxu0 0.0
      %2570 = vmatprep.subr.mxu0 0.0
      %2571 = vmatpush1.xpose.msra.mxu0 0.0
      %2572 = vmatprep.subr.mxu0 0.0
      %2573 = vmatpush1.xpose.msra.mxu0 0.0
      %2574 = vmatprep.subr.mxu0 0.0
      %2575 = vmatpush1.xpose.msra.mxu0 0.0
      %2576 = vmatprep.subr.mxu0 0.0
      %2577 = vmatpush1.xpose.msra.mxu0 0.0
      %2578 = vmatprep.subr.mxu0 0.0
      %2579 = vmatpush1.xpose.msra.mxu0 0.0
      %2580 = vmatprep.subr.mxu0 0.0
      %2581 = vmatpush1.xpose.msra.mxu0 0.0
      %2582 = vmatprep.subr.mxu0 0.0
      %2583 = vmatpush1.xpose.msra.mxu0 0.0
      %2584 = vmatprep.subr.mxu0 0.0
      %2585 = vmatpush1.xpose.msra.mxu0 0.0
      %2586 = vmatprep.mubr.f32.mxu0 0.0
      %v2587 = vand.u32 %v2035, 4294901760
      %v2588 = vsub.f32 %v2035, %v2587
      %v2589 = vand.u32 %v2588, 4294901760
      %2590 = vmatmul.mubr.f32.gmra.mrb[0].mxu0 %v2589
      %v2591 = vpop.f32.mrb[0].mxu0
      %v2592 = vadd.f32 %v2496, %v2591
      %v2593 = vpop.f32.mrb[0].mxu0
      %v2594 = vadd.f32 %v2498, %v2593
      %2595 = vdwg.mxu0
      %2596 = vmatprep.subr.mxu0 0.0
      %v2597 = vand.u32 %v2038, 4294901760
      %v2598 = vsub.f32 %v2038, %v2597
      %v2599 = vand.u32 %v2598, 4294901760
      %2600 = vmatpush1.xpose.msra.mxu0 %v2599
      %2601 = vmatprep.subr.mxu0 0.0
      %v2602 = vand.u32 %v2041, 4294901760
      %v2603 = vsub.f32 %v2041, %v2602
      %v2604 = vand.u32 %v2603, 4294901760
      %2605 = vmatpush1.xpose.msra.mxu0 %v2604
      %2606 = vmatprep.subr.mxu0 0.0
      %v2607 = vand.u32 %v2044, 4294901760
      %v2608 = vsub.f32 %v2044, %v2607
      %v2609 = vand.u32 %v2608, 4294901760
      %2610 = vmatpush1.xpose.msra.mxu0 %v2609
      %2611 = vmatprep.subr.mxu0 0.0
      %v2612 = vand.u32 %v2047, 4294901760
      %v2613 = vsub.f32 %v2047, %v2612
      %v2614 = vand.u32 %v2613, 4294901760
      %2615 = vmatpush1.xpose.msra.mxu0 %v2614
      %2616 = vmatprep.subr.mxu0 0.0
      %v2617 = vand.u32 %v2050, 4294901760
      %v2618 = vsub.f32 %v2050, %v2617
      %v2619 = vand.u32 %v2618, 4294901760
      %2620 = vmatpush1.xpose.msra.mxu0 %v2619
      %2621 = vmatprep.subr.mxu0 0.0
      %v2622 = vand.u32 %v2053, 4294901760
      %v2623 = vsub.f32 %v2053, %v2622
      %v2624 = vand.u32 %v2623, 4294901760
      %2625 = vmatpush1.xpose.msra.mxu0 %v2624
      %2626 = vmatprep.subr.mxu0 0.0
      %v2627 = vand.u32 %v2056, 4294901760
      %v2628 = vsub.f32 %v2056, %v2627
      %v2629 = vand.u32 %v2628, 4294901760
      %2630 = vmatpush1.xpose.msra.mxu0 %v2629
      %2631 = vmatprep.subr.mxu0 0.0
      %v2632 = vand.u32 %v2059, 4294901760
      %v2633 = vsub.f32 %v2059, %v2632
      %v2634 = vand.u32 %v2633, 4294901760
      %2635 = vmatpush1.xpose.msra.mxu0 %v2634
      %2636 = vmatprep.subr.mxu0 0.0
      %v2637 = vand.u32 %v2062, 4294901760
      %v2638 = vsub.f32 %v2062, %v2637
      %v2639 = vand.u32 %v2638, 4294901760
      %2640 = vmatpush1.xpose.msra.mxu0 %v2639
      %2641 = vmatprep.subr.mxu0 0.0
      %v2642 = vand.u32 %v2065, 4294901760
      %v2643 = vsub.f32 %v2065, %v2642
      %v2644 = vand.u32 %v2643, 4294901760
      %2645 = vmatpush1.xpose.msra.mxu0 %v2644
      %2646 = vmatprep.subr.mxu0 0.0
      %v2647 = vand.u32 %v2068, 4294901760
      %v2648 = vsub.f32 %v2068, %v2647
      %v2649 = vand.u32 %v2648, 4294901760
      %2650 = vmatpush1.xpose.msra.mxu0 %v2649
      %2651 = vmatprep.subr.mxu0 0.0
      %v2652 = vand.u32 %v2071, 4294901760
      %v2653 = vsub.f32 %v2071, %v2652
      %v2654 = vand.u32 %v2653, 4294901760
      %2655 = vmatpush1.xpose.msra.mxu0 %v2654
      %2656 = vmatprep.subr.mxu0 0.0
      %v2657 = vand.u32 %v2074, 4294901760
      %v2658 = vsub.f32 %v2074, %v2657
      %v2659 = vand.u32 %v2658, 4294901760
      %2660 = vmatpush1.xpose.msra.mxu0 %v2659
      %2661 = vmatprep.subr.mxu0 0.0
      %v2662 = vand.u32 %v2077, 4294901760
      %v2663 = vsub.f32 %v2077, %v2662
      %v2664 = vand.u32 %v2663, 4294901760
      %2665 = vmatpush1.xpose.msra.mxu0 %v2664
      %2666 = vmatprep.subr.mxu0 0.0
      %v2667 = vand.u32 %v2080, 4294901760
      %v2668 = vsub.f32 %v2080, %v2667
      %v2669 = vand.u32 %v2668, 4294901760
      %2670 = vmatpush1.xpose.msra.mxu0 %v2669
      %2671 = vmatprep.subr.mxu0 0.0
      %v2672 = vand.u32 %v2083, 4294901760
      %v2673 = vsub.f32 %v2083, %v2672
      %v2674 = vand.u32 %v2673, 4294901760
      %2675 = vmatpush1.xpose.msra.mxu0 %v2674
      %2676 = vmatprep.subr.mxu0 0.0
      %v2677 = vand.u32 %v2086, 4294901760
      %v2678 = vsub.f32 %v2086, %v2677
      %v2679 = vand.u32 %v2678, 4294901760
      %2680 = vmatpush1.xpose.msra.mxu0 %v2679
      %2681 = vmatprep.subr.mxu0 0.0
      %v2682 = vand.u32 %v2089, 4294901760
      %v2683 = vsub.f32 %v2089, %v2682
      %v2684 = vand.u32 %v2683, 4294901760
      %2685 = vmatpush1.xpose.msra.mxu0 %v2684
      %2686 = vmatprep.subr.mxu0 0.0
      %v2687 = vand.u32 %v2092, 4294901760
      %v2688 = vsub.f32 %v2092, %v2687
      %v2689 = vand.u32 %v2688, 4294901760
      %2690 = vmatpush1.xpose.msra.mxu0 %v2689
      %2691 = vmatprep.subr.mxu0 0.0
      %v2692 = vand.u32 %v2095, 4294901760
      %v2693 = vsub.f32 %v2095, %v2692
      %v2694 = vand.u32 %v2693, 4294901760
      %2695 = vmatpush1.xpose.msra.mxu0 %v2694
      %2696 = vmatprep.subr.mxu0 0.0
      %v2697 = vand.u32 %v2098, 4294901760
      %v2698 = vsub.f32 %v2098, %v2697
      %v2699 = vand.u32 %v2698, 4294901760
      %2700 = vmatpush1.xpose.msra.mxu0 %v2699
      %2701 = vmatprep.subr.mxu0 0.0
      %v2702 = vand.u32 %v2101, 4294901760
      %v2703 = vsub.f32 %v2101, %v2702
      %v2704 = vand.u32 %v2703, 4294901760
      %2705 = vmatpush1.xpose.msra.mxu0 %v2704
      %2706 = vmatprep.subr.mxu0 0.0
      %2707 = vmatpush1.xpose.msra.mxu0 0.0
      %2708 = vmatprep.subr.mxu0 0.0
      %2709 = vmatpush1.xpose.msra.mxu0 0.0
      %2710 = vmatprep.subr.mxu0 0.0
      %2711 = vmatpush1.xpose.msra.mxu0 0.0
      %2712 = vmatprep.subr.mxu0 0.0
      %2713 = vmatpush1.xpose.msra.mxu0 0.0
      %2714 = vmatprep.subr.mxu0 0.0
      %2715 = vmatpush1.xpose.msra.mxu0 0.0
      %2716 = vmatprep.subr.mxu0 0.0
      %2717 = vmatpush1.xpose.msra.mxu0 0.0
      %2718 = vmatprep.subr.mxu0 0.0
      %2719 = vmatpush1.xpose.msra.mxu0 0.0
      %2720 = vmatprep.subr.mxu0 0.0
      %2721 = vmatpush1.xpose.msra.mxu0 0.0
      %2722 = vmatprep.subr.mxu0 0.0
      %2723 = vmatpush1.xpose.msra.mxu0 0.0
      %2724 = vmatprep.subr.mxu0 0.0
      %2725 = vmatpush1.xpose.msra.mxu0 0.0
      %2726 = vmatprep.mubr.f32.mxu0 0.0
      %v2727 = vand.u32 %v2035, 4294901760
      %2728 = vmatmul.mubr.f32.gmra.mrb[0].mxu0 %v2727
      %v2729 = vpop.f32.mrb[0].mxu0
      %v2730 = vadd.f32 %v2592, %v2729
      %v2731 = vpop.f32.mrb[0].mxu0
      %v2732 = vadd.f32 %v2594, %v2731
      %2733 = vdwg.mxu0
      %2734 = vmatprep.subr.mxu0 0.0
      %v2735 = vand.u32 %v2038, 4294901760
      %2736 = vmatpush1.xpose.msra.mxu0 %v2735
      %2737 = vmatprep.subr.mxu0 0.0
      %v2738 = vand.u32 %v2041, 4294901760
      %2739 = vmatpush1.xpose.msra.mxu0 %v2738
      %2740 = vmatprep.subr.mxu0 0.0
      %v2741 = vand.u32 %v2044, 4294901760
      %2742 = vmatpush1.xpose.msra.mxu0 %v2741
      %2743 = vmatprep.subr.mxu0 0.0
      %v2744 = vand.u32 %v2047, 4294901760
      %2745 = vmatpush1.xpose.msra.mxu0 %v2744
      %2746 = vmatprep.subr.mxu0 0.0
      %v2747 = vand.u32 %v2050, 4294901760
      %2748 = vmatpush1.xpose.msra.mxu0 %v2747
      %2749 = vmatprep.subr.mxu0 0.0
      %v2750 = vand.u32 %v2053, 4294901760
      %2751 = vmatpush1.xpose.msra.mxu0 %v2750
      %2752 = vmatprep.subr.mxu0 0.0
      %v2753 = vand.u32 %v2056, 4294901760
      %2754 = vmatpush1.xpose.msra.mxu0 %v2753
      %2755 = vmatprep.subr.mxu0 0.0
      %v2756 = vand.u32 %v2059, 4294901760
      %2757 = vmatpush1.xpose.msra.mxu0 %v2756
      %2758 = vmatprep.subr.mxu0 0.0
      %v2759 = vand.u32 %v2062, 4294901760
      %2760 = vmatpush1.xpose.msra.mxu0 %v2759
      %2761 = vmatprep.subr.mxu0 0.0
      %v2762 = vand.u32 %v2065, 4294901760
      %2763 = vmatpush1.xpose.msra.mxu0 %v2762
      %2764 = vmatprep.subr.mxu0 0.0
      %v2765 = vand.u32 %v2068, 4294901760
      %2766 = vmatpush1.xpose.msra.mxu0 %v2765
      %2767 = vmatprep.subr.mxu0 0.0
      %v2768 = vand.u32 %v2071, 4294901760
      %2769 = vmatpush1.xpose.msra.mxu0 %v2768
      %2770 = vmatprep.subr.mxu0 0.0
      %v2771 = vand.u32 %v2074, 4294901760
      %2772 = vmatpush1.xpose.msra.mxu0 %v2771
      %2773 = vmatprep.subr.mxu0 0.0
      %v2774 = vand.u32 %v2077, 4294901760
      %2775 = vmatpush1.xpose.msra.mxu0 %v2774
      %2776 = vmatprep.subr.mxu0 0.0
      %v2777 = vand.u32 %v2080, 4294901760
      %2778 = vmatpush1.xpose.msra.mxu0 %v2777
      %2779 = vmatprep.subr.mxu0 0.0
      %v2780 = vand.u32 %v2083, 4294901760
      %2781 = vmatpush1.xpose.msra.mxu0 %v2780
      %2782 = vmatprep.subr.mxu0 0.0
      %v2783 = vand.u32 %v2086, 4294901760
      %2784 = vmatpush1.xpose.msra.mxu0 %v2783
      %2785 = vmatprep.subr.mxu0 0.0
      %v2786 = vand.u32 %v2089, 4294901760
      %2787 = vmatpush1.xpose.msra.mxu0 %v2786
      %2788 = vmatprep.subr.mxu0 0.0
      %v2789 = vand.u32 %v2092, 4294901760
      %2790 = vmatpush1.xpose.msra.mxu0 %v2789
      %2791 = vmatprep.subr.mxu0 0.0
      %v2792 = vand.u32 %v2095, 4294901760
      %2793 = vmatpush1.xpose.msra.mxu0 %v2792
      %2794 = vmatprep.subr.mxu0 0.0
      %v2795 = vand.u32 %v2098, 4294901760
      %2796 = vmatpush1.xpose.msra.mxu0 %v2795
      %2797 = vmatprep.subr.mxu0 0.0
      %v2798 = vand.u32 %v2101, 4294901760
      %2799 = vmatpush1.xpose.msra.mxu0 %v2798
      %2800 = vmatprep.subr.mxu0 0.0
      %2801 = vmatpush1.xpose.msra.mxu0 0.0
      %2802 = vmatprep.subr.mxu0 0.0
      %2803 = vmatpush1.xpose.msra.mxu0 0.0
      %2804 = vmatprep.subr.mxu0 0.0
      %2805 = vmatpush1.xpose.msra.mxu0 0.0
      %2806 = vmatprep.subr.mxu0 0.0
      %2807 = vmatpush1.xpose.msra.mxu0 0.0
      %2808 = vmatprep.subr.mxu0 0.0
      %2809 = vmatpush1.xpose.msra.mxu0 0.0
      %2810 = vmatprep.subr.mxu0 0.0
      %2811 = vmatpush1.xpose.msra.mxu0 0.0
      %2812 = vmatprep.subr.mxu0 0.0
      %2813 = vmatpush1.xpose.msra.mxu0 0.0
      %2814 = vmatprep.subr.mxu0 0.0
      %2815 = vmatpush1.xpose.msra.mxu0 0.0
      %2816 = vmatprep.subr.mxu0 0.0
      %2817 = vmatpush1.xpose.msra.mxu0 0.0
      %2818 = vmatprep.subr.mxu0 0.0
      %2819 = vmatpush1.xpose.msra.mxu0 0.0
      %2820 = vmatprep.mubr.f32.mxu0 0.0
      %v2821 = vand.u32 %v2035, 4294901760
      %2822 = vmatmul.mubr.f32.gmra.mrb[0].mxu0 %v2821
      %v2823 = vpop.f32.mrb[0].mxu0
      %v2824 = vadd.f32 %v2730, %v2823
      %v2825 = vpop.f32.mrb[0].mxu0
      %v2826 = vadd.f32 %v2732, %v2825
      %2827 = vdwg.mxu0
      %v2828 = vld [vmem:[#allocation2] sm:$0x3]
      %v2831 = vcombine.low %v2824, %v2826
      %v2833 = vunpack.c.l.s4 1966171168
      %v2834 = vunpack.c.0.s8 %v2833
      %v2835 = vlaneseq
      %v2836 = vshrl.u32 %v2835, 7
      %v2837 = vsub.s32 %v2834, %v2836
      %v2838 = vrot.slane %v2831, %v2837
      %v2840 = vunpack.c.l.s4 1966171168
      %v2841 = vunpack.c.0.s8 %v2840
      %v2842 = vlaneseq
      %v2843 = vshrl.u32 %v2842, 7
      %v2844 = vsub.s32 %v2841, %v2843
      %v2845 = vrot.slane %v2838, %v2844
      %v2847 = vadd.f32 %v2828, %v2845
      %2848 = vst.msk [vmem:[#allocation2] sm:$0x3] %vm1006, %v2847
      %v2849 = vld [vmem:[#allocation2] sm:$0x3]
      %v2850 = vcombine.high %v2838, %v2838
      %v2852 = vunpack.c.l.s4 1966171168
      %v2853 = vunpack.c.0.s8 %v2852
      %v2854 = vlaneseq
      %v2855 = vshrl.u32 %v2854, 7
      %v2856 = vsub.s32 %v2853, %v2855
      %v2857 = vrot.slane %v2850, %v2856
      %2858 = vrot.lane.b32.xlu0 %v2857, 127
      %v2859 = vpop.permute.xlu0 %2858
      %v2860 = vrot.slane %v2859, 1
      %v2861 = vsel %vm1020, %v2859, %v2860
      %v2863 = vadd.f32 %v2849, %v2861
      %2864 = vst.msk [vmem:[#allocation2] sm:$0x3] %vm1025, %v2863
      %v2865 = vld [vmem:[#allocation2] sm:$0x3]
      %v2866 = vcombine.high %v2845, %v2845
      %2867 = vrot.lane.b32.xlu0 %v2866, 126
      %v2868 = vpop.permute.xlu0 %2867
      %v2869 = vrot.slane %v2868, 1
      %v2870 = vsel %vm1032, %v2868, %v2869
      %v2872 = vadd.f32 %v2865, %v2870
      %2873 = vst.msk [vmem:[#allocation2] sm:$0x3] %vm1037, %v2872
      %v2874 = vld [vmem:[#allocation2] sm:$0x3]
      %v2875 = vcombine.high %v2857, %v2857
      %2876 = vrot.lane.b32.xlu0 %v2875, 125
      %v2877 = vpop.permute.xlu0 %2876
      %v2878 = vrot.slane %v2877, 1
      %v2879 = vsel %vm1044, %v2877, %v2878
      %v2881 = vadd.f32 %v2874, %v2879
      %2882 = vst.msk [vmem:[#allocation2] sm:$0x3] %vm1049, %v2881
      %v2883 = vld [vmem:[#allocation2] sm:$0x3]
      %v2884 = vcombine.high %v2824, %v2826
      %v2886 = vunpack.c.l.s4 1966171168
      %v2887 = vunpack.c.0.s8 %v2886
      %v2888 = vlaneseq
      %v2889 = vshrl.u32 %v2888, 7
      %v2890 = vsub.s32 %v2887, %v2889
      %v2891 = vrot.slane %v2884, %v2890
      %v2893 = vunpack.c.l.s4 1966171168
      %v2894 = vunpack.c.0.s8 %v2893
      %v2895 = vlaneseq
      %v2896 = vshrl.u32 %v2895, 7
      %v2897 = vsub.s32 %v2894, %v2896
      %v2898 = vrot.slane %v2891, %v2897
      %2899 = vrot.lane.b32.xlu0 %v2898, 124
      %v2900 = vpop.permute.xlu0 %2899
      %v2901 = vrot.slane %v2900, 1
      %v2902 = vsel %vm1070, %v2900, %v2901
      %v2904 = vadd.f32 %v2883, %v2902
      %2905 = vst.msk [vmem:[#allocation2] sm:$0x3] %vm1075, %v2904
      %v2906 = vld [vmem:[#allocation2] sm:$0x3]
      %v2907 = vcombine.high %v2891, %v2891
      %v2909 = vunpack.c.l.s4 1966171168
      %v2910 = vunpack.c.0.s8 %v2909
      %v2911 = vlaneseq
      %v2912 = vshrl.u32 %v2911, 7
      %v2913 = vsub.s32 %v2910, %v2912
      %v2914 = vrot.slane %v2907, %v2913
      %2915 = vrot.lane.b32.xlu0 %v2914, 123
      %v2916 = vpop.permute.xlu0 %2915
      %v2917 = vrot.slane %v2916, 1
      %v2918 = vsel %vm1089, %v2916, %v2917
      %v2920 = vadd.f32 %v2906, %v2918
      %2921 = vst.msk [vmem:[#allocation2] sm:$0x3] %vm1094, %v2920
      %s2922 = scalar_lea.vmem %s157, 48
      %v2923 = vld [vmem:[%s2922] sm:$0xff]
      %v2924 = vld [vmem:[%s2922 + $0x8] sm:$0xff]
      %v2925 = vld [vmem:[%s2922 + $0x10] sm:$0xff]
      %v2926 = vld [vmem:[%s2922 + $0x18] sm:$0xff]
      %v2927 = vld [vmem:[%s2922 + $0x20] sm:$0xff]
      %v2928 = vld [vmem:[%s2922 + $0x28] sm:$0xff]
      %v2929 = vld [vmem:[%s2922 + $0x30] sm:$0xff]
      %v2930 = vld [vmem:[%s2922 + $0x38] sm:$0xff]
      %v2931 = vld [vmem:[%s2922 + $0x40] sm:$0xff]
      %v2932 = vld [vmem:[%s2922 + $0x48] sm:$0xff]
      %v2933 = vld [vmem:[%s2922 + $0x50] sm:$0xff]
      %v2934 = vld [vmem:[%s2922 + $0x58] sm:$0xff]
      %v2935 = vld [vmem:[%s2922 + $0x60] sm:$0xff]
      %v2936 = vld [vmem:[%s2922 + $0x68] sm:$0xff]
      %v2937 = vld [vmem:[%s2922 + $0x70] sm:$0xff]
      %v2938 = vld [vmem:[%s2922 + $0x78] sm:$0xff]
      %v2939 = vld [vmem:[%s2922 + $0x80] sm:$0xff]
      %v2940 = vld [vmem:[%s2922 + $0x88] sm:$0xff]
      %v2941 = vld [vmem:[%s2922 + $0x90] sm:$0xff]
      %v2942 = vld [vmem:[%s2922 + $0x98] sm:$0xff]
      %v2943 = vld [vmem:[%s2922 + $0xa0] sm:$0xff]
      %v2944 = vld [vmem:[%s2922 + $0xa8] sm:$0xff]
      %s2945 = scalar_lea.vmem %s152, 24
      %v2946 = vld [vmem:[%s2945] sm:$0x3f]
      %v2948 = vsel %vm190, %v2946, 0
      %v2951 = vsel %vm190, %v2923, 0
      %v2954 = vsel %vm190, %v2924, 0
      %v2957 = vsel %vm190, %v2925, 0
      %v2960 = vsel %vm190, %v2926, 0
      %v2963 = vsel %vm190, %v2927, 0
      %v2966 = vsel %vm190, %v2928, 0
      %v2969 = vsel %vm190, %v2929, 0
      %v2972 = vsel %vm190, %v2930, 0
      %v2975 = vsel %vm190, %v2931, 0
      %v2978 = vsel %vm190, %v2932, 0
      %v2981 = vsel %vm190, %v2933, 0
      %v2984 = vsel %vm190, %v2934, 0
      %v2987 = vsel %vm190, %v2935, 0
      %v2990 = vsel %vm190, %v2936, 0
      %v2993 = vsel %vm190, %v2937, 0
      %v2996 = vsel %vm190, %v2938, 0
      %v2999 = vsel %vm190, %v2939, 0
      %v3002 = vsel %vm190, %v2940, 0
      %v3005 = vsel %vm190, %v2941, 0
      %v3008 = vsel %vm190, %v2942, 0
      %v3011 = vsel %vm190, %v2943, 0
      %v3014 = vsel %vm190, %v2944, 0
      %3016 = vmatprep.subr.mxu0 0.0
      %v3017 = vand.u32 %v2951, 4294901760
      %3018 = vmatpush1.xpose.msra.mxu0 %v3017
      %3019 = vmatprep.subr.mxu0 0.0
      %v3020 = vand.u32 %v2954, 4294901760
      %3021 = vmatpush1.xpose.msra.mxu0 %v3020
      %3022 = vmatprep.subr.mxu0 0.0
      %v3023 = vand.u32 %v2957, 4294901760
      %3024 = vmatpush1.xpose.msra.mxu0 %v3023
      %3025 = vmatprep.subr.mxu0 0.0
      %v3026 = vand.u32 %v2960, 4294901760
      %3027 = vmatpush1.xpose.msra.mxu0 %v3026
      %3028 = vmatprep.subr.mxu0 0.0
      %v3029 = vand.u32 %v2963, 4294901760
      %3030 = vmatpush1.xpose.msra.mxu0 %v3029
      %3031 = vmatprep.subr.mxu0 0.0
      %v3032 = vand.u32 %v2966, 4294901760
      %3033 = vmatpush1.xpose.msra.mxu0 %v3032
      %3034 = vmatprep.subr.mxu0 0.0
      %v3035 = vand.u32 %v2969, 4294901760
      %3036 = vmatpush1.xpose.msra.mxu0 %v3035
      %3037 = vmatprep.subr.mxu0 0.0
      %v3038 = vand.u32 %v2972, 4294901760
      %3039 = vmatpush1.xpose.msra.mxu0 %v3038
      %3040 = vmatprep.subr.mxu0 0.0
      %v3041 = vand.u32 %v2975, 4294901760
      %3042 = vmatpush1.xpose.msra.mxu0 %v3041
      %3043 = vmatprep.subr.mxu0 0.0
      %v3044 = vand.u32 %v2978, 4294901760
      %3045 = vmatpush1.xpose.msra.mxu0 %v3044
      %3046 = vmatprep.subr.mxu0 0.0
      %v3047 = vand.u32 %v2981, 4294901760
      %3048 = vmatpush1.xpose.msra.mxu0 %v3047
      %3049 = vmatprep.subr.mxu0 0.0
      %v3050 = vand.u32 %v2984, 4294901760
      %3051 = vmatpush1.xpose.msra.mxu0 %v3050
      %3052 = vmatprep.subr.mxu0 0.0
      %v3053 = vand.u32 %v2987, 4294901760
      %3054 = vmatpush1.xpose.msra.mxu0 %v3053
      %3055 = vmatprep.subr.mxu0 0.0
      %v3056 = vand.u32 %v2990, 4294901760
      %3057 = vmatpush1.xpose.msra.mxu0 %v3056
      %3058 = vmatprep.subr.mxu0 0.0
      %v3059 = vand.u32 %v2993, 4294901760
      %3060 = vmatpush1.xpose.msra.mxu0 %v3059
      %3061 = vmatprep.subr.mxu0 0.0
      %v3062 = vand.u32 %v2996, 4294901760
      %3063 = vmatpush1.xpose.msra.mxu0 %v3062
      %3064 = vmatprep.subr.mxu0 0.0
      %v3065 = vand.u32 %v2999, 4294901760
      %3066 = vmatpush1.xpose.msra.mxu0 %v3065
      %3067 = vmatprep.subr.mxu0 0.0
      %v3068 = vand.u32 %v3002, 4294901760
      %3069 = vmatpush1.xpose.msra.mxu0 %v3068
      %3070 = vmatprep.subr.mxu0 0.0
      %v3071 = vand.u32 %v3005, 4294901760
      %3072 = vmatpush1.xpose.msra.mxu0 %v3071
      %3073 = vmatprep.subr.mxu0 0.0
      %v3074 = vand.u32 %v3008, 4294901760
      %3075 = vmatpush1.xpose.msra.mxu0 %v3074
      %3076 = vmatprep.subr.mxu0 0.0
      %v3077 = vand.u32 %v3011, 4294901760
      %3078 = vmatpush1.xpose.msra.mxu0 %v3077
      %3079 = vmatprep.subr.mxu0 0.0
      %v3080 = vand.u32 %v3014, 4294901760
      %3081 = vmatpush1.xpose.msra.mxu0 %v3080
      %3082 = vmatprep.subr.mxu0 0.0
      %3083 = vmatpush1.xpose.msra.mxu0 0.0
      %3084 = vmatprep.subr.mxu0 0.0
      %3085 = vmatpush1.xpose.msra.mxu0 0.0
      %3086 = vmatprep.subr.mxu0 0.0
      %3087 = vmatpush1.xpose.msra.mxu0 0.0
      %3088 = vmatprep.subr.mxu0 0.0
      %3089 = vmatpush1.xpose.msra.mxu0 0.0
      %3090 = vmatprep.subr.mxu0 0.0
      %3091 = vmatpush1.xpose.msra.mxu0 0.0
      %3092 = vmatprep.subr.mxu0 0.0
      %3093 = vmatpush1.xpose.msra.mxu0 0.0
      %3094 = vmatprep.subr.mxu0 0.0
      %3095 = vmatpush1.xpose.msra.mxu0 0.0
      %3096 = vmatprep.subr.mxu0 0.0
      %3097 = vmatpush1.xpose.msra.mxu0 0.0
      %3098 = vmatprep.subr.mxu0 0.0
      %3099 = vmatpush1.xpose.msra.mxu0 0.0
      %3100 = vmatprep.subr.mxu0 0.0
      %3101 = vmatpush1.xpose.msra.mxu0 0.0
      %3102 = vmatprep.mubr.f32.mxu0 0.0
      %v3103 = vand.u32 %v2948, 4294901760
      %v3104 = vsub.f32 %v2948, %v3103
      %v3105 = vand.u32 %v3104, 4294901760
      %v3106 = vsub.f32 %v3104, %v3105
      %v3107 = vand.u32 %v3106, 4294901760
      %3108 = vmatmul.mubr.f32.gmra.mrb[0].mxu0 %v3107
      %v3109 = vpop.f32.mrb[0].mxu0
      %v3110 = vadd.f32 0.0, %v3109
      %v3111 = vpop.f32.mrb[0].mxu0
      %v3112 = vadd.f32 0.0, %v3111
      %3113 = vdwg.mxu0
      %3114 = vmatprep.subr.mxu0 0.0
      %v3115 = vand.u32 %v2951, 4294901760
      %v3116 = vsub.f32 %v2951, %v3115
      %v3117 = vand.u32 %v3116, 4294901760
      %v3118 = vsub.f32 %v3116, %v3117
      %v3119 = vand.u32 %v3118, 4294901760
      %3120 = vmatpush1.xpose.msra.mxu0 %v3119
      %3121 = vmatprep.subr.mxu0 0.0
      %v3122 = vand.u32 %v2954, 4294901760
      %v3123 = vsub.f32 %v2954, %v3122
      %v3124 = vand.u32 %v3123, 4294901760
      %v3125 = vsub.f32 %v3123, %v3124
      %v3126 = vand.u32 %v3125, 4294901760
      %3127 = vmatpush1.xpose.msra.mxu0 %v3126
      %3128 = vmatprep.subr.mxu0 0.0
      %v3129 = vand.u32 %v2957, 4294901760
      %v3130 = vsub.f32 %v2957, %v3129
      %v3131 = vand.u32 %v3130, 4294901760
      %v3132 = vsub.f32 %v3130, %v3131
      %v3133 = vand.u32 %v3132, 4294901760
      %3134 = vmatpush1.xpose.msra.mxu0 %v3133
      %3135 = vmatprep.subr.mxu0 0.0
      %v3136 = vand.u32 %v2960, 4294901760
      %v3137 = vsub.f32 %v2960, %v3136
      %v3138 = vand.u32 %v3137, 4294901760
      %v3139 = vsub.f32 %v3137, %v3138
      %v3140 = vand.u32 %v3139, 4294901760
      %3141 = vmatpush1.xpose.msra.mxu0 %v3140
      %3142 = vmatprep.subr.mxu0 0.0
      %v3143 = vand.u32 %v2963, 4294901760
      %v3144 = vsub.f32 %v2963, %v3143
      %v3145 = vand.u32 %v3144, 4294901760
      %v3146 = vsub.f32 %v3144, %v3145
      %v3147 = vand.u32 %v3146, 4294901760
      %3148 = vmatpush1.xpose.msra.mxu0 %v3147
      %3149 = vmatprep.subr.mxu0 0.0
      %v3150 = vand.u32 %v2966, 4294901760
      %v3151 = vsub.f32 %v2966, %v3150
      %v3152 = vand.u32 %v3151, 4294901760
      %v3153 = vsub.f32 %v3151, %v3152
      %v3154 = vand.u32 %v3153, 4294901760
      %3155 = vmatpush1.xpose.msra.mxu0 %v3154
      %3156 = vmatprep.subr.mxu0 0.0
      %v3157 = vand.u32 %v2969, 4294901760
      %v3158 = vsub.f32 %v2969, %v3157
      %v3159 = vand.u32 %v3158, 4294901760
      %v3160 = vsub.f32 %v3158, %v3159
      %v3161 = vand.u32 %v3160, 4294901760
      %3162 = vmatpush1.xpose.msra.mxu0 %v3161
      %3163 = vmatprep.subr.mxu0 0.0
      %v3164 = vand.u32 %v2972, 4294901760
      %v3165 = vsub.f32 %v2972, %v3164
      %v3166 = vand.u32 %v3165, 4294901760
      %v3167 = vsub.f32 %v3165, %v3166
      %v3168 = vand.u32 %v3167, 4294901760
      %3169 = vmatpush1.xpose.msra.mxu0 %v3168
      %3170 = vmatprep.subr.mxu0 0.0
      %v3171 = vand.u32 %v2975, 4294901760
      %v3172 = vsub.f32 %v2975, %v3171
      %v3173 = vand.u32 %v3172, 4294901760
      %v3174 = vsub.f32 %v3172, %v3173
      %v3175 = vand.u32 %v3174, 4294901760
      %3176 = vmatpush1.xpose.msra.mxu0 %v3175
      %3177 = vmatprep.subr.mxu0 0.0
      %v3178 = vand.u32 %v2978, 4294901760
      %v3179 = vsub.f32 %v2978, %v3178
      %v3180 = vand.u32 %v3179, 4294901760
      %v3181 = vsub.f32 %v3179, %v3180
      %v3182 = vand.u32 %v3181, 4294901760
      %3183 = vmatpush1.xpose.msra.mxu0 %v3182
      %3184 = vmatprep.subr.mxu0 0.0
      %v3185 = vand.u32 %v2981, 4294901760
      %v3186 = vsub.f32 %v2981, %v3185
      %v3187 = vand.u32 %v3186, 4294901760
      %v3188 = vsub.f32 %v3186, %v3187
      %v3189 = vand.u32 %v3188, 4294901760
      %3190 = vmatpush1.xpose.msra.mxu0 %v3189
      %3191 = vmatprep.subr.mxu0 0.0
      %v3192 = vand.u32 %v2984, 4294901760
      %v3193 = vsub.f32 %v2984, %v3192
      %v3194 = vand.u32 %v3193, 4294901760
      %v3195 = vsub.f32 %v3193, %v3194
      %v3196 = vand.u32 %v3195, 4294901760
      %3197 = vmatpush1.xpose.msra.mxu0 %v3196
      %3198 = vmatprep.subr.mxu0 0.0
      %v3199 = vand.u32 %v2987, 4294901760
      %v3200 = vsub.f32 %v2987, %v3199
      %v3201 = vand.u32 %v3200, 4294901760
      %v3202 = vsub.f32 %v3200, %v3201
      %v3203 = vand.u32 %v3202, 4294901760
      %3204 = vmatpush1.xpose.msra.mxu0 %v3203
      %3205 = vmatprep.subr.mxu0 0.0
      %v3206 = vand.u32 %v2990, 4294901760
      %v3207 = vsub.f32 %v2990, %v3206
      %v3208 = vand.u32 %v3207, 4294901760
      %v3209 = vsub.f32 %v3207, %v3208
      %v3210 = vand.u32 %v3209, 4294901760
      %3211 = vmatpush1.xpose.msra.mxu0 %v3210
      %3212 = vmatprep.subr.mxu0 0.0
      %v3213 = vand.u32 %v2993, 4294901760
      %v3214 = vsub.f32 %v2993, %v3213
      %v3215 = vand.u32 %v3214, 4294901760
      %v3216 = vsub.f32 %v3214, %v3215
      %v3217 = vand.u32 %v3216, 4294901760
      %3218 = vmatpush1.xpose.msra.mxu0 %v3217
      %3219 = vmatprep.subr.mxu0 0.0
      %v3220 = vand.u32 %v2996, 4294901760
      %v3221 = vsub.f32 %v2996, %v3220
      %v3222 = vand.u32 %v3221, 4294901760
      %v3223 = vsub.f32 %v3221, %v3222
      %v3224 = vand.u32 %v3223, 4294901760
      %3225 = vmatpush1.xpose.msra.mxu0 %v3224
      %3226 = vmatprep.subr.mxu0 0.0
      %v3227 = vand.u32 %v2999, 4294901760
      %v3228 = vsub.f32 %v2999, %v3227
      %v3229 = vand.u32 %v3228, 4294901760
      %v3230 = vsub.f32 %v3228, %v3229
      %v3231 = vand.u32 %v3230, 4294901760
      %3232 = vmatpush1.xpose.msra.mxu0 %v3231
      %3233 = vmatprep.subr.mxu0 0.0
      %v3234 = vand.u32 %v3002, 4294901760
      %v3235 = vsub.f32 %v3002, %v3234
      %v3236 = vand.u32 %v3235, 4294901760
      %v3237 = vsub.f32 %v3235, %v3236
      %v3238 = vand.u32 %v3237, 4294901760
      %3239 = vmatpush1.xpose.msra.mxu0 %v3238
      %3240 = vmatprep.subr.mxu0 0.0
      %v3241 = vand.u32 %v3005, 4294901760
      %v3242 = vsub.f32 %v3005, %v3241
      %v3243 = vand.u32 %v3242, 4294901760
      %v3244 = vsub.f32 %v3242, %v3243
      %v3245 = vand.u32 %v3244, 4294901760
      %3246 = vmatpush1.xpose.msra.mxu0 %v3245
      %3247 = vmatprep.subr.mxu0 0.0
      %v3248 = vand.u32 %v3008, 4294901760
      %v3249 = vsub.f32 %v3008, %v3248
      %v3250 = vand.u32 %v3249, 4294901760
      %v3251 = vsub.f32 %v3249, %v3250
      %v3252 = vand.u32 %v3251, 4294901760
      %3253 = vmatpush1.xpose.msra.mxu0 %v3252
      %3254 = vmatprep.subr.mxu0 0.0
      %v3255 = vand.u32 %v3011, 4294901760
      %v3256 = vsub.f32 %v3011, %v3255
      %v3257 = vand.u32 %v3256, 4294901760
      %v3258 = vsub.f32 %v3256, %v3257
      %v3259 = vand.u32 %v3258, 4294901760
      %3260 = vmatpush1.xpose.msra.mxu0 %v3259
      %3261 = vmatprep.subr.mxu0 0.0
      %v3262 = vand.u32 %v3014, 4294901760
      %v3263 = vsub.f32 %v3014, %v3262
      %v3264 = vand.u32 %v3263, 4294901760
      %v3265 = vsub.f32 %v3263, %v3264
      %v3266 = vand.u32 %v3265, 4294901760
      %3267 = vmatpush1.xpose.msra.mxu0 %v3266
      %3268 = vmatprep.subr.mxu0 0.0
      %3269 = vmatpush1.xpose.msra.mxu0 0.0
      %3270 = vmatprep.subr.mxu0 0.0
      %3271 = vmatpush1.xpose.msra.mxu0 0.0
      %3272 = vmatprep.subr.mxu0 0.0
      %3273 = vmatpush1.xpose.msra.mxu0 0.0
      %3274 = vmatprep.subr.mxu0 0.0
      %3275 = vmatpush1.xpose.msra.mxu0 0.0
      %3276 = vmatprep.subr.mxu0 0.0
      %3277 = vmatpush1.xpose.msra.mxu0 0.0
      %3278 = vmatprep.subr.mxu0 0.0
      %3279 = vmatpush1.xpose.msra.mxu0 0.0
      %3280 = vmatprep.subr.mxu0 0.0
      %3281 = vmatpush1.xpose.msra.mxu0 0.0
      %3282 = vmatprep.subr.mxu0 0.0
      %3283 = vmatpush1.xpose.msra.mxu0 0.0
      %3284 = vmatprep.subr.mxu0 0.0
      %3285 = vmatpush1.xpose.msra.mxu0 0.0
      %3286 = vmatprep.subr.mxu0 0.0
      %3287 = vmatpush1.xpose.msra.mxu0 0.0
      %3288 = vmatprep.mubr.f32.mxu0 0.0
      %v3289 = vand.u32 %v2948, 4294901760
      %3290 = vmatmul.mubr.f32.gmra.mrb[0].mxu0 %v3289
      %v3291 = vpop.f32.mrb[0].mxu0
      %v3292 = vadd.f32 %v3110, %v3291
      %v3293 = vpop.f32.mrb[0].mxu0
      %v3294 = vadd.f32 %v3112, %v3293
      %3295 = vdwg.mxu0
      %3296 = vmatprep.subr.mxu0 0.0
      %v3297 = vand.u32 %v2951, 4294901760
      %v3298 = vsub.f32 %v2951, %v3297
      %3299 = vmatpush1.xpose.msra.mxu0 %v3298
      %3300 = vmatprep.subr.mxu0 0.0
      %v3301 = vand.u32 %v2954, 4294901760
      %v3302 = vsub.f32 %v2954, %v3301
      %3303 = vmatpush1.xpose.msra.mxu0 %v3302
      %3304 = vmatprep.subr.mxu0 0.0
      %v3305 = vand.u32 %v2957, 4294901760
      %v3306 = vsub.f32 %v2957, %v3305
      %3307 = vmatpush1.xpose.msra.mxu0 %v3306
      %3308 = vmatprep.subr.mxu0 0.0
      %v3309 = vand.u32 %v2960, 4294901760
      %v3310 = vsub.f32 %v2960, %v3309
      %3311 = vmatpush1.xpose.msra.mxu0 %v3310
      %3312 = vmatprep.subr.mxu0 0.0
      %v3313 = vand.u32 %v2963, 4294901760
      %v3314 = vsub.f32 %v2963, %v3313
      %3315 = vmatpush1.xpose.msra.mxu0 %v3314
      %3316 = vmatprep.subr.mxu0 0.0
      %v3317 = vand.u32 %v2966, 4294901760
      %v3318 = vsub.f32 %v2966, %v3317
      %3319 = vmatpush1.xpose.msra.mxu0 %v3318
      %3320 = vmatprep.subr.mxu0 0.0
      %v3321 = vand.u32 %v2969, 4294901760
      %v3322 = vsub.f32 %v2969, %v3321
      %3323 = vmatpush1.xpose.msra.mxu0 %v3322
      %3324 = vmatprep.subr.mxu0 0.0
      %v3325 = vand.u32 %v2972, 4294901760
      %v3326 = vsub.f32 %v2972, %v3325
      %3327 = vmatpush1.xpose.msra.mxu0 %v3326
      %3328 = vmatprep.subr.mxu0 0.0
      %v3329 = vand.u32 %v2975, 4294901760
      %v3330 = vsub.f32 %v2975, %v3329
      %3331 = vmatpush1.xpose.msra.mxu0 %v3330
      %3332 = vmatprep.subr.mxu0 0.0
      %v3333 = vand.u32 %v2978, 4294901760
      %v3334 = vsub.f32 %v2978, %v3333
      %3335 = vmatpush1.xpose.msra.mxu0 %v3334
      %3336 = vmatprep.subr.mxu0 0.0
      %v3337 = vand.u32 %v2981, 4294901760
      %v3338 = vsub.f32 %v2981, %v3337
      %3339 = vmatpush1.xpose.msra.mxu0 %v3338
      %3340 = vmatprep.subr.mxu0 0.0
      %v3341 = vand.u32 %v2984, 4294901760
      %v3342 = vsub.f32 %v2984, %v3341
      %3343 = vmatpush1.xpose.msra.mxu0 %v3342
      %3344 = vmatprep.subr.mxu0 0.0
      %v3345 = vand.u32 %v2987, 4294901760
      %v3346 = vsub.f32 %v2987, %v3345
      %3347 = vmatpush1.xpose.msra.mxu0 %v3346
      %3348 = vmatprep.subr.mxu0 0.0
      %v3349 = vand.u32 %v2990, 4294901760
      %v3350 = vsub.f32 %v2990, %v3349
      %3351 = vmatpush1.xpose.msra.mxu0 %v3350
      %3352 = vmatprep.subr.mxu0 0.0
      %v3353 = vand.u32 %v2993, 4294901760
      %v3354 = vsub.f32 %v2993, %v3353
      %3355 = vmatpush1.xpose.msra.mxu0 %v3354
      %3356 = vmatprep.subr.mxu0 0.0
      %v3357 = vand.u32 %v2996, 4294901760
      %v3358 = vsub.f32 %v2996, %v3357
      %3359 = vmatpush1.xpose.msra.mxu0 %v3358
      %3360 = vmatprep.subr.mxu0 0.0
      %v3361 = vand.u32 %v2999, 4294901760
      %v3362 = vsub.f32 %v2999, %v3361
      %3363 = vmatpush1.xpose.msra.mxu0 %v3362
      %3364 = vmatprep.subr.mxu0 0.0
      %v3365 = vand.u32 %v3002, 4294901760
      %v3366 = vsub.f32 %v3002, %v3365
      %3367 = vmatpush1.xpose.msra.mxu0 %v3366
      %3368 = vmatprep.subr.mxu0 0.0
      %v3369 = vand.u32 %v3005, 4294901760
      %v3370 = vsub.f32 %v3005, %v3369
      %3371 = vmatpush1.xpose.msra.mxu0 %v3370
      %3372 = vmatprep.subr.mxu0 0.0
      %v3373 = vand.u32 %v3008, 4294901760
      %v3374 = vsub.f32 %v3008, %v3373
      %3375 = vmatpush1.xpose.msra.mxu0 %v3374
      %3376 = vmatprep.subr.mxu0 0.0
      %v3377 = vand.u32 %v3011, 4294901760
      %v3378 = vsub.f32 %v3011, %v3377
      %3379 = vmatpush1.xpose.msra.mxu0 %v3378
      %3380 = vmatprep.subr.mxu0 0.0
      %v3381 = vand.u32 %v3014, 4294901760
      %v3382 = vsub.f32 %v3014, %v3381
      %3383 = vmatpush1.xpose.msra.mxu0 %v3382
      %3384 = vmatprep.subr.mxu0 0.0
      %3385 = vmatpush1.xpose.msra.mxu0 0.0
      %3386 = vmatprep.subr.mxu0 0.0
      %3387 = vmatpush1.xpose.msra.mxu0 0.0
      %3388 = vmatprep.subr.mxu0 0.0
      %3389 = vmatpush1.xpose.msra.mxu0 0.0
      %3390 = vmatprep.subr.mxu0 0.0
      %3391 = vmatpush1.xpose.msra.mxu0 0.0
      %3392 = vmatprep.subr.mxu0 0.0
      %3393 = vmatpush1.xpose.msra.mxu0 0.0
      %3394 = vmatprep.subr.mxu0 0.0
      %3395 = vmatpush1.xpose.msra.mxu0 0.0
      %3396 = vmatprep.subr.mxu0 0.0
      %3397 = vmatpush1.xpose.msra.mxu0 0.0
      %3398 = vmatprep.subr.mxu0 0.0
      %3399 = vmatpush1.xpose.msra.mxu0 0.0
      %3400 = vmatprep.subr.mxu0 0.0
      %3401 = vmatpush1.xpose.msra.mxu0 0.0
      %3402 = vmatprep.subr.mxu0 0.0
      %3403 = vmatpush1.xpose.msra.mxu0 0.0
      %3404 = vmatprep.mubr.f32.mxu0 0.0
      %v3405 = vand.u32 %v2948, 4294901760
      %v3406 = vsub.f32 %v2948, %v3405
      %3407 = vmatmul.mubr.f32.gmra.mrb[0].mxu0 %v3406
      %v3408 = vpop.f32.mrb[0].mxu0
      %v3409 = vadd.f32 %v3292, %v3408
      %v3410 = vpop.f32.mrb[0].mxu0
      %v3411 = vadd.f32 %v3294, %v3410
      %3412 = vdwg.mxu0
      %3413 = vmatprep.subr.mxu0 0.0
      %v3414 = vand.u32 %v2951, 4294901760
      %3415 = vmatpush1.xpose.msra.mxu0 %v3414
      %3416 = vmatprep.subr.mxu0 0.0
      %v3417 = vand.u32 %v2954, 4294901760
      %3418 = vmatpush1.xpose.msra.mxu0 %v3417
      %3419 = vmatprep.subr.mxu0 0.0
      %v3420 = vand.u32 %v2957, 4294901760
      %3421 = vmatpush1.xpose.msra.mxu0 %v3420
      %3422 = vmatprep.subr.mxu0 0.0
      %v3423 = vand.u32 %v2960, 4294901760
      %3424 = vmatpush1.xpose.msra.mxu0 %v3423
      %3425 = vmatprep.subr.mxu0 0.0
      %v3426 = vand.u32 %v2963, 4294901760
      %3427 = vmatpush1.xpose.msra.mxu0 %v3426
      %3428 = vmatprep.subr.mxu0 0.0
      %v3429 = vand.u32 %v2966, 4294901760
      %3430 = vmatpush1.xpose.msra.mxu0 %v3429
      %3431 = vmatprep.subr.mxu0 0.0
      %v3432 = vand.u32 %v2969, 4294901760
      %3433 = vmatpush1.xpose.msra.mxu0 %v3432
      %3434 = vmatprep.subr.mxu0 0.0
      %v3435 = vand.u32 %v2972, 4294901760
      %3436 = vmatpush1.xpose.msra.mxu0 %v3435
      %3437 = vmatprep.subr.mxu0 0.0
      %v3438 = vand.u32 %v2975, 4294901760
      %3439 = vmatpush1.xpose.msra.mxu0 %v3438
      %3440 = vmatprep.subr.mxu0 0.0
      %v3441 = vand.u32 %v2978, 4294901760
      %3442 = vmatpush1.xpose.msra.mxu0 %v3441
      %3443 = vmatprep.subr.mxu0 0.0
      %v3444 = vand.u32 %v2981, 4294901760
      %3445 = vmatpush1.xpose.msra.mxu0 %v3444
      %3446 = vmatprep.subr.mxu0 0.0
      %v3447 = vand.u32 %v2984, 4294901760
      %3448 = vmatpush1.xpose.msra.mxu0 %v3447
      %3449 = vmatprep.subr.mxu0 0.0
      %v3450 = vand.u32 %v2987, 4294901760
      %3451 = vmatpush1.xpose.msra.mxu0 %v3450
      %3452 = vmatprep.subr.mxu0 0.0
      %v3453 = vand.u32 %v2990, 4294901760
      %3454 = vmatpush1.xpose.msra.mxu0 %v3453
      %3455 = vmatprep.subr.mxu0 0.0
      %v3456 = vand.u32 %v2993, 4294901760
      %3457 = vmatpush1.xpose.msra.mxu0 %v3456
      %3458 = vmatprep.subr.mxu0 0.0
      %v3459 = vand.u32 %v2996, 4294901760
      %3460 = vmatpush1.xpose.msra.mxu0 %v3459
      %3461 = vmatprep.subr.mxu0 0.0
      %v3462 = vand.u32 %v2999, 4294901760
      %3463 = vmatpush1.xpose.msra.mxu0 %v3462
      %3464 = vmatprep.subr.mxu0 0.0
      %v3465 = vand.u32 %v3002, 4294901760
      %3466 = vmatpush1.xpose.msra.mxu0 %v3465
      %3467 = vmatprep.subr.mxu0 0.0
      %v3468 = vand.u32 %v3005, 4294901760
      %3469 = vmatpush1.xpose.msra.mxu0 %v3468
      %3470 = vmatprep.subr.mxu0 0.0
      %v3471 = vand.u32 %v3008, 4294901760
      %3472 = vmatpush1.xpose.msra.mxu0 %v3471
      %3473 = vmatprep.subr.mxu0 0.0
      %v3474 = vand.u32 %v3011, 4294901760
      %3475 = vmatpush1.xpose.msra.mxu0 %v3474
      %3476 = vmatprep.subr.mxu0 0.0
      %v3477 = vand.u32 %v3014, 4294901760
      %3478 = vmatpush1.xpose.msra.mxu0 %v3477
      %3479 = vmatprep.subr.mxu0 0.0
      %3480 = vmatpush1.xpose.msra.mxu0 0.0
      %3481 = vmatprep.subr.mxu0 0.0
      %3482 = vmatpush1.xpose.msra.mxu0 0.0
      %3483 = vmatprep.subr.mxu0 0.0
      %3484 = vmatpush1.xpose.msra.mxu0 0.0
      %3485 = vmatprep.subr.mxu0 0.0
      %3486 = vmatpush1.xpose.msra.mxu0 0.0
      %3487 = vmatprep.subr.mxu0 0.0
      %3488 = vmatpush1.xpose.msra.mxu0 0.0
      %3489 = vmatprep.subr.mxu0 0.0
      %3490 = vmatpush1.xpose.msra.mxu0 0.0
      %3491 = vmatprep.subr.mxu0 0.0
      %3492 = vmatpush1.xpose.msra.mxu0 0.0
      %3493 = vmatprep.subr.mxu0 0.0
      %3494 = vmatpush1.xpose.msra.mxu0 0.0
      %3495 = vmatprep.subr.mxu0 0.0
      %3496 = vmatpush1.xpose.msra.mxu0 0.0
      %3497 = vmatprep.subr.mxu0 0.0
      %3498 = vmatpush1.xpose.msra.mxu0 0.0
      %3499 = vmatprep.mubr.f32.mxu0 0.0
      %v3500 = vand.u32 %v2948, 4294901760
      %v3501 = vsub.f32 %v2948, %v3500
      %v3502 = vand.u32 %v3501, 4294901760
      %3503 = vmatmul.mubr.f32.gmra.mrb[0].mxu0 %v3502
      %v3504 = vpop.f32.mrb[0].mxu0
      %v3505 = vadd.f32 %v3409, %v3504
      %v3506 = vpop.f32.mrb[0].mxu0
      %v3507 = vadd.f32 %v3411, %v3506
      %3508 = vdwg.mxu0
      %3509 = vmatprep.subr.mxu0 0.0
      %v3510 = vand.u32 %v2951, 4294901760
      %v3511 = vsub.f32 %v2951, %v3510
      %v3512 = vand.u32 %v3511, 4294901760
      %3513 = vmatpush1.xpose.msra.mxu0 %v3512
      %3514 = vmatprep.subr.mxu0 0.0
      %v3515 = vand.u32 %v2954, 4294901760
      %v3516 = vsub.f32 %v2954, %v3515
      %v3517 = vand.u32 %v3516, 4294901760
      %3518 = vmatpush1.xpose.msra.mxu0 %v3517
      %3519 = vmatprep.subr.mxu0 0.0
      %v3520 = vand.u32 %v2957, 4294901760
      %v3521 = vsub.f32 %v2957, %v3520
      %v3522 = vand.u32 %v3521, 4294901760
      %3523 = vmatpush1.xpose.msra.mxu0 %v3522
      %3524 = vmatprep.subr.mxu0 0.0
      %v3525 = vand.u32 %v2960, 4294901760
      %v3526 = vsub.f32 %v2960, %v3525
      %v3527 = vand.u32 %v3526, 4294901760
      %3528 = vmatpush1.xpose.msra.mxu0 %v3527
      %3529 = vmatprep.subr.mxu0 0.0
      %v3530 = vand.u32 %v2963, 4294901760
      %v3531 = vsub.f32 %v2963, %v3530
      %v3532 = vand.u32 %v3531, 4294901760
      %3533 = vmatpush1.xpose.msra.mxu0 %v3532
      %3534 = vmatprep.subr.mxu0 0.0
      %v3535 = vand.u32 %v2966, 4294901760
      %v3536 = vsub.f32 %v2966, %v3535
      %v3537 = vand.u32 %v3536, 4294901760
      %3538 = vmatpush1.xpose.msra.mxu0 %v3537
      %3539 = vmatprep.subr.mxu0 0.0
      %v3540 = vand.u32 %v2969, 4294901760
      %v3541 = vsub.f32 %v2969, %v3540
      %v3542 = vand.u32 %v3541, 4294901760
      %3543 = vmatpush1.xpose.msra.mxu0 %v3542
      %3544 = vmatprep.subr.mxu0 0.0
      %v3545 = vand.u32 %v2972, 4294901760
      %v3546 = vsub.f32 %v2972, %v3545
      %v3547 = vand.u32 %v3546, 4294901760
      %3548 = vmatpush1.xpose.msra.mxu0 %v3547
      %3549 = vmatprep.subr.mxu0 0.0
      %v3550 = vand.u32 %v2975, 4294901760
      %v3551 = vsub.f32 %v2975, %v3550
      %v3552 = vand.u32 %v3551, 4294901760
      %3553 = vmatpush1.xpose.msra.mxu0 %v3552
      %3554 = vmatprep.subr.mxu0 0.0
      %v3555 = vand.u32 %v2978, 4294901760
      %v3556 = vsub.f32 %v2978, %v3555
      %v3557 = vand.u32 %v3556, 4294901760
      %3558 = vmatpush1.xpose.msra.mxu0 %v3557
      %3559 = vmatprep.subr.mxu0 0.0
      %v3560 = vand.u32 %v2981, 4294901760
      %v3561 = vsub.f32 %v2981, %v3560
      %v3562 = vand.u32 %v3561, 4294901760
      %3563 = vmatpush1.xpose.msra.mxu0 %v3562
      %3564 = vmatprep.subr.mxu0 0.0
      %v3565 = vand.u32 %v2984, 4294901760
      %v3566 = vsub.f32 %v2984, %v3565
      %v3567 = vand.u32 %v3566, 4294901760
      %3568 = vmatpush1.xpose.msra.mxu0 %v3567
      %3569 = vmatprep.subr.mxu0 0.0
      %v3570 = vand.u32 %v2987, 4294901760
      %v3571 = vsub.f32 %v2987, %v3570
      %v3572 = vand.u32 %v3571, 4294901760
      %3573 = vmatpush1.xpose.msra.mxu0 %v3572
      %3574 = vmatprep.subr.mxu0 0.0
      %v3575 = vand.u32 %v2990, 4294901760
      %v3576 = vsub.f32 %v2990, %v3575
      %v3577 = vand.u32 %v3576, 4294901760
      %3578 = vmatpush1.xpose.msra.mxu0 %v3577
      %3579 = vmatprep.subr.mxu0 0.0
      %v3580 = vand.u32 %v2993, 4294901760
      %v3581 = vsub.f32 %v2993, %v3580
      %v3582 = vand.u32 %v3581, 4294901760
      %3583 = vmatpush1.xpose.msra.mxu0 %v3582
      %3584 = vmatprep.subr.mxu0 0.0
      %v3585 = vand.u32 %v2996, 4294901760
      %v3586 = vsub.f32 %v2996, %v3585
      %v3587 = vand.u32 %v3586, 4294901760
      %3588 = vmatpush1.xpose.msra.mxu0 %v3587
      %3589 = vmatprep.subr.mxu0 0.0
      %v3590 = vand.u32 %v2999, 4294901760
      %v3591 = vsub.f32 %v2999, %v3590
      %v3592 = vand.u32 %v3591, 4294901760
      %3593 = vmatpush1.xpose.msra.mxu0 %v3592
      %3594 = vmatprep.subr.mxu0 0.0
      %v3595 = vand.u32 %v3002, 4294901760
      %v3596 = vsub.f32 %v3002, %v3595
      %v3597 = vand.u32 %v3596, 4294901760
      %3598 = vmatpush1.xpose.msra.mxu0 %v3597
      %3599 = vmatprep.subr.mxu0 0.0
      %v3600 = vand.u32 %v3005, 4294901760
      %v3601 = vsub.f32 %v3005, %v3600
      %v3602 = vand.u32 %v3601, 4294901760
      %3603 = vmatpush1.xpose.msra.mxu0 %v3602
      %3604 = vmatprep.subr.mxu0 0.0
      %v3605 = vand.u32 %v3008, 4294901760
      %v3606 = vsub.f32 %v3008, %v3605
      %v3607 = vand.u32 %v3606, 4294901760
      %3608 = vmatpush1.xpose.msra.mxu0 %v3607
      %3609 = vmatprep.subr.mxu0 0.0
      %v3610 = vand.u32 %v3011, 4294901760
      %v3611 = vsub.f32 %v3011, %v3610
      %v3612 = vand.u32 %v3611, 4294901760
      %3613 = vmatpush1.xpose.msra.mxu0 %v3612
      %3614 = vmatprep.subr.mxu0 0.0
      %v3615 = vand.u32 %v3014, 4294901760
      %v3616 = vsub.f32 %v3014, %v3615
      %v3617 = vand.u32 %v3616, 4294901760
      %3618 = vmatpush1.xpose.msra.mxu0 %v3617
      %3619 = vmatprep.subr.mxu0 0.0
      %3620 = vmatpush1.xpose.msra.mxu0 0.0
      %3621 = vmatprep.subr.mxu0 0.0
      %3622 = vmatpush1.xpose.msra.mxu0 0.0
      %3623 = vmatprep.subr.mxu0 0.0
      %3624 = vmatpush1.xpose.msra.mxu0 0.0
      %3625 = vmatprep.subr.mxu0 0.0
      %3626 = vmatpush1.xpose.msra.mxu0 0.0
      %3627 = vmatprep.subr.mxu0 0.0
      %3628 = vmatpush1.xpose.msra.mxu0 0.0
      %3629 = vmatprep.subr.mxu0 0.0
      %3630 = vmatpush1.xpose.msra.mxu0 0.0
      %3631 = vmatprep.subr.mxu0 0.0
      %3632 = vmatpush1.xpose.msra.mxu0 0.0
      %3633 = vmatprep.subr.mxu0 0.0
      %3634 = vmatpush1.xpose.msra.mxu0 0.0
      %3635 = vmatprep.subr.mxu0 0.0
      %3636 = vmatpush1.xpose.msra.mxu0 0.0
      %3637 = vmatprep.subr.mxu0 0.0
      %3638 = vmatpush1.xpose.msra.mxu0 0.0
      %3639 = vmatprep.mubr.f32.mxu0 0.0
      %v3640 = vand.u32 %v2948, 4294901760
      %3641 = vmatmul.mubr.f32.gmra.mrb[0].mxu0 %v3640
      %v3642 = vpop.f32.mrb[0].mxu0
      %v3643 = vadd.f32 %v3505, %v3642
      %v3644 = vpop.f32.mrb[0].mxu0
      %v3645 = vadd.f32 %v3507, %v3644
      %3646 = vdwg.mxu0
      %3647 = vmatprep.subr.mxu0 0.0
      %v3648 = vand.u32 %v2951, 4294901760
      %3649 = vmatpush1.xpose.msra.mxu0 %v3648
      %3650 = vmatprep.subr.mxu0 0.0
      %v3651 = vand.u32 %v2954, 4294901760
      %3652 = vmatpush1.xpose.msra.mxu0 %v3651
      %3653 = vmatprep.subr.mxu0 0.0
      %v3654 = vand.u32 %v2957, 4294901760
      %3655 = vmatpush1.xpose.msra.mxu0 %v3654
      %3656 = vmatprep.subr.mxu0 0.0
      %v3657 = vand.u32 %v2960, 4294901760
      %3658 = vmatpush1.xpose.msra.mxu0 %v3657
      %3659 = vmatprep.subr.mxu0 0.0
      %v3660 = vand.u32 %v2963, 4294901760
      %3661 = vmatpush1.xpose.msra.mxu0 %v3660
      %3662 = vmatprep.subr.mxu0 0.0
      %v3663 = vand.u32 %v2966, 4294901760
      %3664 = vmatpush1.xpose.msra.mxu0 %v3663
      %3665 = vmatprep.subr.mxu0 0.0
      %v3666 = vand.u32 %v2969, 4294901760
      %3667 = vmatpush1.xpose.msra.mxu0 %v3666
      %3668 = vmatprep.subr.mxu0 0.0
      %v3669 = vand.u32 %v2972, 4294901760
      %3670 = vmatpush1.xpose.msra.mxu0 %v3669
      %3671 = vmatprep.subr.mxu0 0.0
      %v3672 = vand.u32 %v2975, 4294901760
      %3673 = vmatpush1.xpose.msra.mxu0 %v3672
      %3674 = vmatprep.subr.mxu0 0.0
      %v3675 = vand.u32 %v2978, 4294901760
      %3676 = vmatpush1.xpose.msra.mxu0 %v3675
      %3677 = vmatprep.subr.mxu0 0.0
      %v3678 = vand.u32 %v2981, 4294901760
      %3679 = vmatpush1.xpose.msra.mxu0 %v3678
      %3680 = vmatprep.subr.mxu0 0.0
      %v3681 = vand.u32 %v2984, 4294901760
      %3682 = vmatpush1.xpose.msra.mxu0 %v3681
      %3683 = vmatprep.subr.mxu0 0.0
      %v3684 = vand.u32 %v2987, 4294901760
      %3685 = vmatpush1.xpose.msra.mxu0 %v3684
      %3686 = vmatprep.subr.mxu0 0.0
      %v3687 = vand.u32 %v2990, 4294901760
      %3688 = vmatpush1.xpose.msra.mxu0 %v3687
      %3689 = vmatprep.subr.mxu0 0.0
      %v3690 = vand.u32 %v2993, 4294901760
      %3691 = vmatpush1.xpose.msra.mxu0 %v3690
      %3692 = vmatprep.subr.mxu0 0.0
      %v3693 = vand.u32 %v2996, 4294901760
      %3694 = vmatpush1.xpose.msra.mxu0 %v3693
      %3695 = vmatprep.subr.mxu0 0.0
      %v3696 = vand.u32 %v2999, 4294901760
      %3697 = vmatpush1.xpose.msra.mxu0 %v3696
      %3698 = vmatprep.subr.mxu0 0.0
      %v3699 = vand.u32 %v3002, 4294901760
      %3700 = vmatpush1.xpose.msra.mxu0 %v3699
      %3701 = vmatprep.subr.mxu0 0.0
      %v3702 = vand.u32 %v3005, 4294901760
      %3703 = vmatpush1.xpose.msra.mxu0 %v3702
      %3704 = vmatprep.subr.mxu0 0.0
      %v3705 = vand.u32 %v3008, 4294901760
      %3706 = vmatpush1.xpose.msra.mxu0 %v3705
      %3707 = vmatprep.subr.mxu0 0.0
      %v3708 = vand.u32 %v3011, 4294901760
      %3709 = vmatpush1.xpose.msra.mxu0 %v3708
      %3710 = vmatprep.subr.mxu0 0.0
      %v3711 = vand.u32 %v3014, 4294901760
      %3712 = vmatpush1.xpose.msra.mxu0 %v3711
      %3713 = vmatprep.subr.mxu0 0.0
      %3714 = vmatpush1.xpose.msra.mxu0 0.0
      %3715 = vmatprep.subr.mxu0 0.0
      %3716 = vmatpush1.xpose.msra.mxu0 0.0
      %3717 = vmatprep.subr.mxu0 0.0
      %3718 = vmatpush1.xpose.msra.mxu0 0.0
      %3719 = vmatprep.subr.mxu0 0.0
      %3720 = vmatpush1.xpose.msra.mxu0 0.0
      %3721 = vmatprep.subr.mxu0 0.0
      %3722 = vmatpush1.xpose.msra.mxu0 0.0
      %3723 = vmatprep.subr.mxu0 0.0
      %3724 = vmatpush1.xpose.msra.mxu0 0.0
      %3725 = vmatprep.subr.mxu0 0.0
      %3726 = vmatpush1.xpose.msra.mxu0 0.0
      %3727 = vmatprep.subr.mxu0 0.0
      %3728 = vmatpush1.xpose.msra.mxu0 0.0
      %3729 = vmatprep.subr.mxu0 0.0
      %3730 = vmatpush1.xpose.msra.mxu0 0.0
      %3731 = vmatprep.subr.mxu0 0.0
      %3732 = vmatpush1.xpose.msra.mxu0 0.0
      %3733 = vmatprep.mubr.f32.mxu0 0.0
      %v3734 = vand.u32 %v2948, 4294901760
      %3735 = vmatmul.mubr.f32.gmra.mrb[0].mxu0 %v3734
      %v3736 = vpop.f32.mrb[0].mxu0
      %v3737 = vadd.f32 %v3643, %v3736
      %v3738 = vpop.f32.mrb[0].mxu0
      %v3739 = vadd.f32 %v3645, %v3738
      %3740 = vdwg.mxu0
      %v3741 = vld [vmem:[#allocation2] sm:$0x3]
      %v3744 = vcombine.low %v3737, %v3739
      %v3746 = vunpack.c.l.s4 1966171168
      %v3747 = vunpack.c.0.s8 %v3746
      %v3748 = vlaneseq
      %v3749 = vshrl.u32 %v3748, 7
      %v3750 = vsub.s32 %v3747, %v3749
      %v3751 = vrot.slane %v3744, %v3750
      %v3753 = vunpack.c.l.s4 1966171168
      %v3754 = vunpack.c.0.s8 %v3753
      %v3755 = vlaneseq
      %v3756 = vshrl.u32 %v3755, 7
      %v3757 = vsub.s32 %v3754, %v3756
      %v3758 = vrot.slane %v3751, %v3757
      %v3760 = vadd.f32 %v3741, %v3758
      %3761 = vst.msk [vmem:[#allocation2] sm:$0x3] %vm1006, %v3760
      %v3762 = vld [vmem:[#allocation2] sm:$0x3]
      %v3763 = vcombine.high %v3751, %v3751
      %v3765 = vunpack.c.l.s4 1966171168
      %v3766 = vunpack.c.0.s8 %v3765
      %v3767 = vlaneseq
      %v3768 = vshrl.u32 %v3767, 7
      %v3769 = vsub.s32 %v3766, %v3768
      %v3770 = vrot.slane %v3763, %v3769
      %3771 = vrot.lane.b32.xlu0 %v3770, 127
      %v3772 = vpop.permute.xlu0 %3771
      %v3773 = vrot.slane %v3772, 1
      %v3774 = vsel %vm1020, %v3772, %v3773
      %v3776 = vadd.f32 %v3762, %v3774
      %3777 = vst.msk [vmem:[#allocation2] sm:$0x3] %vm1025, %v3776
      %v3778 = vld [vmem:[#allocation2] sm:$0x3]
      %v3779 = vcombine.high %v3758, %v3758
      %3780 = vrot.lane.b32.xlu0 %v3779, 126
      %v3781 = vpop.permute.xlu0 %3780
      %v3782 = vrot.slane %v3781, 1
      %v3783 = vsel %vm1032, %v3781, %v3782
      %v3785 = vadd.f32 %v3778, %v3783
      %3786 = vst.msk [vmem:[#allocation2] sm:$0x3] %vm1037, %v3785
      %v3787 = vld [vmem:[#allocation2] sm:$0x3]
      %v3788 = vcombine.high %v3770, %v3770
      %3789 = vrot.lane.b32.xlu0 %v3788, 125
      %v3790 = vpop.permute.xlu0 %3789
      %v3791 = vrot.slane %v3790, 1
      %v3792 = vsel %vm1044, %v3790, %v3791
      %v3794 = vadd.f32 %v3787, %v3792
      %3795 = vst.msk [vmem:[#allocation2] sm:$0x3] %vm1049, %v3794
      %v3796 = vld [vmem:[#allocation2] sm:$0x3]
      %v3797 = vcombine.high %v3737, %v3739
      %v3799 = vunpack.c.l.s4 1966171168
      %v3800 = vunpack.c.0.s8 %v3799
      %v3801 = vlaneseq
      %v3802 = vshrl.u32 %v3801, 7
      %v3803 = vsub.s32 %v3800, %v3802
      %v3804 = vrot.slane %v3797, %v3803
      %v3806 = vunpack.c.l.s4 1966171168
      %v3807 = vunpack.c.0.s8 %v3806
      %v3808 = vlaneseq
      %v3809 = vshrl.u32 %v3808, 7
      %v3810 = vsub.s32 %v3807, %v3809
      %v3811 = vrot.slane %v3804, %v3810
      %3812 = vrot.lane.b32.xlu0 %v3811, 124
      %v3813 = vpop.permute.xlu0 %3812
      %v3814 = vrot.slane %v3813, 1
      %v3815 = vsel %vm1070, %v3813, %v3814
      %v3817 = vadd.f32 %v3796, %v3815
      %3818 = vst.msk [vmem:[#allocation2] sm:$0x3] %vm1075, %v3817
      %v3819 = vld [vmem:[#allocation2] sm:$0x3]
      %v3820 = vcombine.high %v3804, %v3804
      %v3822 = vunpack.c.l.s4 1966171168
      %v3823 = vunpack.c.0.s8 %v3822
      %v3824 = vlaneseq
      %v3825 = vshrl.u32 %v3824, 7
      %v3826 = vsub.s32 %v3823, %v3825
      %v3827 = vrot.slane %v3820, %v3826
      %3828 = vrot.lane.b32.xlu0 %v3827, 123
      %v3829 = vpop.permute.xlu0 %3828
      %v3830 = vrot.slane %v3829, 1
      %v3831 = vsel %vm1089, %v3829, %v3830
      %v3833 = vadd.f32 %v3819, %v3831
      %3834 = vst.msk [vmem:[#allocation2] sm:$0x3] %vm1094, %v3833
      %s3835 = scalar_lea.vmem %s157, 64
      %v3836 = vld [vmem:[%s3835] sm:$0xff]
      %v3837 = vld [vmem:[%s3835 + $0x8] sm:$0xff]
      %v3838 = vld [vmem:[%s3835 + $0x10] sm:$0xff]
      %v3839 = vld [vmem:[%s3835 + $0x18] sm:$0xff]
      %v3840 = vld [vmem:[%s3835 + $0x20] sm:$0xff]
      %v3841 = vld [vmem:[%s3835 + $0x28] sm:$0xff]
      %v3842 = vld [vmem:[%s3835 + $0x30] sm:$0xff]
      %v3843 = vld [vmem:[%s3835 + $0x38] sm:$0xff]
      %v3844 = vld [vmem:[%s3835 + $0x40] sm:$0xff]
      %v3845 = vld [vmem:[%s3835 + $0x48] sm:$0xff]
      %v3846 = vld [vmem:[%s3835 + $0x50] sm:$0xff]
      %v3847 = vld [vmem:[%s3835 + $0x58] sm:$0xff]
      %v3848 = vld [vmem:[%s3835 + $0x60] sm:$0xff]
      %v3849 = vld [vmem:[%s3835 + $0x68] sm:$0xff]
      %v3850 = vld [vmem:[%s3835 + $0x70] sm:$0xff]
      %v3851 = vld [vmem:[%s3835 + $0x78] sm:$0xff]
      %v3852 = vld [vmem:[%s3835 + $0x80] sm:$0xff]
      %v3853 = vld [vmem:[%s3835 + $0x88] sm:$0xff]
      %v3854 = vld [vmem:[%s3835 + $0x90] sm:$0xff]
      %v3855 = vld [vmem:[%s3835 + $0x98] sm:$0xff]
      %v3856 = vld [vmem:[%s3835 + $0xa0] sm:$0xff]
      %v3857 = vld [vmem:[%s3835 + $0xa8] sm:$0xff]
      %s3858 = scalar_lea.vmem %s152, 32
      %v3859 = vld [vmem:[%s3858] sm:$0x3f]
      %v3861 = vsel %vm190, %v3859, 0
      %v3864 = vsel %vm190, %v3836, 0
      %v3867 = vsel %vm190, %v3837, 0
      %v3870 = vsel %vm190, %v3838, 0
      %v3873 = vsel %vm190, %v3839, 0
      %v3876 = vsel %vm190, %v3840, 0
      %v3879 = vsel %vm190, %v3841, 0
      %v3882 = vsel %vm190, %v3842, 0
      %v3885 = vsel %vm190, %v3843, 0
      %v3888 = vsel %vm190, %v3844, 0
      %v3891 = vsel %vm190, %v3845, 0
      %v3894 = vsel %vm190, %v3846, 0
      %v3897 = vsel %vm190, %v3847, 0
      %v3900 = vsel %vm190, %v3848, 0
      %v3903 = vsel %vm190, %v3849, 0
      %v3906 = vsel %vm190, %v3850, 0
      %v3909 = vsel %vm190, %v3851, 0
      %v3912 = vsel %vm190, %v3852, 0
      %v3915 = vsel %vm190, %v3853, 0
      %v3918 = vsel %vm190, %v3854, 0
      %v3921 = vsel %vm190, %v3855, 0
      %v3924 = vsel %vm190, %v3856, 0
      %v3927 = vsel %vm190, %v3857, 0
      %3929 = vmatprep.subr.mxu0 0.0
      %v3930 = vand.u32 %v3864, 4294901760
      %3931 = vmatpush1.xpose.msra.mxu0 %v3930
      %3932 = vmatprep.subr.mxu0 0.0
      %v3933 = vand.u32 %v3867, 4294901760
      %3934 = vmatpush1.xpose.msra.mxu0 %v3933
      %3935 = vmatprep.subr.mxu0 0.0
      %v3936 = vand.u32 %v3870, 4294901760
      %3937 = vmatpush1.xpose.msra.mxu0 %v3936
      %3938 = vmatprep.subr.mxu0 0.0
      %v3939 = vand.u32 %v3873, 4294901760
      %3940 = vmatpush1.xpose.msra.mxu0 %v3939
      %3941 = vmatprep.subr.mxu0 0.0
      %v3942 = vand.u32 %v3876, 4294901760
      %3943 = vmatpush1.xpose.msra.mxu0 %v3942
      %3944 = vmatprep.subr.mxu0 0.0
      %v3945 = vand.u32 %v3879, 4294901760
      %3946 = vmatpush1.xpose.msra.mxu0 %v3945
      %3947 = vmatprep.subr.mxu0 0.0
      %v3948 = vand.u32 %v3882, 4294901760
      %3949 = vmatpush1.xpose.msra.mxu0 %v3948
      %3950 = vmatprep.subr.mxu0 0.0
      %v3951 = vand.u32 %v3885, 4294901760
      %3952 = vmatpush1.xpose.msra.mxu0 %v3951
      %3953 = vmatprep.subr.mxu0 0.0
      %v3954 = vand.u32 %v3888, 4294901760
      %3955 = vmatpush1.xpose.msra.mxu0 %v3954
      %3956 = vmatprep.subr.mxu0 0.0
      %v3957 = vand.u32 %v3891, 4294901760
      %3958 = vmatpush1.xpose.msra.mxu0 %v3957
      %3959 = vmatprep.subr.mxu0 0.0
      %v3960 = vand.u32 %v3894, 4294901760
      %3961 = vmatpush1.xpose.msra.mxu0 %v3960
      %3962 = vmatprep.subr.mxu0 0.0
      %v3963 = vand.u32 %v3897, 4294901760
      %3964 = vmatpush1.xpose.msra.mxu0 %v3963
      %3965 = vmatprep.subr.mxu0 0.0
      %v3966 = vand.u32 %v3900, 4294901760
      %3967 = vmatpush1.xpose.msra.mxu0 %v3966
      %3968 = vmatprep.subr.mxu0 0.0
      %v3969 = vand.u32 %v3903, 4294901760
      %3970 = vmatpush1.xpose.msra.mxu0 %v3969
      %3971 = vmatprep.subr.mxu0 0.0
      %v3972 = vand.u32 %v3906, 4294901760
      %3973 = vmatpush1.xpose.msra.mxu0 %v3972
      %3974 = vmatprep.subr.mxu0 0.0
      %v3975 = vand.u32 %v3909, 4294901760
      %3976 = vmatpush1.xpose.msra.mxu0 %v3975
      %3977 = vmatprep.subr.mxu0 0.0
      %v3978 = vand.u32 %v3912, 4294901760
      %3979 = vmatpush1.xpose.msra.mxu0 %v3978
      %3980 = vmatprep.subr.mxu0 0.0
      %v3981 = vand.u32 %v3915, 4294901760
      %3982 = vmatpush1.xpose.msra.mxu0 %v3981
      %3983 = vmatprep.subr.mxu0 0.0
      %v3984 = vand.u32 %v3918, 4294901760
      %3985 = vmatpush1.xpose.msra.mxu0 %v3984
      %3986 = vmatprep.subr.mxu0 0.0
      %v3987 = vand.u32 %v3921, 4294901760
      %3988 = vmatpush1.xpose.msra.mxu0 %v3987
      %3989 = vmatprep.subr.mxu0 0.0
      %v3990 = vand.u32 %v3924, 4294901760
      %3991 = vmatpush1.xpose.msra.mxu0 %v3990
      %3992 = vmatprep.subr.mxu0 0.0
      %v3993 = vand.u32 %v3927, 4294901760
      %3994 = vmatpush1.xpose.msra.mxu0 %v3993
      %3995 = vmatprep.subr.mxu0 0.0
      %3996 = vmatpush1.xpose.msra.mxu0 0.0
      %3997 = vmatprep.subr.mxu0 0.0
      %3998 = vmatpush1.xpose.msra.mxu0 0.0
      %3999 = vmatprep.subr.mxu0 0.0
      %4000 = vmatpush1.xpose.msra.mxu0 0.0
      %4001 = vmatprep.subr.mxu0 0.0
      %4002 = vmatpush1.xpose.msra.mxu0 0.0
      %4003 = vmatprep.subr.mxu0 0.0
      %4004 = vmatpush1.xpose.msra.mxu0 0.0
      %4005 = vmatprep.subr.mxu0 0.0
      %4006 = vmatpush1.xpose.msra.mxu0 0.0
      %4007 = vmatprep.subr.mxu0 0.0
      %4008 = vmatpush1.xpose.msra.mxu0 0.0
      %4009 = vmatprep.subr.mxu0 0.0
      %4010 = vmatpush1.xpose.msra.mxu0 0.0
      %4011 = vmatprep.subr.mxu0 0.0
      %4012 = vmatpush1.xpose.msra.mxu0 0.0
      %4013 = vmatprep.subr.mxu0 0.0
      %4014 = vmatpush1.xpose.msra.mxu0 0.0
      %4015 = vmatprep.mubr.f32.mxu0 0.0
      %v4016 = vand.u32 %v3861, 4294901760
      %v4017 = vsub.f32 %v3861, %v4016
      %v4018 = vand.u32 %v4017, 4294901760
      %v4019 = vsub.f32 %v4017, %v4018
      %v4020 = vand.u32 %v4019, 4294901760
      %4021 = vmatmul.mubr.f32.gmra.mrb[0].mxu0 %v4020
      %v4022 = vpop.f32.mrb[0].mxu0
      %v4023 = vadd.f32 0.0, %v4022
      %v4024 = vpop.f32.mrb[0].mxu0
      %v4025 = vadd.f32 0.0, %v4024
      %4026 = vdwg.mxu0
      %4027 = vmatprep.subr.mxu0 0.0
      %v4028 = vand.u32 %v3864, 4294901760
      %v4029 = vsub.f32 %v3864, %v4028
      %v4030 = vand.u32 %v4029, 4294901760
      %v4031 = vsub.f32 %v4029, %v4030
      %v4032 = vand.u32 %v4031, 4294901760
      %4033 = vmatpush1.xpose.msra.mxu0 %v4032
      %4034 = vmatprep.subr.mxu0 0.0
      %v4035 = vand.u32 %v3867, 4294901760
      %v4036 = vsub.f32 %v3867, %v4035
      %v4037 = vand.u32 %v4036, 4294901760
      %v4038 = vsub.f32 %v4036, %v4037
      %v4039 = vand.u32 %v4038, 4294901760
      %4040 = vmatpush1.xpose.msra.mxu0 %v4039
      %4041 = vmatprep.subr.mxu0 0.0
      %v4042 = vand.u32 %v3870, 4294901760
      %v4043 = vsub.f32 %v3870, %v4042
      %v4044 = vand.u32 %v4043, 4294901760
      %v4045 = vsub.f32 %v4043, %v4044
      %v4046 = vand.u32 %v4045, 4294901760
      %4047 = vmatpush1.xpose.msra.mxu0 %v4046
      %4048 = vmatprep.subr.mxu0 0.0
      %v4049 = vand.u32 %v3873, 4294901760
      %v4050 = vsub.f32 %v3873, %v4049
      %v4051 = vand.u32 %v4050, 4294901760
      %v4052 = vsub.f32 %v4050, %v4051
      %v4053 = vand.u32 %v4052, 4294901760
      %4054 = vmatpush1.xpose.msra.mxu0 %v4053
      %4055 = vmatprep.subr.mxu0 0.0
      %v4056 = vand.u32 %v3876, 4294901760
      %v4057 = vsub.f32 %v3876, %v4056
      %v4058 = vand.u32 %v4057, 4294901760
      %v4059 = vsub.f32 %v4057, %v4058
      %v4060 = vand.u32 %v4059, 4294901760
      %4061 = vmatpush1.xpose.msra.mxu0 %v4060
      %4062 = vmatprep.subr.mxu0 0.0
      %v4063 = vand.u32 %v3879, 4294901760
      %v4064 = vsub.f32 %v3879, %v4063
      %v4065 = vand.u32 %v4064, 4294901760
      %v4066 = vsub.f32 %v4064, %v4065
      %v4067 = vand.u32 %v4066, 4294901760
      %4068 = vmatpush1.xpose.msra.mxu0 %v4067
      %4069 = vmatprep.subr.mxu0 0.0
      %v4070 = vand.u32 %v3882, 4294901760
      %v4071 = vsub.f32 %v3882, %v4070
      %v4072 = vand.u32 %v4071, 4294901760
      %v4073 = vsub.f32 %v4071, %v4072
      %v4074 = vand.u32 %v4073, 4294901760
      %4075 = vmatpush1.xpose.msra.mxu0 %v4074
      %4076 = vmatprep.subr.mxu0 0.0
      %v4077 = vand.u32 %v3885, 4294901760
      %v4078 = vsub.f32 %v3885, %v4077
      %v4079 = vand.u32 %v4078, 4294901760
      %v4080 = vsub.f32 %v4078, %v4079
      %v4081 = vand.u32 %v4080, 4294901760
      %4082 = vmatpush1.xpose.msra.mxu0 %v4081
      %4083 = vmatprep.subr.mxu0 0.0
      %v4084 = vand.u32 %v3888, 4294901760
      %v4085 = vsub.f32 %v3888, %v4084
      %v4086 = vand.u32 %v4085, 4294901760
      %v4087 = vsub.f32 %v4085, %v4086
      %v4088 = vand.u32 %v4087, 4294901760
      %4089 = vmatpush1.xpose.msra.mxu0 %v4088
      %4090 = vmatprep.subr.mxu0 0.0
      %v4091 = vand.u32 %v3891, 4294901760
      %v4092 = vsub.f32 %v3891, %v4091
      %v4093 = vand.u32 %v4092, 4294901760
      %v4094 = vsub.f32 %v4092, %v4093
      %v4095 = vand.u32 %v4094, 4294901760
      %4096 = vmatpush1.xpose.msra.mxu0 %v4095
      %4097 = vmatprep.subr.mxu0 0.0
      %v4098 = vand.u32 %v3894, 4294901760
      %v4099 = vsub.f32 %v3894, %v4098
      %v4100 = vand.u32 %v4099, 4294901760
      %v4101 = vsub.f32 %v4099, %v4100
      %v4102 = vand.u32 %v4101, 4294901760
      %4103 = vmatpush1.xpose.msra.mxu0 %v4102
      %4104 = vmatprep.subr.mxu0 0.0
      %v4105 = vand.u32 %v3897, 4294901760
      %v4106 = vsub.f32 %v3897, %v4105
      %v4107 = vand.u32 %v4106, 4294901760
      %v4108 = vsub.f32 %v4106, %v4107
      %v4109 = vand.u32 %v4108, 4294901760
      %4110 = vmatpush1.xpose.msra.mxu0 %v4109
      %4111 = vmatprep.subr.mxu0 0.0
      %v4112 = vand.u32 %v3900, 4294901760
      %v4113 = vsub.f32 %v3900, %v4112
      %v4114 = vand.u32 %v4113, 4294901760
      %v4115 = vsub.f32 %v4113, %v4114
      %v4116 = vand.u32 %v4115, 4294901760
      %4117 = vmatpush1.xpose.msra.mxu0 %v4116
      %4118 = vmatprep.subr.mxu0 0.0
      %v4119 = vand.u32 %v3903, 4294901760
      %v4120 = vsub.f32 %v3903, %v4119
      %v4121 = vand.u32 %v4120, 4294901760
      %v4122 = vsub.f32 %v4120, %v4121
      %v4123 = vand.u32 %v4122, 4294901760
      %4124 = vmatpush1.xpose.msra.mxu0 %v4123
      %4125 = vmatprep.subr.mxu0 0.0
      %v4126 = vand.u32 %v3906, 4294901760
      %v4127 = vsub.f32 %v3906, %v4126
      %v4128 = vand.u32 %v4127, 4294901760
      %v4129 = vsub.f32 %v4127, %v4128
      %v4130 = vand.u32 %v4129, 4294901760
      %4131 = vmatpush1.xpose.msra.mxu0 %v4130
      %4132 = vmatprep.subr.mxu0 0.0
      %v4133 = vand.u32 %v3909, 4294901760
      %v4134 = vsub.f32 %v3909, %v4133
      %v4135 = vand.u32 %v4134, 4294901760
      %v4136 = vsub.f32 %v4134, %v4135
      %v4137 = vand.u32 %v4136, 4294901760
      %4138 = vmatpush1.xpose.msra.mxu0 %v4137
      %4139 = vmatprep.subr.mxu0 0.0
      %v4140 = vand.u32 %v3912, 4294901760
      %v4141 = vsub.f32 %v3912, %v4140
      %v4142 = vand.u32 %v4141, 4294901760
      %v4143 = vsub.f32 %v4141, %v4142
      %v4144 = vand.u32 %v4143, 4294901760
      %4145 = vmatpush1.xpose.msra.mxu0 %v4144
      %4146 = vmatprep.subr.mxu0 0.0
      %v4147 = vand.u32 %v3915, 4294901760
      %v4148 = vsub.f32 %v3915, %v4147
      %v4149 = vand.u32 %v4148, 4294901760
      %v4150 = vsub.f32 %v4148, %v4149
      %v4151 = vand.u32 %v4150, 4294901760
      %4152 = vmatpush1.xpose.msra.mxu0 %v4151
      %4153 = vmatprep.subr.mxu0 0.0
      %v4154 = vand.u32 %v3918, 4294901760
      %v4155 = vsub.f32 %v3918, %v4154
      %v4156 = vand.u32 %v4155, 4294901760
      %v4157 = vsub.f32 %v4155, %v4156
      %v4158 = vand.u32 %v4157, 4294901760
      %4159 = vmatpush1.xpose.msra.mxu0 %v4158
      %4160 = vmatprep.subr.mxu0 0.0
      %v4161 = vand.u32 %v3921, 4294901760
      %v4162 = vsub.f32 %v3921, %v4161
      %v4163 = vand.u32 %v4162, 4294901760
      %v4164 = vsub.f32 %v4162, %v4163
      %v4165 = vand.u32 %v4164, 4294901760
      %4166 = vmatpush1.xpose.msra.mxu0 %v4165
      %4167 = vmatprep.subr.mxu0 0.0
      %v4168 = vand.u32 %v3924, 4294901760
      %v4169 = vsub.f32 %v3924, %v4168
      %v4170 = vand.u32 %v4169, 4294901760
      %v4171 = vsub.f32 %v4169, %v4170
      %v4172 = vand.u32 %v4171, 4294901760
      %4173 = vmatpush1.xpose.msra.mxu0 %v4172
      %4174 = vmatprep.subr.mxu0 0.0
      %v4175 = vand.u32 %v3927, 4294901760
      %v4176 = vsub.f32 %v3927, %v4175
      %v4177 = vand.u32 %v4176, 4294901760
      %v4178 = vsub.f32 %v4176, %v4177
      %v4179 = vand.u32 %v4178, 4294901760
      %4180 = vmatpush1.xpose.msra.mxu0 %v4179
      %4181 = vmatprep.subr.mxu0 0.0
      %4182 = vmatpush1.xpose.msra.mxu0 0.0
      %4183 = vmatprep.subr.mxu0 0.0
      %4184 = vmatpush1.xpose.msra.mxu0 0.0
      %4185 = vmatprep.subr.mxu0 0.0
      %4186 = vmatpush1.xpose.msra.mxu0 0.0
      %4187 = vmatprep.subr.mxu0 0.0
      %4188 = vmatpush1.xpose.msra.mxu0 0.0
      %4189 = vmatprep.subr.mxu0 0.0
      %4190 = vmatpush1.xpose.msra.mxu0 0.0
      %4191 = vmatprep.subr.mxu0 0.0
      %4192 = vmatpush1.xpose.msra.mxu0 0.0
      %4193 = vmatprep.subr.mxu0 0.0
      %4194 = vmatpush1.xpose.msra.mxu0 0.0
      %4195 = vmatprep.subr.mxu0 0.0
      %4196 = vmatpush1.xpose.msra.mxu0 0.0
      %4197 = vmatprep.subr.mxu0 0.0
      %4198 = vmatpush1.xpose.msra.mxu0 0.0
      %4199 = vmatprep.subr.mxu0 0.0
      %4200 = vmatpush1.xpose.msra.mxu0 0.0
      %4201 = vmatprep.mubr.f32.mxu0 0.0
      %v4202 = vand.u32 %v3861, 4294901760
      %4203 = vmatmul.mubr.f32.gmra.mrb[0].mxu0 %v4202
      %v4204 = vpop.f32.mrb[0].mxu0
      %v4205 = vadd.f32 %v4023, %v4204
      %v4206 = vpop.f32.mrb[0].mxu0
      %v4207 = vadd.f32 %v4025, %v4206
      %4208 = vdwg.mxu0
      %4209 = vmatprep.subr.mxu0 0.0
      %v4210 = vand.u32 %v3864, 4294901760
      %v4211 = vsub.f32 %v3864, %v4210
      %4212 = vmatpush1.xpose.msra.mxu0 %v4211
      %4213 = vmatprep.subr.mxu0 0.0
      %v4214 = vand.u32 %v3867, 4294901760
      %v4215 = vsub.f32 %v3867, %v4214
      %4216 = vmatpush1.xpose.msra.mxu0 %v4215
      %4217 = vmatprep.subr.mxu0 0.0
      %v4218 = vand.u32 %v3870, 4294901760
      %v4219 = vsub.f32 %v3870, %v4218
      %4220 = vmatpush1.xpose.msra.mxu0 %v4219
      %4221 = vmatprep.subr.mxu0 0.0
      %v4222 = vand.u32 %v3873, 4294901760
      %v4223 = vsub.f32 %v3873, %v4222
      %4224 = vmatpush1.xpose.msra.mxu0 %v4223
      %4225 = vmatprep.subr.mxu0 0.0
      %v4226 = vand.u32 %v3876, 4294901760
      %v4227 = vsub.f32 %v3876, %v4226
      %4228 = vmatpush1.xpose.msra.mxu0 %v4227
      %4229 = vmatprep.subr.mxu0 0.0
      %v4230 = vand.u32 %v3879, 4294901760
      %v4231 = vsub.f32 %v3879, %v4230
      %4232 = vmatpush1.xpose.msra.mxu0 %v4231
      %4233 = vmatprep.subr.mxu0 0.0
      %v4234 = vand.u32 %v3882, 4294901760
      %v4235 = vsub.f32 %v3882, %v4234
      %4236 = vmatpush1.xpose.msra.mxu0 %v4235
      %4237 = vmatprep.subr.mxu0 0.0
      %v4238 = vand.u32 %v3885, 4294901760
      %v4239 = vsub.f32 %v3885, %v4238
      %4240 = vmatpush1.xpose.msra.mxu0 %v4239
      %4241 = vmatprep.subr.mxu0 0.0
      %v4242 = vand.u32 %v3888, 4294901760
      %v4243 = vsub.f32 %v3888, %v4242
      %4244 = vmatpush1.xpose.msra.mxu0 %v4243
      %4245 = vmatprep.subr.mxu0 0.0
      %v4246 = vand.u32 %v3891, 4294901760
      %v4247 = vsub.f32 %v3891, %v4246
      %4248 = vmatpush1.xpose.msra.mxu0 %v4247
      %4249 = vmatprep.subr.mxu0 0.0
      %v4250 = vand.u32 %v3894, 4294901760
      %v4251 = vsub.f32 %v3894, %v4250
      %4252 = vmatpush1.xpose.msra.mxu0 %v4251
      %4253 = vmatprep.subr.mxu0 0.0
      %v4254 = vand.u32 %v3897, 4294901760
      %v4255 = vsub.f32 %v3897, %v4254
      %4256 = vmatpush1.xpose.msra.mxu0 %v4255
      %4257 = vmatprep.subr.mxu0 0.0
      %v4258 = vand.u32 %v3900, 4294901760
      %v4259 = vsub.f32 %v3900, %v4258
      %4260 = vmatpush1.xpose.msra.mxu0 %v4259
      %4261 = vmatprep.subr.mxu0 0.0
      %v4262 = vand.u32 %v3903, 4294901760
      %v4263 = vsub.f32 %v3903, %v4262
      %4264 = vmatpush1.xpose.msra.mxu0 %v4263
      %4265 = vmatprep.subr.mxu0 0.0
      %v4266 = vand.u32 %v3906, 4294901760
      %v4267 = vsub.f32 %v3906, %v4266
      %4268 = vmatpush1.xpose.msra.mxu0 %v4267
      %4269 = vmatprep.subr.mxu0 0.0
      %v4270 = vand.u32 %v3909, 4294901760
      %v4271 = vsub.f32 %v3909, %v4270
      %4272 = vmatpush1.xpose.msra.mxu0 %v4271
      %4273 = vmatprep.subr.mxu0 0.0
      %v4274 = vand.u32 %v3912, 4294901760
      %v4275 = vsub.f32 %v3912, %v4274
      %4276 = vmatpush1.xpose.msra.mxu0 %v4275
      %4277 = vmatprep.subr.mxu0 0.0
      %v4278 = vand.u32 %v3915, 4294901760
      %v4279 = vsub.f32 %v3915, %v4278
      %4280 = vmatpush1.xpose.msra.mxu0 %v4279
      %4281 = vmatprep.subr.mxu0 0.0
      %v4282 = vand.u32 %v3918, 4294901760
      %v4283 = vsub.f32 %v3918, %v4282
      %4284 = vmatpush1.xpose.msra.mxu0 %v4283
      %4285 = vmatprep.subr.mxu0 0.0
      %v4286 = vand.u32 %v3921, 4294901760
      %v4287 = vsub.f32 %v3921, %v4286
      %4288 = vmatpush1.xpose.msra.mxu0 %v4287
      %4289 = vmatprep.subr.mxu0 0.0
      %v4290 = vand.u32 %v3924, 4294901760
      %v4291 = vsub.f32 %v3924, %v4290
      %4292 = vmatpush1.xpose.msra.mxu0 %v4291
      %4293 = vmatprep.subr.mxu0 0.0
      %v4294 = vand.u32 %v3927, 4294901760
      %v4295 = vsub.f32 %v3927, %v4294
      %4296 = vmatpush1.xpose.msra.mxu0 %v4295
      %4297 = vmatprep.subr.mxu0 0.0
      %4298 = vmatpush1.xpose.msra.mxu0 0.0
      %4299 = vmatprep.subr.mxu0 0.0
      %4300 = vmatpush1.xpose.msra.mxu0 0.0
      %4301 = vmatprep.subr.mxu0 0.0
      %4302 = vmatpush1.xpose.msra.mxu0 0.0
      %4303 = vmatprep.subr.mxu0 0.0
      %4304 = vmatpush1.xpose.msra.mxu0 0.0
      %4305 = vmatprep.subr.mxu0 0.0
      %4306 = vmatpush1.xpose.msra.mxu0 0.0
      %4307 = vmatprep.subr.mxu0 0.0
      %4308 = vmatpush1.xpose.msra.mxu0 0.0
      %4309 = vmatprep.subr.mxu0 0.0
      %4310 = vmatpush1.xpose.msra.mxu0 0.0
      %4311 = vmatprep.subr.mxu0 0.0
      %4312 = vmatpush1.xpose.msra.mxu0 0.0
      %4313 = vmatprep.subr.mxu0 0.0
      %4314 = vmatpush1.xpose.msra.mxu0 0.0
      %4315 = vmatprep.subr.mxu0 0.0
      %4316 = vmatpush1.xpose.msra.mxu0 0.0
      %4317 = vmatprep.mubr.f32.mxu0 0.0
      %v4318 = vand.u32 %v3861, 4294901760
      %v4319 = vsub.f32 %v3861, %v4318
      %4320 = vmatmul.mubr.f32.gmra.mrb[0].mxu0 %v4319
      %v4321 = vpop.f32.mrb[0].mxu0
      %v4322 = vadd.f32 %v4205, %v4321
      %v4323 = vpop.f32.mrb[0].mxu0
      %v4324 = vadd.f32 %v4207, %v4323
      %4325 = vdwg.mxu0
      %4326 = vmatprep.subr.mxu0 0.0
      %v4327 = vand.u32 %v3864, 4294901760
      %4328 = vmatpush1.xpose.msra.mxu0 %v4327
      %4329 = vmatprep.subr.mxu0 0.0
      %v4330 = vand.u32 %v3867, 4294901760
      %4331 = vmatpush1.xpose.msra.mxu0 %v4330
      %4332 = vmatprep.subr.mxu0 0.0
      %v4333 = vand.u32 %v3870, 4294901760
      %4334 = vmatpush1.xpose.msra.mxu0 %v4333
      %4335 = vmatprep.subr.mxu0 0.0
      %v4336 = vand.u32 %v3873, 4294901760
      %4337 = vmatpush1.xpose.msra.mxu0 %v4336
      %4338 = vmatprep.subr.mxu0 0.0
      %v4339 = vand.u32 %v3876, 4294901760
      %4340 = vmatpush1.xpose.msra.mxu0 %v4339
      %4341 = vmatprep.subr.mxu0 0.0
      %v4342 = vand.u32 %v3879, 4294901760
      %4343 = vmatpush1.xpose.msra.mxu0 %v4342
      %4344 = vmatprep.subr.mxu0 0.0
      %v4345 = vand.u32 %v3882, 4294901760
      %4346 = vmatpush1.xpose.msra.mxu0 %v4345
      %4347 = vmatprep.subr.mxu0 0.0
      %v4348 = vand.u32 %v3885, 4294901760
      %4349 = vmatpush1.xpose.msra.mxu0 %v4348
      %4350 = vmatprep.subr.mxu0 0.0
      %v4351 = vand.u32 %v3888, 4294901760
      %4352 = vmatpush1.xpose.msra.mxu0 %v4351
      %4353 = vmatprep.subr.mxu0 0.0
      %v4354 = vand.u32 %v3891, 4294901760
      %4355 = vmatpush1.xpose.msra.mxu0 %v4354
      %4356 = vmatprep.subr.mxu0 0.0
      %v4357 = vand.u32 %v3894, 4294901760
      %4358 = vmatpush1.xpose.msra.mxu0 %v4357
      %4359 = vmatprep.subr.mxu0 0.0
      %v4360 = vand.u32 %v3897, 4294901760
      %4361 = vmatpush1.xpose.msra.mxu0 %v4360
      %4362 = vmatprep.subr.mxu0 0.0
      %v4363 = vand.u32 %v3900, 4294901760
      %4364 = vmatpush1.xpose.msra.mxu0 %v4363
      %4365 = vmatprep.subr.mxu0 0.0
      %v4366 = vand.u32 %v3903, 4294901760
      %4367 = vmatpush1.xpose.msra.mxu0 %v4366
      %4368 = vmatprep.subr.mxu0 0.0
      %v4369 = vand.u32 %v3906, 4294901760
      %4370 = vmatpush1.xpose.msra.mxu0 %v4369
      %4371 = vmatprep.subr.mxu0 0.0
      %v4372 = vand.u32 %v3909, 4294901760
      %4373 = vmatpush1.xpose.msra.mxu0 %v4372
      %4374 = vmatprep.subr.mxu0 0.0
      %v4375 = vand.u32 %v3912, 4294901760
      %4376 = vmatpush1.xpose.msra.mxu0 %v4375
      %4377 = vmatprep.subr.mxu0 0.0
      %v4378 = vand.u32 %v3915, 4294901760
      %4379 = vmatpush1.xpose.msra.mxu0 %v4378
      %4380 = vmatprep.subr.mxu0 0.0
      %v4381 = vand.u32 %v3918, 4294901760
      %4382 = vmatpush1.xpose.msra.mxu0 %v4381
      %4383 = vmatprep.subr.mxu0 0.0
      %v4384 = vand.u32 %v3921, 4294901760
      %4385 = vmatpush1.xpose.msra.mxu0 %v4384
      %4386 = vmatprep.subr.mxu0 0.0
      %v4387 = vand.u32 %v3924, 4294901760
      %4388 = vmatpush1.xpose.msra.mxu0 %v4387
      %4389 = vmatprep.subr.mxu0 0.0
      %v4390 = vand.u32 %v3927, 4294901760
      %4391 = vmatpush1.xpose.msra.mxu0 %v4390
      %4392 = vmatprep.subr.mxu0 0.0
      %4393 = vmatpush1.xpose.msra.mxu0 0.0
      %4394 = vmatprep.subr.mxu0 0.0
      %4395 = vmatpush1.xpose.msra.mxu0 0.0
      %4396 = vmatprep.subr.mxu0 0.0
      %4397 = vmatpush1.xpose.msra.mxu0 0.0
      %4398 = vmatprep.subr.mxu0 0.0
      %4399 = vmatpush1.xpose.msra.mxu0 0.0
      %4400 = vmatprep.subr.mxu0 0.0
      %4401 = vmatpush1.xpose.msra.mxu0 0.0
      %4402 = vmatprep.subr.mxu0 0.0
      %4403 = vmatpush1.xpose.msra.mxu0 0.0
      %4404 = vmatprep.subr.mxu0 0.0
      %4405 = vmatpush1.xpose.msra.mxu0 0.0
      %4406 = vmatprep.subr.mxu0 0.0
      %4407 = vmatpush1.xpose.msra.mxu0 0.0
      %4408 = vmatprep.subr.mxu0 0.0
      %4409 = vmatpush1.xpose.msra.mxu0 0.0
      %4410 = vmatprep.subr.mxu0 0.0
      %4411 = vmatpush1.xpose.msra.mxu0 0.0
      %4412 = vmatprep.mubr.f32.mxu0 0.0
      %v4413 = vand.u32 %v3861, 4294901760
      %v4414 = vsub.f32 %v3861, %v4413
      %v4415 = vand.u32 %v4414, 4294901760
      %4416 = vmatmul.mubr.f32.gmra.mrb[0].mxu0 %v4415
      %v4417 = vpop.f32.mrb[0].mxu0
      %v4418 = vadd.f32 %v4322, %v4417
      %v4419 = vpop.f32.mrb[0].mxu0
      %v4420 = vadd.f32 %v4324, %v4419
      %4421 = vdwg.mxu0
      %4422 = vmatprep.subr.mxu0 0.0
      %v4423 = vand.u32 %v3864, 4294901760
      %v4424 = vsub.f32 %v3864, %v4423
      %v4425 = vand.u32 %v4424, 4294901760
      %4426 = vmatpush1.xpose.msra.mxu0 %v4425
      %4427 = vmatprep.subr.mxu0 0.0
      %v4428 = vand.u32 %v3867, 4294901760
      %v4429 = vsub.f32 %v3867, %v4428
      %v4430 = vand.u32 %v4429, 4294901760
      %4431 = vmatpush1.xpose.msra.mxu0 %v4430
      %4432 = vmatprep.subr.mxu0 0.0
      %v4433 = vand.u32 %v3870, 4294901760
      %v4434 = vsub.f32 %v3870, %v4433
      %v4435 = vand.u32 %v4434, 4294901760
      %4436 = vmatpush1.xpose.msra.mxu0 %v4435
      %4437 = vmatprep.subr.mxu0 0.0
      %v4438 = vand.u32 %v3873, 4294901760
      %v4439 = vsub.f32 %v3873, %v4438
      %v4440 = vand.u32 %v4439, 4294901760
      %4441 = vmatpush1.xpose.msra.mxu0 %v4440
      %4442 = vmatprep.subr.mxu0 0.0
      %v4443 = vand.u32 %v3876, 4294901760
      %v4444 = vsub.f32 %v3876, %v4443
      %v4445 = vand.u32 %v4444, 4294901760
      %4446 = vmatpush1.xpose.msra.mxu0 %v4445
      %4447 = vmatprep.subr.mxu0 0.0
      %v4448 = vand.u32 %v3879, 4294901760
      %v4449 = vsub.f32 %v3879, %v4448
      %v4450 = vand.u32 %v4449, 4294901760
      %4451 = vmatpush1.xpose.msra.mxu0 %v4450
      %4452 = vmatprep.subr.mxu0 0.0
      %v4453 = vand.u32 %v3882, 4294901760
      %v4454 = vsub.f32 %v3882, %v4453
      %v4455 = vand.u32 %v4454, 4294901760
      %4456 = vmatpush1.xpose.msra.mxu0 %v4455
      %4457 = vmatprep.subr.mxu0 0.0
      %v4458 = vand.u32 %v3885, 4294901760
      %v4459 = vsub.f32 %v3885, %v4458
      %v4460 = vand.u32 %v4459, 4294901760
      %4461 = vmatpush1.xpose.msra.mxu0 %v4460
      %4462 = vmatprep.subr.mxu0 0.0
      %v4463 = vand.u32 %v3888, 4294901760
      %v4464 = vsub.f32 %v3888, %v4463
      %v4465 = vand.u32 %v4464, 4294901760
      %4466 = vmatpush1.xpose.msra.mxu0 %v4465
      %4467 = vmatprep.subr.mxu0 0.0
      %v4468 = vand.u32 %v3891, 4294901760
      %v4469 = vsub.f32 %v3891, %v4468
      %v4470 = vand.u32 %v4469, 4294901760
      %4471 = vmatpush1.xpose.msra.mxu0 %v4470
      %4472 = vmatprep.subr.mxu0 0.0
      %v4473 = vand.u32 %v3894, 4294901760
      %v4474 = vsub.f32 %v3894, %v4473
      %v4475 = vand.u32 %v4474, 4294901760
      %4476 = vmatpush1.xpose.msra.mxu0 %v4475
      %4477 = vmatprep.subr.mxu0 0.0
      %v4478 = vand.u32 %v3897, 4294901760
      %v4479 = vsub.f32 %v3897, %v4478
      %v4480 = vand.u32 %v4479, 4294901760
      %4481 = vmatpush1.xpose.msra.mxu0 %v4480
      %4482 = vmatprep.subr.mxu0 0.0
      %v4483 = vand.u32 %v3900, 4294901760
      %v4484 = vsub.f32 %v3900, %v4483
      %v4485 = vand.u32 %v4484, 4294901760
      %4486 = vmatpush1.xpose.msra.mxu0 %v4485
      %4487 = vmatprep.subr.mxu0 0.0
      %v4488 = vand.u32 %v3903, 4294901760
      %v4489 = vsub.f32 %v3903, %v4488
      %v4490 = vand.u32 %v4489, 4294901760
      %4491 = vmatpush1.xpose.msra.mxu0 %v4490
      %4492 = vmatprep.subr.mxu0 0.0
      %v4493 = vand.u32 %v3906, 4294901760
      %v4494 = vsub.f32 %v3906, %v4493
      %v4495 = vand.u32 %v4494, 4294901760
      %4496 = vmatpush1.xpose.msra.mxu0 %v4495
      %4497 = vmatprep.subr.mxu0 0.0
      %v4498 = vand.u32 %v3909, 4294901760
      %v4499 = vsub.f32 %v3909, %v4498
      %v4500 = vand.u32 %v4499, 4294901760
      %4501 = vmatpush1.xpose.msra.mxu0 %v4500
      %4502 = vmatprep.subr.mxu0 0.0
      %v4503 = vand.u32 %v3912, 4294901760
      %v4504 = vsub.f32 %v3912, %v4503
      %v4505 = vand.u32 %v4504, 4294901760
      %4506 = vmatpush1.xpose.msra.mxu0 %v4505
      %4507 = vmatprep.subr.mxu0 0.0
      %v4508 = vand.u32 %v3915, 4294901760
      %v4509 = vsub.f32 %v3915, %v4508
      %v4510 = vand.u32 %v4509, 4294901760
      %4511 = vmatpush1.xpose.msra.mxu0 %v4510
      %4512 = vmatprep.subr.mxu0 0.0
      %v4513 = vand.u32 %v3918, 4294901760
      %v4514 = vsub.f32 %v3918, %v4513
      %v4515 = vand.u32 %v4514, 4294901760
      %4516 = vmatpush1.xpose.msra.mxu0 %v4515
      %4517 = vmatprep.subr.mxu0 0.0
      %v4518 = vand.u32 %v3921, 4294901760
      %v4519 = vsub.f32 %v3921, %v4518
      %v4520 = vand.u32 %v4519, 4294901760
      %4521 = vmatpush1.xpose.msra.mxu0 %v4520
      %4522 = vmatprep.subr.mxu0 0.0
      %v4523 = vand.u32 %v3924, 4294901760
      %v4524 = vsub.f32 %v3924, %v4523
      %v4525 = vand.u32 %v4524, 4294901760
      %4526 = vmatpush1.xpose.msra.mxu0 %v4525
      %4527 = vmatprep.subr.mxu0 0.0
      %v4528 = vand.u32 %v3927, 4294901760
      %v4529 = vsub.f32 %v3927, %v4528
      %v4530 = vand.u32 %v4529, 4294901760
      %4531 = vmatpush1.xpose.msra.mxu0 %v4530
      %4532 = vmatprep.subr.mxu0 0.0
      %4533 = vmatpush1.xpose.msra.mxu0 0.0
      %4534 = vmatprep.subr.mxu0 0.0
      %4535 = vmatpush1.xpose.msra.mxu0 0.0
      %4536 = vmatprep.subr.mxu0 0.0
      %4537 = vmatpush1.xpose.msra.mxu0 0.0
      %4538 = vmatprep.subr.mxu0 0.0
      %4539 = vmatpush1.xpose.msra.mxu0 0.0
      %4540 = vmatprep.subr.mxu0 0.0
      %4541 = vmatpush1.xpose.msra.mxu0 0.0
      %4542 = vmatprep.subr.mxu0 0.0
      %4543 = vmatpush1.xpose.msra.mxu0 0.0
      %4544 = vmatprep.subr.mxu0 0.0
      %4545 = vmatpush1.xpose.msra.mxu0 0.0
      %4546 = vmatprep.subr.mxu0 0.0
      %4547 = vmatpush1.xpose.msra.mxu0 0.0
      %4548 = vmatprep.subr.mxu0 0.0
      %4549 = vmatpush1.xpose.msra.mxu0 0.0
      %4550 = vmatprep.subr.mxu0 0.0
      %4551 = vmatpush1.xpose.msra.mxu0 0.0
      %4552 = vmatprep.mubr.f32.mxu0 0.0
      %v4553 = vand.u32 %v3861, 4294901760
      %4554 = vmatmul.mubr.f32.gmra.mrb[0].mxu0 %v4553
      %v4555 = vpop.f32.mrb[0].mxu0
      %v4556 = vadd.f32 %v4418, %v4555
      %v4557 = vpop.f32.mrb[0].mxu0
      %v4558 = vadd.f32 %v4420, %v4557
      %4559 = vdwg.mxu0
      %4560 = vmatprep.subr.mxu0 0.0
      %v4561 = vand.u32 %v3864, 4294901760
      %4562 = vmatpush1.xpose.msra.mxu0 %v4561
      %4563 = vmatprep.subr.mxu0 0.0
      %v4564 = vand.u32 %v3867, 4294901760
      %4565 = vmatpush1.xpose.msra.mxu0 %v4564
      %4566 = vmatprep.subr.mxu0 0.0
      %v4567 = vand.u32 %v3870, 4294901760
      %4568 = vmatpush1.xpose.msra.mxu0 %v4567
      %4569 = vmatprep.subr.mxu0 0.0
      %v4570 = vand.u32 %v3873, 4294901760
      %4571 = vmatpush1.xpose.msra.mxu0 %v4570
      %4572 = vmatprep.subr.mxu0 0.0
      %v4573 = vand.u32 %v3876, 4294901760
      %4574 = vmatpush1.xpose.msra.mxu0 %v4573
      %4575 = vmatprep.subr.mxu0 0.0
      %v4576 = vand.u32 %v3879, 4294901760
      %4577 = vmatpush1.xpose.msra.mxu0 %v4576
      %4578 = vmatprep.subr.mxu0 0.0
      %v4579 = vand.u32 %v3882, 4294901760
      %4580 = vmatpush1.xpose.msra.mxu0 %v4579
      %4581 = vmatprep.subr.mxu0 0.0
      %v4582 = vand.u32 %v3885, 4294901760
      %4583 = vmatpush1.xpose.msra.mxu0 %v4582
      %4584 = vmatprep.subr.mxu0 0.0
      %v4585 = vand.u32 %v3888, 4294901760
      %4586 = vmatpush1.xpose.msra.mxu0 %v4585
      %4587 = vmatprep.subr.mxu0 0.0
      %v4588 = vand.u32 %v3891, 4294901760
      %4589 = vmatpush1.xpose.msra.mxu0 %v4588
      %4590 = vmatprep.subr.mxu0 0.0
      %v4591 = vand.u32 %v3894, 4294901760
      %4592 = vmatpush1.xpose.msra.mxu0 %v4591
      %4593 = vmatprep.subr.mxu0 0.0
      %v4594 = vand.u32 %v3897, 4294901760
      %4595 = vmatpush1.xpose.msra.mxu0 %v4594
      %4596 = vmatprep.subr.mxu0 0.0
      %v4597 = vand.u32 %v3900, 4294901760
      %4598 = vmatpush1.xpose.msra.mxu0 %v4597
      %4599 = vmatprep.subr.mxu0 0.0
      %v4600 = vand.u32 %v3903, 4294901760
      %4601 = vmatpush1.xpose.msra.mxu0 %v4600
      %4602 = vmatprep.subr.mxu0 0.0
      %v4603 = vand.u32 %v3906, 4294901760
      %4604 = vmatpush1.xpose.msra.mxu0 %v4603
      %4605 = vmatprep.subr.mxu0 0.0
      %v4606 = vand.u32 %v3909, 4294901760
      %4607 = vmatpush1.xpose.msra.mxu0 %v4606
      %4608 = vmatprep.subr.mxu0 0.0
      %v4609 = vand.u32 %v3912, 4294901760
      %4610 = vmatpush1.xpose.msra.mxu0 %v4609
      %4611 = vmatprep.subr.mxu0 0.0
      %v4612 = vand.u32 %v3915, 4294901760
      %4613 = vmatpush1.xpose.msra.mxu0 %v4612
      %4614 = vmatprep.subr.mxu0 0.0
      %v4615 = vand.u32 %v3918, 4294901760
      %4616 = vmatpush1.xpose.msra.mxu0 %v4615
      %4617 = vmatprep.subr.mxu0 0.0
      %v4618 = vand.u32 %v3921, 4294901760
      %4619 = vmatpush1.xpose.msra.mxu0 %v4618
      %4620 = vmatprep.subr.mxu0 0.0
      %v4621 = vand.u32 %v3924, 4294901760
      %4622 = vmatpush1.xpose.msra.mxu0 %v4621
      %4623 = vmatprep.subr.mxu0 0.0
      %v4624 = vand.u32 %v3927, 4294901760
      %4625 = vmatpush1.xpose.msra.mxu0 %v4624
      %4626 = vmatprep.subr.mxu0 0.0
      %4627 = vmatpush1.xpose.msra.mxu0 0.0
      %4628 = vmatprep.subr.mxu0 0.0
      %4629 = vmatpush1.xpose.msra.mxu0 0.0
      %4630 = vmatprep.subr.mxu0 0.0
      %4631 = vmatpush1.xpose.msra.mxu0 0.0
      %4632 = vmatprep.subr.mxu0 0.0
      %4633 = vmatpush1.xpose.msra.mxu0 0.0
      %4634 = vmatprep.subr.mxu0 0.0
      %4635 = vmatpush1.xpose.msra.mxu0 0.0
      %4636 = vmatprep.subr.mxu0 0.0
      %4637 = vmatpush1.xpose.msra.mxu0 0.0
      %4638 = vmatprep.subr.mxu0 0.0
      %4639 = vmatpush1.xpose.msra.mxu0 0.0
      %4640 = vmatprep.subr.mxu0 0.0
      %4641 = vmatpush1.xpose.msra.mxu0 0.0
      %4642 = vmatprep.subr.mxu0 0.0
      %4643 = vmatpush1.xpose.msra.mxu0 0.0
      %4644 = vmatprep.subr.mxu0 0.0
      %4645 = vmatpush1.xpose.msra.mxu0 0.0
      %4646 = vmatprep.mubr.f32.mxu0 0.0
      %v4647 = vand.u32 %v3861, 4294901760
      %4648 = vmatmul.mubr.f32.gmra.mrb[0].mxu0 %v4647
      %v4649 = vpop.f32.mrb[0].mxu0
      %v4650 = vadd.f32 %v4556, %v4649
      %v4651 = vpop.f32.mrb[0].mxu0
      %v4652 = vadd.f32 %v4558, %v4651
      %4653 = vdwg.mxu0
      %v4654 = vld [vmem:[#allocation2] sm:$0x3]
      %v4657 = vcombine.low %v4650, %v4652
      %v4659 = vunpack.c.l.s4 1966171168
      %v4660 = vunpack.c.0.s8 %v4659
      %v4661 = vlaneseq
      %v4662 = vshrl.u32 %v4661, 7
      %v4663 = vsub.s32 %v4660, %v4662
      %v4664 = vrot.slane %v4657, %v4663
      %v4666 = vunpack.c.l.s4 1966171168
      %v4667 = vunpack.c.0.s8 %v4666
      %v4668 = vlaneseq
      %v4669 = vshrl.u32 %v4668, 7
      %v4670 = vsub.s32 %v4667, %v4669
      %v4671 = vrot.slane %v4664, %v4670
      %v4673 = vadd.f32 %v4654, %v4671
      %4674 = vst.msk [vmem:[#allocation2] sm:$0x3] %vm1006, %v4673
      %v4675 = vld [vmem:[#allocation2] sm:$0x3]
      %v4676 = vcombine.high %v4664, %v4664
      %v4678 = vunpack.c.l.s4 1966171168
      %v4679 = vunpack.c.0.s8 %v4678
      %v4680 = vlaneseq
      %v4681 = vshrl.u32 %v4680, 7
      %v4682 = vsub.s32 %v4679, %v4681
      %v4683 = vrot.slane %v4676, %v4682
      %4684 = vrot.lane.b32.xlu0 %v4683, 127
      %v4685 = vpop.permute.xlu0 %4684
      %v4686 = vrot.slane %v4685, 1
      %v4687 = vsel %vm1020, %v4685, %v4686
      %v4689 = vadd.f32 %v4675, %v4687
      %4690 = vst.msk [vmem:[#allocation2] sm:$0x3] %vm1025, %v4689
      %v4691 = vld [vmem:[#allocation2] sm:$0x3]
      %v4692 = vcombine.high %v4671, %v4671
      %4693 = vrot.lane.b32.xlu0 %v4692, 126
      %v4694 = vpop.permute.xlu0 %4693
      %v4695 = vrot.slane %v4694, 1
      %v4696 = vsel %vm1032, %v4694, %v4695
      %v4698 = vadd.f32 %v4691, %v4696
      %4699 = vst.msk [vmem:[#allocation2] sm:$0x3] %vm1037, %v4698
      %v4700 = vld [vmem:[#allocation2] sm:$0x3]
      %v4701 = vcombine.high %v4683, %v4683
      %4702 = vrot.lane.b32.xlu0 %v4701, 125
      %v4703 = vpop.permute.xlu0 %4702
      %v4704 = vrot.slane %v4703, 1
      %v4705 = vsel %vm1044, %v4703, %v4704
      %v4707 = vadd.f32 %v4700, %v4705
      %4708 = vst.msk [vmem:[#allocation2] sm:$0x3] %vm1049, %v4707
      %v4709 = vld [vmem:[#allocation2] sm:$0x3]
      %v4710 = vcombine.high %v4650, %v4652
      %v4712 = vunpack.c.l.s4 1966171168
      %v4713 = vunpack.c.0.s8 %v4712
      %v4714 = vlaneseq
      %v4715 = vshrl.u32 %v4714, 7
      %v4716 = vsub.s32 %v4713, %v4715
      %v4717 = vrot.slane %v4710, %v4716
      %v4719 = vunpack.c.l.s4 1966171168
      %v4720 = vunpack.c.0.s8 %v4719
      %v4721 = vlaneseq
      %v4722 = vshrl.u32 %v4721, 7
      %v4723 = vsub.s32 %v4720, %v4722
      %v4724 = vrot.slane %v4717, %v4723
      %4725 = vrot.lane.b32.xlu0 %v4724, 124
      %v4726 = vpop.permute.xlu0 %4725
      %v4727 = vrot.slane %v4726, 1
      %v4728 = vsel %vm1070, %v4726, %v4727
      %v4730 = vadd.f32 %v4709, %v4728
      %4731 = vst.msk [vmem:[#allocation2] sm:$0x3] %vm1075, %v4730
      %v4732 = vld [vmem:[#allocation2] sm:$0x3]
      %v4733 = vcombine.high %v4717, %v4717
      %v4735 = vunpack.c.l.s4 1966171168
      %v4736 = vunpack.c.0.s8 %v4735
      %v4737 = vlaneseq
      %v4738 = vshrl.u32 %v4737, 7
      %v4739 = vsub.s32 %v4736, %v4738
      %v4740 = vrot.slane %v4733, %v4739
      %4741 = vrot.lane.b32.xlu0 %v4740, 123
      %v4742 = vpop.permute.xlu0 %4741
      %v4743 = vrot.slane %v4742, 1
      %v4744 = vsel %vm1089, %v4742, %v4743
      %v4746 = vadd.f32 %v4732, %v4744
      %4747 = vst.msk [vmem:[#allocation2] sm:$0x3] %vm1094, %v4746
      %s4748 = scalar_lea.vmem %s157, 80
      %v4749 = vld [vmem:[%s4748] sm:$0xff]
      %v4750 = vld [vmem:[%s4748 + $0x8] sm:$0xff]
      %v4751 = vld [vmem:[%s4748 + $0x10] sm:$0xff]
      %v4752 = vld [vmem:[%s4748 + $0x18] sm:$0xff]
      %v4753 = vld [vmem:[%s4748 + $0x20] sm:$0xff]
      %v4754 = vld [vmem:[%s4748 + $0x28] sm:$0xff]
      %v4755 = vld [vmem:[%s4748 + $0x30] sm:$0xff]
      %v4756 = vld [vmem:[%s4748 + $0x38] sm:$0xff]
      %v4757 = vld [vmem:[%s4748 + $0x40] sm:$0xff]
      %v4758 = vld [vmem:[%s4748 + $0x48] sm:$0xff]
      %v4759 = vld [vmem:[%s4748 + $0x50] sm:$0xff]
      %v4760 = vld [vmem:[%s4748 + $0x58] sm:$0xff]
      %v4761 = vld [vmem:[%s4748 + $0x60] sm:$0xff]
      %v4762 = vld [vmem:[%s4748 + $0x68] sm:$0xff]
      %v4763 = vld [vmem:[%s4748 + $0x70] sm:$0xff]
      %v4764 = vld [vmem:[%s4748 + $0x78] sm:$0xff]
      %v4765 = vld [vmem:[%s4748 + $0x80] sm:$0xff]
      %v4766 = vld [vmem:[%s4748 + $0x88] sm:$0xff]
      %v4767 = vld [vmem:[%s4748 + $0x90] sm:$0xff]
      %v4768 = vld [vmem:[%s4748 + $0x98] sm:$0xff]
      %v4769 = vld [vmem:[%s4748 + $0xa0] sm:$0xff]
      %v4770 = vld [vmem:[%s4748 + $0xa8] sm:$0xff]
      %s4771 = scalar_lea.vmem %s152, 40
      %v4772 = vld [vmem:[%s4771] sm:$0x3f]
      %v4774 = vsel %vm190, %v4772, 0
      %v4777 = vsel %vm190, %v4749, 0
      %v4780 = vsel %vm190, %v4750, 0
      %v4783 = vsel %vm190, %v4751, 0
      %v4786 = vsel %vm190, %v4752, 0
      %v4789 = vsel %vm190, %v4753, 0
      %v4792 = vsel %vm190, %v4754, 0
      %v4795 = vsel %vm190, %v4755, 0
      %v4798 = vsel %vm190, %v4756, 0
      %v4801 = vsel %vm190, %v4757, 0
      %v4804 = vsel %vm190, %v4758, 0
      %v4807 = vsel %vm190, %v4759, 0
      %v4810 = vsel %vm190, %v4760, 0
      %v4813 = vsel %vm190, %v4761, 0
      %v4816 = vsel %vm190, %v4762, 0
      %v4819 = vsel %vm190, %v4763, 0
      %v4822 = vsel %vm190, %v4764, 0
      %v4825 = vsel %vm190, %v4765, 0
      %v4828 = vsel %vm190, %v4766, 0
      %v4831 = vsel %vm190, %v4767, 0
      %v4834 = vsel %vm190, %v4768, 0
      %v4837 = vsel %vm190, %v4769, 0
      %v4840 = vsel %vm190, %v4770, 0
      %4842 = vmatprep.subr.mxu0 0.0
      %v4843 = vand.u32 %v4777, 4294901760
      %4844 = vmatpush1.xpose.msra.mxu0 %v4843
      %4845 = vmatprep.subr.mxu0 0.0
      %v4846 = vand.u32 %v4780, 4294901760
      %4847 = vmatpush1.xpose.msra.mxu0 %v4846
      %4848 = vmatprep.subr.mxu0 0.0
      %v4849 = vand.u32 %v4783, 4294901760
      %4850 = vmatpush1.xpose.msra.mxu0 %v4849
      %4851 = vmatprep.subr.mxu0 0.0
      %v4852 = vand.u32 %v4786, 4294901760
      %4853 = vmatpush1.xpose.msra.mxu0 %v4852
      %4854 = vmatprep.subr.mxu0 0.0
      %v4855 = vand.u32 %v4789, 4294901760
      %4856 = vmatpush1.xpose.msra.mxu0 %v4855
      %4857 = vmatprep.subr.mxu0 0.0
      %v4858 = vand.u32 %v4792, 4294901760
      %4859 = vmatpush1.xpose.msra.mxu0 %v4858
      %4860 = vmatprep.subr.mxu0 0.0
      %v4861 = vand.u32 %v4795, 4294901760
      %4862 = vmatpush1.xpose.msra.mxu0 %v4861
      %4863 = vmatprep.subr.mxu0 0.0
      %v4864 = vand.u32 %v4798, 4294901760
      %4865 = vmatpush1.xpose.msra.mxu0 %v4864
      %4866 = vmatprep.subr.mxu0 0.0
      %v4867 = vand.u32 %v4801, 4294901760
      %4868 = vmatpush1.xpose.msra.mxu0 %v4867
      %4869 = vmatprep.subr.mxu0 0.0
      %v4870 = vand.u32 %v4804, 4294901760
      %4871 = vmatpush1.xpose.msra.mxu0 %v4870
      %4872 = vmatprep.subr.mxu0 0.0
      %v4873 = vand.u32 %v4807, 4294901760
      %4874 = vmatpush1.xpose.msra.mxu0 %v4873
      %4875 = vmatprep.subr.mxu0 0.0
      %v4876 = vand.u32 %v4810, 4294901760
      %4877 = vmatpush1.xpose.msra.mxu0 %v4876
      %4878 = vmatprep.subr.mxu0 0.0
      %v4879 = vand.u32 %v4813, 4294901760
      %4880 = vmatpush1.xpose.msra.mxu0 %v4879
      %4881 = vmatprep.subr.mxu0 0.0
      %v4882 = vand.u32 %v4816, 4294901760
      %4883 = vmatpush1.xpose.msra.mxu0 %v4882
      %4884 = vmatprep.subr.mxu0 0.0
      %v4885 = vand.u32 %v4819, 4294901760
      %4886 = vmatpush1.xpose.msra.mxu0 %v4885
      %4887 = vmatprep.subr.mxu0 0.0
      %v4888 = vand.u32 %v4822, 4294901760
      %4889 = vmatpush1.xpose.msra.mxu0 %v4888
      %4890 = vmatprep.subr.mxu0 0.0
      %v4891 = vand.u32 %v4825, 4294901760
      %4892 = vmatpush1.xpose.msra.mxu0 %v4891
      %4893 = vmatprep.subr.mxu0 0.0
      %v4894 = vand.u32 %v4828, 4294901760
      %4895 = vmatpush1.xpose.msra.mxu0 %v4894
      %4896 = vmatprep.subr.mxu0 0.0
      %v4897 = vand.u32 %v4831, 4294901760
      %4898 = vmatpush1.xpose.msra.mxu0 %v4897
      %4899 = vmatprep.subr.mxu0 0.0
      %v4900 = vand.u32 %v4834, 4294901760
      %4901 = vmatpush1.xpose.msra.mxu0 %v4900
      %4902 = vmatprep.subr.mxu0 0.0
      %v4903 = vand.u32 %v4837, 4294901760
      %4904 = vmatpush1.xpose.msra.mxu0 %v4903
      %4905 = vmatprep.subr.mxu0 0.0
      %v4906 = vand.u32 %v4840, 4294901760
      %4907 = vmatpush1.xpose.msra.mxu0 %v4906
      %4908 = vmatprep.subr.mxu0 0.0
      %4909 = vmatpush1.xpose.msra.mxu0 0.0
      %4910 = vmatprep.subr.mxu0 0.0
      %4911 = vmatpush1.xpose.msra.mxu0 0.0
      %4912 = vmatprep.subr.mxu0 0.0
      %4913 = vmatpush1.xpose.msra.mxu0 0.0
      %4914 = vmatprep.subr.mxu0 0.0
      %4915 = vmatpush1.xpose.msra.mxu0 0.0
      %4916 = vmatprep.subr.mxu0 0.0
      %4917 = vmatpush1.xpose.msra.mxu0 0.0
      %4918 = vmatprep.subr.mxu0 0.0
      %4919 = vmatpush1.xpose.msra.mxu0 0.0
      %4920 = vmatprep.subr.mxu0 0.0
      %4921 = vmatpush1.xpose.msra.mxu0 0.0
      %4922 = vmatprep.subr.mxu0 0.0
      %4923 = vmatpush1.xpose.msra.mxu0 0.0
      %4924 = vmatprep.subr.mxu0 0.0
      %4925 = vmatpush1.xpose.msra.mxu0 0.0
      %4926 = vmatprep.subr.mxu0 0.0
      %4927 = vmatpush1.xpose.msra.mxu0 0.0
      %4928 = vmatprep.mubr.f32.mxu0 0.0
      %v4929 = vand.u32 %v4774, 4294901760
      %v4930 = vsub.f32 %v4774, %v4929
      %v4931 = vand.u32 %v4930, 4294901760
      %v4932 = vsub.f32 %v4930, %v4931
      %v4933 = vand.u32 %v4932, 4294901760
      %4934 = vmatmul.mubr.f32.gmra.mrb[0].mxu0 %v4933
      %v4935 = vpop.f32.mrb[0].mxu0
      %v4936 = vadd.f32 0.0, %v4935
      %v4937 = vpop.f32.mrb[0].mxu0
      %v4938 = vadd.f32 0.0, %v4937
      %4939 = vdwg.mxu0
      %4940 = vmatprep.subr.mxu0 0.0
      %v4941 = vand.u32 %v4777, 4294901760
      %v4942 = vsub.f32 %v4777, %v4941
      %v4943 = vand.u32 %v4942, 4294901760
      %v4944 = vsub.f32 %v4942, %v4943
      %v4945 = vand.u32 %v4944, 4294901760
      %4946 = vmatpush1.xpose.msra.mxu0 %v4945
      %4947 = vmatprep.subr.mxu0 0.0
      %v4948 = vand.u32 %v4780, 4294901760
      %v4949 = vsub.f32 %v4780, %v4948
      %v4950 = vand.u32 %v4949, 4294901760
      %v4951 = vsub.f32 %v4949, %v4950
      %v4952 = vand.u32 %v4951, 4294901760
      %4953 = vmatpush1.xpose.msra.mxu0 %v4952
      %4954 = vmatprep.subr.mxu0 0.0
      %v4955 = vand.u32 %v4783, 4294901760
      %v4956 = vsub.f32 %v4783, %v4955
      %v4957 = vand.u32 %v4956, 4294901760
      %v4958 = vsub.f32 %v4956, %v4957
      %v4959 = vand.u32 %v4958, 4294901760
      %4960 = vmatpush1.xpose.msra.mxu0 %v4959
      %4961 = vmatprep.subr.mxu0 0.0
      %v4962 = vand.u32 %v4786, 4294901760
      %v4963 = vsub.f32 %v4786, %v4962
      %v4964 = vand.u32 %v4963, 4294901760
      %v4965 = vsub.f32 %v4963, %v4964
      %v4966 = vand.u32 %v4965, 4294901760
      %4967 = vmatpush1.xpose.msra.mxu0 %v4966
      %4968 = vmatprep.subr.mxu0 0.0
      %v4969 = vand.u32 %v4789, 4294901760
      %v4970 = vsub.f32 %v4789, %v4969
      %v4971 = vand.u32 %v4970, 4294901760
      %v4972 = vsub.f32 %v4970, %v4971
      %v4973 = vand.u32 %v4972, 4294901760
      %4974 = vmatpush1.xpose.msra.mxu0 %v4973
      %4975 = vmatprep.subr.mxu0 0.0
      %v4976 = vand.u32 %v4792, 4294901760
      %v4977 = vsub.f32 %v4792, %v4976
      %v4978 = vand.u32 %v4977, 4294901760
      %v4979 = vsub.f32 %v4977, %v4978
      %v4980 = vand.u32 %v4979, 4294901760
      %4981 = vmatpush1.xpose.msra.mxu0 %v4980
      %4982 = vmatprep.subr.mxu0 0.0
      %v4983 = vand.u32 %v4795, 4294901760
      %v4984 = vsub.f32 %v4795, %v4983
      %v4985 = vand.u32 %v4984, 4294901760
      %v4986 = vsub.f32 %v4984, %v4985
      %v4987 = vand.u32 %v4986, 4294901760
      %4988 = vmatpush1.xpose.msra.mxu0 %v4987
      %4989 = vmatprep.subr.mxu0 0.0
      %v4990 = vand.u32 %v4798, 4294901760
      %v4991 = vsub.f32 %v4798, %v4990
      %v4992 = vand.u32 %v4991, 4294901760
      %v4993 = vsub.f32 %v4991, %v4992
      %v4994 = vand.u32 %v4993, 4294901760
      %4995 = vmatpush1.xpose.msra.mxu0 %v4994
      %4996 = vmatprep.subr.mxu0 0.0
      %v4997 = vand.u32 %v4801, 4294901760
      %v4998 = vsub.f32 %v4801, %v4997
      %v4999 = vand.u32 %v4998, 4294901760
      %v5000 = vsub.f32 %v4998, %v4999
      %v5001 = vand.u32 %v5000, 4294901760
      %5002 = vmatpush1.xpose.msra.mxu0 %v5001
      %5003 = vmatprep.subr.mxu0 0.0
      %v5004 = vand.u32 %v4804, 4294901760
      %v5005 = vsub.f32 %v4804, %v5004
      %v5006 = vand.u32 %v5005, 4294901760
      %v5007 = vsub.f32 %v5005, %v5006
      %v5008 = vand.u32 %v5007, 4294901760
      %5009 = vmatpush1.xpose.msra.mxu0 %v5008
      %5010 = vmatprep.subr.mxu0 0.0
      %v5011 = vand.u32 %v4807, 4294901760
      %v5012 = vsub.f32 %v4807, %v5011
      %v5013 = vand.u32 %v5012, 4294901760
      %v5014 = vsub.f32 %v5012, %v5013
      %v5015 = vand.u32 %v5014, 4294901760
      %5016 = vmatpush1.xpose.msra.mxu0 %v5015
      %5017 = vmatprep.subr.mxu0 0.0
      %v5018 = vand.u32 %v4810, 4294901760
      %v5019 = vsub.f32 %v4810, %v5018
      %v5020 = vand.u32 %v5019, 4294901760
      %v5021 = vsub.f32 %v5019, %v5020
      %v5022 = vand.u32 %v5021, 4294901760
      %5023 = vmatpush1.xpose.msra.mxu0 %v5022
      %5024 = vmatprep.subr.mxu0 0.0
      %v5025 = vand.u32 %v4813, 4294901760
      %v5026 = vsub.f32 %v4813, %v5025
      %v5027 = vand.u32 %v5026, 4294901760
      %v5028 = vsub.f32 %v5026, %v5027
      %v5029 = vand.u32 %v5028, 4294901760
      %5030 = vmatpush1.xpose.msra.mxu0 %v5029
      %5031 = vmatprep.subr.mxu0 0.0
      %v5032 = vand.u32 %v4816, 4294901760
      %v5033 = vsub.f32 %v4816, %v5032
      %v5034 = vand.u32 %v5033, 4294901760
      %v5035 = vsub.f32 %v5033, %v5034
      %v5036 = vand.u32 %v5035, 4294901760
      %5037 = vmatpush1.xpose.msra.mxu0 %v5036
      %5038 = vmatprep.subr.mxu0 0.0
      %v5039 = vand.u32 %v4819, 4294901760
      %v5040 = vsub.f32 %v4819, %v5039
      %v5041 = vand.u32 %v5040, 4294901760
      %v5042 = vsub.f32 %v5040, %v5041
      %v5043 = vand.u32 %v5042, 4294901760
      %5044 = vmatpush1.xpose.msra.mxu0 %v5043
      %5045 = vmatprep.subr.mxu0 0.0
      %v5046 = vand.u32 %v4822, 4294901760
      %v5047 = vsub.f32 %v4822, %v5046
      %v5048 = vand.u32 %v5047, 4294901760
      %v5049 = vsub.f32 %v5047, %v5048
      %v5050 = vand.u32 %v5049, 4294901760
      %5051 = vmatpush1.xpose.msra.mxu0 %v5050
      %5052 = vmatprep.subr.mxu0 0.0
      %v5053 = vand.u32 %v4825, 4294901760
      %v5054 = vsub.f32 %v4825, %v5053
      %v5055 = vand.u32 %v5054, 4294901760
      %v5056 = vsub.f32 %v5054, %v5055
      %v5057 = vand.u32 %v5056, 4294901760
      %5058 = vmatpush1.xpose.msra.mxu0 %v5057
      %5059 = vmatprep.subr.mxu0 0.0
      %v5060 = vand.u32 %v4828, 4294901760
      %v5061 = vsub.f32 %v4828, %v5060
      %v5062 = vand.u32 %v5061, 4294901760
      %v5063 = vsub.f32 %v5061, %v5062
      %v5064 = vand.u32 %v5063, 4294901760
      %5065 = vmatpush1.xpose.msra.mxu0 %v5064
      %5066 = vmatprep.subr.mxu0 0.0
      %v5067 = vand.u32 %v4831, 4294901760
      %v5068 = vsub.f32 %v4831, %v5067
      %v5069 = vand.u32 %v5068, 4294901760
      %v5070 = vsub.f32 %v5068, %v5069
      %v5071 = vand.u32 %v5070, 4294901760
      %5072 = vmatpush1.xpose.msra.mxu0 %v5071
      %5073 = vmatprep.subr.mxu0 0.0
      %v5074 = vand.u32 %v4834, 4294901760
      %v5075 = vsub.f32 %v4834, %v5074
      %v5076 = vand.u32 %v5075, 4294901760
      %v5077 = vsub.f32 %v5075, %v5076
      %v5078 = vand.u32 %v5077, 4294901760
      %5079 = vmatpush1.xpose.msra.mxu0 %v5078
      %5080 = vmatprep.subr.mxu0 0.0
      %v5081 = vand.u32 %v4837, 4294901760
      %v5082 = vsub.f32 %v4837, %v5081
      %v5083 = vand.u32 %v5082, 4294901760
      %v5084 = vsub.f32 %v5082, %v5083
      %v5085 = vand.u32 %v5084, 4294901760
      %5086 = vmatpush1.xpose.msra.mxu0 %v5085
      %5087 = vmatprep.subr.mxu0 0.0
      %v5088 = vand.u32 %v4840, 4294901760
      %v5089 = vsub.f32 %v4840, %v5088
      %v5090 = vand.u32 %v5089, 4294901760
      %v5091 = vsub.f32 %v5089, %v5090
      %v5092 = vand.u32 %v5091, 4294901760
      %5093 = vmatpush1.xpose.msra.mxu0 %v5092
      %5094 = vmatprep.subr.mxu0 0.0
      %5095 = vmatpush1.xpose.msra.mxu0 0.0
      %5096 = vmatprep.subr.mxu0 0.0
      %5097 = vmatpush1.xpose.msra.mxu0 0.0
      %5098 = vmatprep.subr.mxu0 0.0
      %5099 = vmatpush1.xpose.msra.mxu0 0.0
      %5100 = vmatprep.subr.mxu0 0.0
      %5101 = vmatpush1.xpose.msra.mxu0 0.0
      %5102 = vmatprep.subr.mxu0 0.0
      %5103 = vmatpush1.xpose.msra.mxu0 0.0
      %5104 = vmatprep.subr.mxu0 0.0
      %5105 = vmatpush1.xpose.msra.mxu0 0.0
      %5106 = vmatprep.subr.mxu0 0.0
      %5107 = vmatpush1.xpose.msra.mxu0 0.0
      %5108 = vmatprep.subr.mxu0 0.0
      %5109 = vmatpush1.xpose.msra.mxu0 0.0
      %5110 = vmatprep.subr.mxu0 0.0
      %5111 = vmatpush1.xpose.msra.mxu0 0.0
      %5112 = vmatprep.subr.mxu0 0.0
      %5113 = vmatpush1.xpose.msra.mxu0 0.0
      %5114 = vmatprep.mubr.f32.mxu0 0.0
      %v5115 = vand.u32 %v4774, 4294901760
      %5116 = vmatmul.mubr.f32.gmra.mrb[0].mxu0 %v5115
      %v5117 = vpop.f32.mrb[0].mxu0
      %v5118 = vadd.f32 %v4936, %v5117
      %v5119 = vpop.f32.mrb[0].mxu0
      %v5120 = vadd.f32 %v4938, %v5119
      %5121 = vdwg.mxu0
      %5122 = vmatprep.subr.mxu0 0.0
      %v5123 = vand.u32 %v4777, 4294901760
      %v5124 = vsub.f32 %v4777, %v5123
      %5125 = vmatpush1.xpose.msra.mxu0 %v5124
      %5126 = vmatprep.subr.mxu0 0.0
      %v5127 = vand.u32 %v4780, 4294901760
      %v5128 = vsub.f32 %v4780, %v5127
      %5129 = vmatpush1.xpose.msra.mxu0 %v5128
      %5130 = vmatprep.subr.mxu0 0.0
      %v5131 = vand.u32 %v4783, 4294901760
      %v5132 = vsub.f32 %v4783, %v5131
      %5133 = vmatpush1.xpose.msra.mxu0 %v5132
      %5134 = vmatprep.subr.mxu0 0.0
      %v5135 = vand.u32 %v4786, 4294901760
      %v5136 = vsub.f32 %v4786, %v5135
      %5137 = vmatpush1.xpose.msra.mxu0 %v5136
      %5138 = vmatprep.subr.mxu0 0.0
      %v5139 = vand.u32 %v4789, 4294901760
      %v5140 = vsub.f32 %v4789, %v5139
      %5141 = vmatpush1.xpose.msra.mxu0 %v5140
      %5142 = vmatprep.subr.mxu0 0.0
      %v5143 = vand.u32 %v4792, 4294901760
      %v5144 = vsub.f32 %v4792, %v5143
      %5145 = vmatpush1.xpose.msra.mxu0 %v5144
      %5146 = vmatprep.subr.mxu0 0.0
      %v5147 = vand.u32 %v4795, 4294901760
      %v5148 = vsub.f32 %v4795, %v5147
      %5149 = vmatpush1.xpose.msra.mxu0 %v5148
      %5150 = vmatprep.subr.mxu0 0.0
      %v5151 = vand.u32 %v4798, 4294901760
      %v5152 = vsub.f32 %v4798, %v5151
      %5153 = vmatpush1.xpose.msra.mxu0 %v5152
      %5154 = vmatprep.subr.mxu0 0.0
      %v5155 = vand.u32 %v4801, 4294901760
      %v5156 = vsub.f32 %v4801, %v5155
      %5157 = vmatpush1.xpose.msra.mxu0 %v5156
      %5158 = vmatprep.subr.mxu0 0.0
      %v5159 = vand.u32 %v4804, 4294901760
      %v5160 = vsub.f32 %v4804, %v5159
      %5161 = vmatpush1.xpose.msra.mxu0 %v5160
      %5162 = vmatprep.subr.mxu0 0.0
      %v5163 = vand.u32 %v4807, 4294901760
      %v5164 = vsub.f32 %v4807, %v5163
      %5165 = vmatpush1.xpose.msra.mxu0 %v5164
      %5166 = vmatprep.subr.mxu0 0.0
      %v5167 = vand.u32 %v4810, 4294901760
      %v5168 = vsub.f32 %v4810, %v5167
      %5169 = vmatpush1.xpose.msra.mxu0 %v5168
      %5170 = vmatprep.subr.mxu0 0.0
      %v5171 = vand.u32 %v4813, 4294901760
      %v5172 = vsub.f32 %v4813, %v5171
      %5173 = vmatpush1.xpose.msra.mxu0 %v5172
      %5174 = vmatprep.subr.mxu0 0.0
      %v5175 = vand.u32 %v4816, 4294901760
      %v5176 = vsub.f32 %v4816, %v5175
      %5177 = vmatpush1.xpose.msra.mxu0 %v5176
      %5178 = vmatprep.subr.mxu0 0.0
      %v5179 = vand.u32 %v4819, 4294901760
      %v5180 = vsub.f32 %v4819, %v5179
      %5181 = vmatpush1.xpose.msra.mxu0 %v5180
      %5182 = vmatprep.subr.mxu0 0.0
      %v5183 = vand.u32 %v4822, 4294901760
      %v5184 = vsub.f32 %v4822, %v5183
      %5185 = vmatpush1.xpose.msra.mxu0 %v5184
      %5186 = vmatprep.subr.mxu0 0.0
      %v5187 = vand.u32 %v4825, 4294901760
      %v5188 = vsub.f32 %v4825, %v5187
      %5189 = vmatpush1.xpose.msra.mxu0 %v5188
      %5190 = vmatprep.subr.mxu0 0.0
      %v5191 = vand.u32 %v4828, 4294901760
      %v5192 = vsub.f32 %v4828, %v5191
      %5193 = vmatpush1.xpose.msra.mxu0 %v5192
      %5194 = vmatprep.subr.mxu0 0.0
      %v5195 = vand.u32 %v4831, 4294901760
      %v5196 = vsub.f32 %v4831, %v5195
      %5197 = vmatpush1.xpose.msra.mxu0 %v5196
      %5198 = vmatprep.subr.mxu0 0.0
      %v5199 = vand.u32 %v4834, 4294901760
      %v5200 = vsub.f32 %v4834, %v5199
      %5201 = vmatpush1.xpose.msra.mxu0 %v5200
      %5202 = vmatprep.subr.mxu0 0.0
      %v5203 = vand.u32 %v4837, 4294901760
      %v5204 = vsub.f32 %v4837, %v5203
      %5205 = vmatpush1.xpose.msra.mxu0 %v5204
      %5206 = vmatprep.subr.mxu0 0.0
      %v5207 = vand.u32 %v4840, 4294901760
      %v5208 = vsub.f32 %v4840, %v5207
      %5209 = vmatpush1.xpose.msra.mxu0 %v5208
      %5210 = vmatprep.subr.mxu0 0.0
      %5211 = vmatpush1.xpose.msra.mxu0 0.0
      %5212 = vmatprep.subr.mxu0 0.0
      %5213 = vmatpush1.xpose.msra.mxu0 0.0
      %5214 = vmatprep.subr.mxu0 0.0
      %5215 = vmatpush1.xpose.msra.mxu0 0.0
      %5216 = vmatprep.subr.mxu0 0.0
      %5217 = vmatpush1.xpose.msra.mxu0 0.0
      %5218 = vmatprep.subr.mxu0 0.0
      %5219 = vmatpush1.xpose.msra.mxu0 0.0
      %5220 = vmatprep.subr.mxu0 0.0
      %5221 = vmatpush1.xpose.msra.mxu0 0.0
      %5222 = vmatprep.subr.mxu0 0.0
      %5223 = vmatpush1.xpose.msra.mxu0 0.0
      %5224 = vmatprep.subr.mxu0 0.0
      %5225 = vmatpush1.xpose.msra.mxu0 0.0
      %5226 = vmatprep.subr.mxu0 0.0
      %5227 = vmatpush1.xpose.msra.mxu0 0.0
      %5228 = vmatprep.subr.mxu0 0.0
      %5229 = vmatpush1.xpose.msra.mxu0 0.0
      %5230 = vmatprep.mubr.f32.mxu0 0.0
      %v5231 = vand.u32 %v4774, 4294901760
      %v5232 = vsub.f32 %v4774, %v5231
      %5233 = vmatmul.mubr.f32.gmra.mrb[0].mxu0 %v5232
      %v5234 = vpop.f32.mrb[0].mxu0
      %v5235 = vadd.f32 %v5118, %v5234
      %v5236 = vpop.f32.mrb[0].mxu0
      %v5237 = vadd.f32 %v5120, %v5236
      %5238 = vdwg.mxu0
      %5239 = vmatprep.subr.mxu0 0.0
      %v5240 = vand.u32 %v4777, 4294901760
      %5241 = vmatpush1.xpose.msra.mxu0 %v5240
      %5242 = vmatprep.subr.mxu0 0.0
      %v5243 = vand.u32 %v4780, 4294901760
      %5244 = vmatpush1.xpose.msra.mxu0 %v5243
      %5245 = vmatprep.subr.mxu0 0.0
      %v5246 = vand.u32 %v4783, 4294901760
      %5247 = vmatpush1.xpose.msra.mxu0 %v5246
      %5248 = vmatprep.subr.mxu0 0.0
      %v5249 = vand.u32 %v4786, 4294901760
      %5250 = vmatpush1.xpose.msra.mxu0 %v5249
      %5251 = vmatprep.subr.mxu0 0.0
      %v5252 = vand.u32 %v4789, 4294901760
      %5253 = vmatpush1.xpose.msra.mxu0 %v5252
      %5254 = vmatprep.subr.mxu0 0.0
      %v5255 = vand.u32 %v4792, 4294901760
      %5256 = vmatpush1.xpose.msra.mxu0 %v5255
      %5257 = vmatprep.subr.mxu0 0.0
      %v5258 = vand.u32 %v4795, 4294901760
      %5259 = vmatpush1.xpose.msra.mxu0 %v5258
      %5260 = vmatprep.subr.mxu0 0.0
      %v5261 = vand.u32 %v4798, 4294901760
      %5262 = vmatpush1.xpose.msra.mxu0 %v5261
      %5263 = vmatprep.subr.mxu0 0.0
      %v5264 = vand.u32 %v4801, 4294901760
      %5265 = vmatpush1.xpose.msra.mxu0 %v5264
      %5266 = vmatprep.subr.mxu0 0.0
      %v5267 = vand.u32 %v4804, 4294901760
      %5268 = vmatpush1.xpose.msra.mxu0 %v5267
      %5269 = vmatprep.subr.mxu0 0.0
      %v5270 = vand.u32 %v4807, 4294901760
      %5271 = vmatpush1.xpose.msra.mxu0 %v5270
      %5272 = vmatprep.subr.mxu0 0.0
      %v5273 = vand.u32 %v4810, 4294901760
      %5274 = vmatpush1.xpose.msra.mxu0 %v5273
      %5275 = vmatprep.subr.mxu0 0.0
      %v5276 = vand.u32 %v4813, 4294901760
      %5277 = vmatpush1.xpose.msra.mxu0 %v5276
      %5278 = vmatprep.subr.mxu0 0.0
      %v5279 = vand.u32 %v4816, 4294901760
      %5280 = vmatpush1.xpose.msra.mxu0 %v5279
      %5281 = vmatprep.subr.mxu0 0.0
      %v5282 = vand.u32 %v4819, 4294901760
      %5283 = vmatpush1.xpose.msra.mxu0 %v5282
      %5284 = vmatprep.subr.mxu0 0.0
      %v5285 = vand.u32 %v4822, 4294901760
      %5286 = vmatpush1.xpose.msra.mxu0 %v5285
      %5287 = vmatprep.subr.mxu0 0.0
      %v5288 = vand.u32 %v4825, 4294901760
      %5289 = vmatpush1.xpose.msra.mxu0 %v5288
      %5290 = vmatprep.subr.mxu0 0.0
      %v5291 = vand.u32 %v4828, 4294901760
      %5292 = vmatpush1.xpose.msra.mxu0 %v5291
      %5293 = vmatprep.subr.mxu0 0.0
      %v5294 = vand.u32 %v4831, 4294901760
      %5295 = vmatpush1.xpose.msra.mxu0 %v5294
      %5296 = vmatprep.subr.mxu0 0.0
      %v5297 = vand.u32 %v4834, 4294901760
      %5298 = vmatpush1.xpose.msra.mxu0 %v5297
      %5299 = vmatprep.subr.mxu0 0.0
      %v5300 = vand.u32 %v4837, 4294901760
      %5301 = vmatpush1.xpose.msra.mxu0 %v5300
      %5302 = vmatprep.subr.mxu0 0.0
      %v5303 = vand.u32 %v4840, 4294901760
      %5304 = vmatpush1.xpose.msra.mxu0 %v5303
      %5305 = vmatprep.subr.mxu0 0.0
      %5306 = vmatpush1.xpose.msra.mxu0 0.0
      %5307 = vmatprep.subr.mxu0 0.0
      %5308 = vmatpush1.xpose.msra.mxu0 0.0
      %5309 = vmatprep.subr.mxu0 0.0
      %5310 = vmatpush1.xpose.msra.mxu0 0.0
      %5311 = vmatprep.subr.mxu0 0.0
      %5312 = vmatpush1.xpose.msra.mxu0 0.0
      %5313 = vmatprep.subr.mxu0 0.0
      %5314 = vmatpush1.xpose.msra.mxu0 0.0
      %5315 = vmatprep.subr.mxu0 0.0
      %5316 = vmatpush1.xpose.msra.mxu0 0.0
      %5317 = vmatprep.subr.mxu0 0.0
      %5318 = vmatpush1.xpose.msra.mxu0 0.0
      %5319 = vmatprep.subr.mxu0 0.0
      %5320 = vmatpush1.xpose.msra.mxu0 0.0
      %5321 = vmatprep.subr.mxu0 0.0
      %5322 = vmatpush1.xpose.msra.mxu0 0.0
      %5323 = vmatprep.subr.mxu0 0.0
      %5324 = vmatpush1.xpose.msra.mxu0 0.0
      %5325 = vmatprep.mubr.f32.mxu0 0.0
      %v5326 = vand.u32 %v4774, 4294901760
      %v5327 = vsub.f32 %v4774, %v5326
      %v5328 = vand.u32 %v5327, 4294901760
      %5329 = vmatmul.mubr.f32.gmra.mrb[0].mxu0 %v5328
      %v5330 = vpop.f32.mrb[0].mxu0
      %v5331 = vadd.f32 %v5235, %v5330
      %v5332 = vpop.f32.mrb[0].mxu0
      %v5333 = vadd.f32 %v5237, %v5332
      %5334 = vdwg.mxu0
      %5335 = vmatprep.subr.mxu0 0.0
      %v5336 = vand.u32 %v4777, 4294901760
      %v5337 = vsub.f32 %v4777, %v5336
      %v5338 = vand.u32 %v5337, 4294901760
      %5339 = vmatpush1.xpose.msra.mxu0 %v5338
      %5340 = vmatprep.subr.mxu0 0.0
      %v5341 = vand.u32 %v4780, 4294901760
      %v5342 = vsub.f32 %v4780, %v5341
      %v5343 = vand.u32 %v5342, 4294901760
      %5344 = vmatpush1.xpose.msra.mxu0 %v5343
      %5345 = vmatprep.subr.mxu0 0.0
      %v5346 = vand.u32 %v4783, 4294901760
      %v5347 = vsub.f32 %v4783, %v5346
      %v5348 = vand.u32 %v5347, 4294901760
      %5349 = vmatpush1.xpose.msra.mxu0 %v5348
      %5350 = vmatprep.subr.mxu0 0.0
      %v5351 = vand.u32 %v4786, 4294901760
      %v5352 = vsub.f32 %v4786, %v5351
      %v5353 = vand.u32 %v5352, 4294901760
      %5354 = vmatpush1.xpose.msra.mxu0 %v5353
      %5355 = vmatprep.subr.mxu0 0.0
      %v5356 = vand.u32 %v4789, 4294901760
      %v5357 = vsub.f32 %v4789, %v5356
      %v5358 = vand.u32 %v5357, 4294901760
      %5359 = vmatpush1.xpose.msra.mxu0 %v5358
      %5360 = vmatprep.subr.mxu0 0.0
      %v5361 = vand.u32 %v4792, 4294901760
      %v5362 = vsub.f32 %v4792, %v5361
      %v5363 = vand.u32 %v5362, 4294901760
      %5364 = vmatpush1.xpose.msra.mxu0 %v5363
      %5365 = vmatprep.subr.mxu0 0.0
      %v5366 = vand.u32 %v4795, 4294901760
      %v5367 = vsub.f32 %v4795, %v5366
      %v5368 = vand.u32 %v5367, 4294901760
      %5369 = vmatpush1.xpose.msra.mxu0 %v5368
      %5370 = vmatprep.subr.mxu0 0.0
      %v5371 = vand.u32 %v4798, 4294901760
      %v5372 = vsub.f32 %v4798, %v5371
      %v5373 = vand.u32 %v5372, 4294901760
      %5374 = vmatpush1.xpose.msra.mxu0 %v5373
      %5375 = vmatprep.subr.mxu0 0.0
      %v5376 = vand.u32 %v4801, 4294901760
      %v5377 = vsub.f32 %v4801, %v5376
      %v5378 = vand.u32 %v5377, 4294901760
      %5379 = vmatpush1.xpose.msra.mxu0 %v5378
      %5380 = vmatprep.subr.mxu0 0.0
      %v5381 = vand.u32 %v4804, 4294901760
      %v5382 = vsub.f32 %v4804, %v5381
      %v5383 = vand.u32 %v5382, 4294901760
      %5384 = vmatpush1.xpose.msra.mxu0 %v5383
      %5385 = vmatprep.subr.mxu0 0.0
      %v5386 = vand.u32 %v4807, 4294901760
      %v5387 = vsub.f32 %v4807, %v5386
      %v5388 = vand.u32 %v5387, 4294901760
      %5389 = vmatpush1.xpose.msra.mxu0 %v5388
      %5390 = vmatprep.subr.mxu0 0.0
      %v5391 = vand.u32 %v4810, 4294901760
      %v5392 = vsub.f32 %v4810, %v5391
      %v5393 = vand.u32 %v5392, 4294901760
      %5394 = vmatpush1.xpose.msra.mxu0 %v5393
      %5395 = vmatprep.subr.mxu0 0.0
      %v5396 = vand.u32 %v4813, 4294901760
      %v5397 = vsub.f32 %v4813, %v5396
      %v5398 = vand.u32 %v5397, 4294901760
      %5399 = vmatpush1.xpose.msra.mxu0 %v5398
      %5400 = vmatprep.subr.mxu0 0.0
      %v5401 = vand.u32 %v4816, 4294901760
      %v5402 = vsub.f32 %v4816, %v5401
      %v5403 = vand.u32 %v5402, 4294901760
      %5404 = vmatpush1.xpose.msra.mxu0 %v5403
      %5405 = vmatprep.subr.mxu0 0.0
      %v5406 = vand.u32 %v4819, 4294901760
      %v5407 = vsub.f32 %v4819, %v5406
      %v5408 = vand.u32 %v5407, 4294901760
      %5409 = vmatpush1.xpose.msra.mxu0 %v5408
      %5410 = vmatprep.subr.mxu0 0.0
      %v5411 = vand.u32 %v4822, 4294901760
      %v5412 = vsub.f32 %v4822, %v5411
      %v5413 = vand.u32 %v5412, 4294901760
      %5414 = vmatpush1.xpose.msra.mxu0 %v5413
      %5415 = vmatprep.subr.mxu0 0.0
      %v5416 = vand.u32 %v4825, 4294901760
      %v5417 = vsub.f32 %v4825, %v5416
      %v5418 = vand.u32 %v5417, 4294901760
      %5419 = vmatpush1.xpose.msra.mxu0 %v5418
      %5420 = vmatprep.subr.mxu0 0.0
      %v5421 = vand.u32 %v4828, 4294901760
      %v5422 = vsub.f32 %v4828, %v5421
      %v5423 = vand.u32 %v5422, 4294901760
      %5424 = vmatpush1.xpose.msra.mxu0 %v5423
      %5425 = vmatprep.subr.mxu0 0.0
      %v5426 = vand.u32 %v4831, 4294901760
      %v5427 = vsub.f32 %v4831, %v5426
      %v5428 = vand.u32 %v5427, 4294901760
      %5429 = vmatpush1.xpose.msra.mxu0 %v5428
      %5430 = vmatprep.subr.mxu0 0.0
      %v5431 = vand.u32 %v4834, 4294901760
      %v5432 = vsub.f32 %v4834, %v5431
      %v5433 = vand.u32 %v5432, 4294901760
      %5434 = vmatpush1.xpose.msra.mxu0 %v5433
      %5435 = vmatprep.subr.mxu0 0.0
      %v5436 = vand.u32 %v4837, 4294901760
      %v5437 = vsub.f32 %v4837, %v5436
      %v5438 = vand.u32 %v5437, 4294901760
      %5439 = vmatpush1.xpose.msra.mxu0 %v5438
      %5440 = vmatprep.subr.mxu0 0.0
      %v5441 = vand.u32 %v4840, 4294901760
      %v5442 = vsub.f32 %v4840, %v5441
      %v5443 = vand.u32 %v5442, 4294901760
      %5444 = vmatpush1.xpose.msra.mxu0 %v5443
      %5445 = vmatprep.subr.mxu0 0.0
      %5446 = vmatpush1.xpose.msra.mxu0 0.0
      %5447 = vmatprep.subr.mxu0 0.0
      %5448 = vmatpush1.xpose.msra.mxu0 0.0
      %5449 = vmatprep.subr.mxu0 0.0
      %5450 = vmatpush1.xpose.msra.mxu0 0.0
      %5451 = vmatprep.subr.mxu0 0.0
      %5452 = vmatpush1.xpose.msra.mxu0 0.0
      %5453 = vmatprep.subr.mxu0 0.0
      %5454 = vmatpush1.xpose.msra.mxu0 0.0
      %5455 = vmatprep.subr.mxu0 0.0
      %5456 = vmatpush1.xpose.msra.mxu0 0.0
      %5457 = vmatprep.subr.mxu0 0.0
      %5458 = vmatpush1.xpose.msra.mxu0 0.0
      %5459 = vmatprep.subr.mxu0 0.0
      %5460 = vmatpush1.xpose.msra.mxu0 0.0
      %5461 = vmatprep.subr.mxu0 0.0
      %5462 = vmatpush1.xpose.msra.mxu0 0.0
      %5463 = vmatprep.subr.mxu0 0.0
      %5464 = vmatpush1.xpose.msra.mxu0 0.0
      %5465 = vmatprep.mubr.f32.mxu0 0.0
      %v5466 = vand.u32 %v4774, 4294901760
      %5467 = vmatmul.mubr.f32.gmra.mrb[0].mxu0 %v5466
      %v5468 = vpop.f32.mrb[0].mxu0
      %v5469 = vadd.f32 %v5331, %v5468
      %v5470 = vpop.f32.mrb[0].mxu0
      %v5471 = vadd.f32 %v5333, %v5470
      %5472 = vdwg.mxu0
      %5473 = vmatprep.subr.mxu0 0.0
      %v5474 = vand.u32 %v4777, 4294901760
      %5475 = vmatpush1.xpose.msra.mxu0 %v5474
      %5476 = vmatprep.subr.mxu0 0.0
      %v5477 = vand.u32 %v4780, 4294901760
      %5478 = vmatpush1.xpose.msra.mxu0 %v5477
      %5479 = vmatprep.subr.mxu0 0.0
      %v5480 = vand.u32 %v4783, 4294901760
      %5481 = vmatpush1.xpose.msra.mxu0 %v5480
      %5482 = vmatprep.subr.mxu0 0.0
      %v5483 = vand.u32 %v4786, 4294901760
      %5484 = vmatpush1.xpose.msra.mxu0 %v5483
      %5485 = vmatprep.subr.mxu0 0.0
      %v5486 = vand.u32 %v4789, 4294901760
      %5487 = vmatpush1.xpose.msra.mxu0 %v5486
      %5488 = vmatprep.subr.mxu0 0.0
      %v5489 = vand.u32 %v4792, 4294901760
      %5490 = vmatpush1.xpose.msra.mxu0 %v5489
      %5491 = vmatprep.subr.mxu0 0.0
      %v5492 = vand.u32 %v4795, 4294901760
      %5493 = vmatpush1.xpose.msra.mxu0 %v5492
      %5494 = vmatprep.subr.mxu0 0.0
      %v5495 = vand.u32 %v4798, 4294901760
      %5496 = vmatpush1.xpose.msra.mxu0 %v5495
      %5497 = vmatprep.subr.mxu0 0.0
      %v5498 = vand.u32 %v4801, 4294901760
      %5499 = vmatpush1.xpose.msra.mxu0 %v5498
      %5500 = vmatprep.subr.mxu0 0.0
      %v5501 = vand.u32 %v4804, 4294901760
      %5502 = vmatpush1.xpose.msra.mxu0 %v5501
      %5503 = vmatprep.subr.mxu0 0.0
      %v5504 = vand.u32 %v4807, 4294901760
      %5505 = vmatpush1.xpose.msra.mxu0 %v5504
      %5506 = vmatprep.subr.mxu0 0.0
      %v5507 = vand.u32 %v4810, 4294901760
      %5508 = vmatpush1.xpose.msra.mxu0 %v5507
      %5509 = vmatprep.subr.mxu0 0.0
      %v5510 = vand.u32 %v4813, 4294901760
      %5511 = vmatpush1.xpose.msra.mxu0 %v5510
      %5512 = vmatprep.subr.mxu0 0.0
      %v5513 = vand.u32 %v4816, 4294901760
      %5514 = vmatpush1.xpose.msra.mxu0 %v5513
      %5515 = vmatprep.subr.mxu0 0.0
      %v5516 = vand.u32 %v4819, 4294901760
      %5517 = vmatpush1.xpose.msra.mxu0 %v5516
      %5518 = vmatprep.subr.mxu0 0.0
      %v5519 = vand.u32 %v4822, 4294901760
      %5520 = vmatpush1.xpose.msra.mxu0 %v5519
      %5521 = vmatprep.subr.mxu0 0.0
      %v5522 = vand.u32 %v4825, 4294901760
      %5523 = vmatpush1.xpose.msra.mxu0 %v5522
      %5524 = vmatprep.subr.mxu0 0.0
      %v5525 = vand.u32 %v4828, 4294901760
      %5526 = vmatpush1.xpose.msra.mxu0 %v5525
      %5527 = vmatprep.subr.mxu0 0.0
      %v5528 = vand.u32 %v4831, 4294901760
      %5529 = vmatpush1.xpose.msra.mxu0 %v5528
      %5530 = vmatprep.subr.mxu0 0.0
      %v5531 = vand.u32 %v4834, 4294901760
      %5532 = vmatpush1.xpose.msra.mxu0 %v5531
      %5533 = vmatprep.subr.mxu0 0.0
      %v5534 = vand.u32 %v4837, 4294901760
      %5535 = vmatpush1.xpose.msra.mxu0 %v5534
      %5536 = vmatprep.subr.mxu0 0.0
      %v5537 = vand.u32 %v4840, 4294901760
      %5538 = vmatpush1.xpose.msra.mxu0 %v5537
      %5539 = vmatprep.subr.mxu0 0.0
      %5540 = vmatpush1.xpose.msra.mxu0 0.0
      %5541 = vmatprep.subr.mxu0 0.0
      %5542 = vmatpush1.xpose.msra.mxu0 0.0
      %5543 = vmatprep.subr.mxu0 0.0
      %5544 = vmatpush1.xpose.msra.mxu0 0.0
      %5545 = vmatprep.subr.mxu0 0.0
      %5546 = vmatpush1.xpose.msra.mxu0 0.0
      %5547 = vmatprep.subr.mxu0 0.0
      %5548 = vmatpush1.xpose.msra.mxu0 0.0
      %5549 = vmatprep.subr.mxu0 0.0
      %5550 = vmatpush1.xpose.msra.mxu0 0.0
      %5551 = vmatprep.subr.mxu0 0.0
      %5552 = vmatpush1.xpose.msra.mxu0 0.0
      %5553 = vmatprep.subr.mxu0 0.0
      %5554 = vmatpush1.xpose.msra.mxu0 0.0
      %5555 = vmatprep.subr.mxu0 0.0
      %5556 = vmatpush1.xpose.msra.mxu0 0.0
      %5557 = vmatprep.subr.mxu0 0.0
      %5558 = vmatpush1.xpose.msra.mxu0 0.0
      %5559 = vmatprep.mubr.f32.mxu0 0.0
      %v5560 = vand.u32 %v4774, 4294901760
      %5561 = vmatmul.mubr.f32.gmra.mrb[0].mxu0 %v5560
      %v5562 = vpop.f32.mrb[0].mxu0
      %v5563 = vadd.f32 %v5469, %v5562
      %v5564 = vpop.f32.mrb[0].mxu0
      %v5565 = vadd.f32 %v5471, %v5564
      %5566 = vdwg.mxu0
      %v5567 = vld [vmem:[#allocation2] sm:$0x3]
      %v5570 = vcombine.low %v5563, %v5565
      %v5572 = vunpack.c.l.s4 1966171168
      %v5573 = vunpack.c.0.s8 %v5572
      %v5574 = vlaneseq
      %v5575 = vshrl.u32 %v5574, 7
      %v5576 = vsub.s32 %v5573, %v5575
      %v5577 = vrot.slane %v5570, %v5576
      %v5579 = vunpack.c.l.s4 1966171168
      %v5580 = vunpack.c.0.s8 %v5579
      %v5581 = vlaneseq
      %v5582 = vshrl.u32 %v5581, 7
      %v5583 = vsub.s32 %v5580, %v5582
      %v5584 = vrot.slane %v5577, %v5583
      %v5586 = vadd.f32 %v5567, %v5584
      %5587 = vst.msk [vmem:[#allocation2] sm:$0x3] %vm1006, %v5586
      %v5588 = vld [vmem:[#allocation2] sm:$0x3]
      %v5589 = vcombine.high %v5577, %v5577
      %v5591 = vunpack.c.l.s4 1966171168
      %v5592 = vunpack.c.0.s8 %v5591
      %v5593 = vlaneseq
      %v5594 = vshrl.u32 %v5593, 7
      %v5595 = vsub.s32 %v5592, %v5594
      %v5596 = vrot.slane %v5589, %v5595
      %5597 = vrot.lane.b32.xlu0 %v5596, 127
      %v5598 = vpop.permute.xlu0 %5597
      %v5599 = vrot.slane %v5598, 1
      %v5600 = vsel %vm1020, %v5598, %v5599
      %v5602 = vadd.f32 %v5588, %v5600
      %5603 = vst.msk [vmem:[#allocation2] sm:$0x3] %vm1025, %v5602
      %v5604 = vld [vmem:[#allocation2] sm:$0x3]
      %v5605 = vcombine.high %v5584, %v5584
      %5606 = vrot.lane.b32.xlu0 %v5605, 126
      %v5607 = vpop.permute.xlu0 %5606
      %v5608 = vrot.slane %v5607, 1
      %v5609 = vsel %vm1032, %v5607, %v5608
      %v5611 = vadd.f32 %v5604, %v5609
      %5612 = vst.msk [vmem:[#allocation2] sm:$0x3] %vm1037, %v5611
      %v5613 = vld [vmem:[#allocation2] sm:$0x3]
      %v5614 = vcombine.high %v5596, %v5596
      %5615 = vrot.lane.b32.xlu0 %v5614, 125
      %v5616 = vpop.permute.xlu0 %5615
      %v5617 = vrot.slane %v5616, 1
      %v5618 = vsel %vm1044, %v5616, %v5617
      %v5620 = vadd.f32 %v5613, %v5618
      %5621 = vst.msk [vmem:[#allocation2] sm:$0x3] %vm1049, %v5620
      %v5622 = vld [vmem:[#allocation2] sm:$0x3]
      %v5623 = vcombine.high %v5563, %v5565
      %v5625 = vunpack.c.l.s4 1966171168
      %v5626 = vunpack.c.0.s8 %v5625
      %v5627 = vlaneseq
      %v5628 = vshrl.u32 %v5627, 7
      %v5629 = vsub.s32 %v5626, %v5628
      %v5630 = vrot.slane %v5623, %v5629
      %v5632 = vunpack.c.l.s4 1966171168
      %v5633 = vunpack.c.0.s8 %v5632
      %v5634 = vlaneseq
      %v5635 = vshrl.u32 %v5634, 7
      %v5636 = vsub.s32 %v5633, %v5635
      %v5637 = vrot.slane %v5630, %v5636
      %5638 = vrot.lane.b32.xlu0 %v5637, 124
      %v5639 = vpop.permute.xlu0 %5638
      %v5640 = vrot.slane %v5639, 1
      %v5641 = vsel %vm1070, %v5639, %v5640
      %v5643 = vadd.f32 %v5622, %v5641
      %5644 = vst.msk [vmem:[#allocation2] sm:$0x3] %vm1075, %v5643
      %v5645 = vld [vmem:[#allocation2] sm:$0x3]
      %v5646 = vcombine.high %v5630, %v5630
      %v5648 = vunpack.c.l.s4 1966171168
      %v5649 = vunpack.c.0.s8 %v5648
      %v5650 = vlaneseq
      %v5651 = vshrl.u32 %v5650, 7
      %v5652 = vsub.s32 %v5649, %v5651
      %v5653 = vrot.slane %v5646, %v5652
      %5654 = vrot.lane.b32.xlu0 %v5653, 123
      %v5655 = vpop.permute.xlu0 %5654
      %v5656 = vrot.slane %v5655, 1
      %v5657 = vsel %vm1089, %v5655, %v5656
      %v5659 = vadd.f32 %v5645, %v5657
      %5660 = vst.msk [vmem:[#allocation2] sm:$0x3] %vm1094, %v5659
      %v5661 = vld [vmem:[#allocation2] sm:$0x3]
      %v5662 = vmul.f32 %v5661, 0.01
      %5663 = vst.msk [vmem:[%s161] sm:$0x3] %vm165, %v5662
      %p5664 = scmp.lt.s32.totalorder %s13, 1
      %s5665 = scalar_select %p5664, %s13, 1
      %s5666 = smul.addr %s5665, 2
      %s5667 = scalar_lea.vmem %s2, %s5666
      // Predicated region
      $region29: #{siamfc_head.1} parent=27 // pred_check
        %p5668 = pneg %p83
      $region30: #{siamfc_head.1} parent=27 // pred_check_branch
        %5670 = sbr.rel (%p5668) target = $region32
      $region31: #{siamfc_head.1} parent=27 // pred_region
        _
      $region32: #{siamfc_head.1} parent=27 // pred_fallthru
        _
    $region28: #{siamfc_head.1} parent=5 // pred_fallthru
      _
    %p5671 = scmp.le.s32.totalorder 2, %s8
    // Predicated region
    $region33: #{siamfc_head.1} parent=5 // pred_check
      %p5672 = pneg %p5671
    $region34: #{siamfc_head.1} parent=5 // pred_check_branch
      %5674 = sbr.rel (%p5672) target = $region36
    $region35: #{siamfc_head.1} parent=5 // pred_region
      %s5675 = ssub.s32 %s8, 2
      // Predicated region
      $region37: #{siamfc_head.1} parent=35 // pred_check
        %p5676 = pneg %p89
      $region38: #{siamfc_head.1} parent=35 // pred_check_branch
        %5678 = sbr.rel (%p5676) target = $region40
      $region39: #{siamfc_head.1} parent=35 // pred_region
        %p5679 = scmp.lt.s32.totalorder %s14, 1
        %s5680 = scalar_select %p5679, %s14, 1
        %s5681 = smul.addr %s5680, 2
        %s5682 = scalar_lea.vmem %s2, %s5681
      $region40: #{siamfc_head.1} parent=35 // pred_fallthru
        _
    $region36: #{siamfc_head.1} parent=5 // pred_fallthru
      _
  $region6: #{siamfc_head.1} parent=0 // loop_footer
    %s12 = sadd.s32 1, %s8
  $region7: #{siamfc_head.1} parent=0 // loop_footer_branch
    %7 = sbr.rel target = $region3
  $region8: #{siamfc_head.1} parent=0 // loop_exit
    _

</llo_original>
